<compile_context>
chip_gen: v6e
topology: v6e:2x2x1
jax: 0.10.0
libtpu: 0.0.40
codegen_flags: <defaults>
</compile_context>

<pallas_src>
import jax
import jax.numpy as jnp
from jax import lax
from jax.experimental import pallas as pl
from jax.experimental.pallas import tpu as pltpu


INPUT_SIZE = 10
HIDDEN_SIZE = 20
OUTPUT_SIZE = 1
NUM_LAYERS = 2          # kernel hard-wires the 2 stacked LSTM layers
SEQ_LEN = 8
BATCH = 2

NGATES = 4
GATE_PAD = 128          # each gate gets its own full 128-lane block


def _make_kernel(S, B, H):
    G = GATE_PAD

    def gates_to_hc(gates, c):
        # PyTorch gate order i, f, g, o. Each gate occupies one vreg-aligned
        # 128-lane block, so these slices are free (no lane rotation).
        i_g = jax.nn.sigmoid(gates[:, 0 * G:1 * G])
        f_g = jax.nn.sigmoid(gates[:, 1 * G:2 * G])
        g_g = jnp.tanh(gates[:, 2 * G:3 * G])
        o_g = jax.nn.sigmoid(gates[:, 3 * G:4 * G])
        c_new = f_g * c + i_g * g_g
        h_new = o_g * jnp.tanh(c_new)
        return h_new, c_new

    def kernel(x_ref, wih0_ref, b0_ref, whh0_ref,
               wih1_ref, whh1_ref, b1_ref,
               wout_ref, bout_ref,
               o_ref, xg0_scr, h2_scr):
        # ---- Prologue: hoisted layer-0 input projection (one MXU pass over
        # all timesteps), bias folded in once.
        xg0_scr[...] = (
            jnp.dot(x_ref[...], wih0_ref[...],
                    preferred_element_type=jnp.float32)
            + b0_ref[...])

        # Hoist the layer-1 bias broadcast out of the time loop.
        b1b = jnp.broadcast_to(b1_ref[...], (B, NGATES * G))

        zeros = jnp.zeros((B, G), jnp.float32)
        h1, c1, h2, c2 = zeros, zeros, zeros, zeros

        # Fully unrolled time loop: S is tiny and static, so straight-line
        # code gives the scheduler full cross-iteration visibility and makes
        # every slice static.
        for t in range(S):
            r = t * B

            # Layer 0: only the recurrent matmul is on the serial path; the
            # input projection was precomputed above.
            g0 = xg0_scr[r:r + B, :] + jnp.dot(
                h1[:, :H], whh0_ref[...],
                preferred_element_type=jnp.float32)
            h1, c1 = gates_to_hc(g0, c1)

            # Layer 1: two independent small matmuls (they pipeline on MXU).
            h1s = h1[:, :H]
            g1 = (jnp.dot(h1s, wih1_ref[...],
                          preferred_element_type=jnp.float32)
                  + jnp.dot(h2[:, :H], whh1_ref[...],
                            preferred_element_type=jnp.float32)
                  + b1b)
            h2, c2 = gates_to_hc(g1, c2)

            # Stash the layer-1 hidden state; output Linear deferred.
            h2_scr[r:r + B, :] = h2

        # ---- Epilogue: one batched output projection and a single store
        # (no per-step 1-lane masked stores on the critical path).
        y = (jnp.dot(h2_scr[...], wout_ref[...],
                     preferred_element_type=jnp.float32)
             + bout_ref[...])
        o_ref[...] = y.astype(o_ref.dtype)

    return kernel


def _pad_gate_cols(w_t):
    """(K, 4H) -> (K, 4*GATE_PAD): each gate's H columns start its own
    128-lane block; padded columns are zero."""
    K = w_t.shape[0]
    H, G = HIDDEN_SIZE, GATE_PAD
    w4 = w_t.reshape(K, NGATES, H)
    out = jnp.zeros((K, NGATES, G), w_t.dtype).at[:, :, :H].set(w4)
    return out.reshape(K, NGATES * G)


def _pad_gate_bias(b):
    """(4H,) -> (1, 4*GATE_PAD) with the same per-gate padding."""
    H, G = HIDDEN_SIZE, GATE_PAD
    b4 = b.reshape(NGATES, H)
    out = jnp.zeros((NGATES, G), b.dtype).at[:, :H].set(b4)
    return out.reshape(1, NGATES * G)


def lstm_forward(x, params):
    """x: (S, B, I) float32 -> (S, B, O) float32."""
    S, B, _ = x.shape
    H, O, G = HIDDEN_SIZE, OUTPUT_SIZE, GATE_PAD
    (wih0, whh0, bih0, bhh0,
     wih1, whh1, bih1, bhh1,
     wout, bout) = params

    # One-time weight prep in plain JAX: transpose so the kernel computes
    # (B,K)@(K,4G), fold the two LSTM bias vectors, pad gates to 128 lanes.
    wih0_p = _pad_gate_cols(wih0.T)                   # (I, 4G)
    whh0_p = _pad_gate_cols(whh0.T)                   # (H, 4G)
    b0_p = _pad_gate_bias(bih0 + bhh0)                # (1, 4G)
    wih1_p = _pad_gate_cols(wih1.T)                   # (H, 4G)
    whh1_p = _pad_gate_cols(whh1.T)                   # (H, 4G)
    b1_p = _pad_gate_bias(bih1 + bhh1)                # (1, 4G)
    wout_p = jnp.zeros((G, O), wout.dtype).at[:H, :].set(wout.T)  # (G, O)
    bout_p = bout.reshape(1, O)

    x_flat = x.reshape(S * B, INPUT_SIZE)             # time-major rows

    kernel = _make_kernel(S, B, H)
    vmem = pl.BlockSpec(memory_space=pltpu.MemorySpace.VMEM)
    args = (x_flat, wih0_p, b0_p, whh0_p, wih1_p, whh1_p, b1_p,
            wout_p, bout_p)

    out_flat = pl.pallas_call(
        kernel,
        out_shape=jax.ShapeDtypeStruct((S * B, O), x.dtype),
        in_specs=[vmem] * len(args),
        out_specs=vmem,
        scratch_shapes=[
            pltpu.VMEM((S * B, NGATES * G), jnp.float32),  # hoisted x @ Wih0
            pltpu.VMEM((S * B, G), jnp.float32),           # per-step h2 slab
        ],
    )(*args)
    return out_flat.reshape(S, B, O)


def ref_forward(x, params):
    """Pure-JAX reference mirroring torch.nn.LSTM(2 layers) + Linear."""
    (wih0, whh0, bih0, bhh0,
     wih1, whh1, bih1, bhh1,
     wout, bout) = params
    H = HIDDEN_SIZE

    def cell(x_t, h, c, wih, whh, bih, bhh):
        gates = x_t @ wih.T + bih + h @ whh.T + bhh
        i_g = jax.nn.sigmoid(gates[:, 0 * H:1 * H])
        f_g = jax.nn.sigmoid(gates[:, 1 * H:2 * H])
        g_g = jnp.tanh(gates[:, 2 * H:3 * H])
        o_g = jax.nn.sigmoid(gates[:, 3 * H:4 * H])
        c_new = f_g * c + i_g * g_g
        return o_g * jnp.tanh(c_new), c_new

    def step(carry, x_t):
        h1, c1, h2, c2 = carry
        h1, c1 = cell(x_t, h1, c1, wih0, whh0, bih0, bhh0)
        h2, c2 = cell(h1, h2, c2, wih1, whh1, bih1, bhh1)
        y = h2 @ wout.T + bout
        return (h1, c1, h2, c2), y

    B = x.shape[1]
    zeros = jnp.zeros((B, H), jnp.float32)
    _, ys = lax.scan(step, (zeros, zeros, zeros, zeros), x)
    return ys


if __name__ == "__main__":
    key = jax.random.PRNGKey(0)
    keys = jax.random.split(key, 11)
    H, I, O = HIDDEN_SIZE, INPUT_SIZE, OUTPUT_SIZE
    k = 1.0 / jnp.sqrt(jnp.float32(H))

    def u(kk, shape):
        return jax.random.uniform(kk, shape, jnp.float32, -k, k)

    # PyTorch-shaped parameters (deterministic synthetic init).
    wih0 = u(keys[0], (4 * H, I))
    whh0 = u(keys[1], (4 * H, H))
    bih0 = u(keys[2], (4 * H,))
    bhh0 = u(keys[3], (4 * H,))
    wih1 = u(keys[4], (4 * H, H))
    whh1 = u(keys[5], (4 * H, H))
    bih1 = u(keys[6], (4 * H,))
    bhh1 = u(keys[7], (4 * H,))
    wout = u(keys[8], (O, H))
    bout = u(keys[9], (O,))
    params = (wih0, whh0, bih0, bhh0, wih1, whh1, bih1, bhh1, wout, bout)

    x = jax.random.normal(keys[10], (SEQ_LEN, BATCH, I), jnp.float32)

    out = jax.block_until_ready(lstm_forward(x, params))
    assert out.shape == (SEQ_LEN, BATCH, O), out.shape

    ref = jax.block_until_ready(ref_forward(x, params))
    assert jnp.allclose(out, ref, rtol=2e-3, atol=2e-3), (
        float(jnp.max(jnp.abs(out - ref))))

    print("KERNEL_OK")
</pallas_src>

<mosaic_0001>
module attributes {stable_mosaic.version = 11 : i64} {
  func.func @kernel(%arg0: memref<16x10xf32, #tpu.memory_space<vmem>>, %arg1: memref<10x512xf32, #tpu.memory_space<vmem>>, %arg2: memref<1x512xf32, #tpu.memory_space<vmem>>, %arg3: memref<20x512xf32, #tpu.memory_space<vmem>>, %arg4: memref<20x512xf32, #tpu.memory_space<vmem>>, %arg5: memref<20x512xf32, #tpu.memory_space<vmem>>, %arg6: memref<1x512xf32, #tpu.memory_space<vmem>>, %arg7: memref<128x1xf32, #tpu.memory_space<vmem>>, %arg8: memref<1x1xf32, #tpu.memory_space<vmem>>, %arg9: memref<16x1xf32, #tpu.memory_space<vmem>>, %arg10: memref<16x512xf32, #tpu.memory_space<vmem>>, %arg11: memref<16x128xf32, #tpu.memory_space<vmem>>) attributes {dimension_semantics = [], scalar_prefetch = 0 : i64, scratch_operands = 2 : i64, tpu.core_type = #tpu.core_type<tc>} {
    %c0 = arith.constant 0 : index
    %c0_0 = arith.constant 0 : index
    %0 = vector.load %arg0[%c0, %c0_0] : memref<16x10xf32, #tpu.memory_space<vmem>>, vector<16x10xf32>
    %c0_1 = arith.constant 0 : index
    %c0_2 = arith.constant 0 : index
    %1 = vector.load %arg1[%c0_1, %c0_2] : memref<10x512xf32, #tpu.memory_space<vmem>>, vector<10x512xf32>
    %cst = arith.constant dense<0.000000e+00> : vector<16x512xf32>
    %2 = tpu.matmul %0, %1, %cst {dimension_numbers = #tpu.dot_dimension_numbers<[1], [0], [0], [1], [0, 0, 1, 1], [], []>} : vector<16x10xf32>, vector<10x512xf32>, vector<16x512xf32> -> vector<16x512xf32>
    %c0_3 = arith.constant 0 : index
    %c0_4 = arith.constant 0 : index
    %3 = vector.load %arg2[%c0_3, %c0_4] : memref<1x512xf32, #tpu.memory_space<vmem>>, vector<1x512xf32>
    %4 = vector.broadcast %3 : vector<1x512xf32> to vector<16x512xf32>
    %5 = arith.addf %2, %4 : vector<16x512xf32>
    %c0_5 = arith.constant 0 : index
    %c0_6 = arith.constant 0 : index
    %6 = vector.load %arg10[%c0_5, %c0_6] : memref<16x512xf32, #tpu.memory_space<vmem>>, vector<16x512xf32>
    tpu.vector_store %arg10[%c0_5, %c0_6], %5 {strides = array<i32>} : memref<16x512xf32, #tpu.memory_space<vmem>>, vector<16x512xf32>,
    %c0_7 = arith.constant 0 : index
    %c0_8 = arith.constant 0 : index
    %7 = vector.load %arg6[%c0_7, %c0_8] : memref<1x512xf32, #tpu.memory_space<vmem>>, vector<1x512xf32>
    %8 = vector.shape_cast %7 : vector<1x512xf32> to vector<1x512xf32>
    %9 = vector.broadcast %8 : vector<1x512xf32> to vector<2x512xf32>
    %cst_9 = arith.constant 0.000000e+00 : f32
    %10 = vector.broadcast %cst_9 : f32 to vector<2x128xf32>
    %c0_10 = arith.constant 0 : index
    %c0_11 = arith.constant 0 : index
    %11 = vector.load %arg10[%c0_10, %c0_11] : memref<16x512xf32, #tpu.memory_space<vmem>>, vector<2x512xf32>
    %12 = vector.extract_strided_slice %10 {offsets = [0, 0], sizes = [2, 20], strides = [1, 1]} : vector<2x128xf32> to vector<2x20xf32>
    %c0_12 = arith.constant 0 : index
    %c0_13 = arith.constant 0 : index
    %13 = vector.load %arg3[%c0_12, %c0_13] : memref<20x512xf32, #tpu.memory_space<vmem>>, vector<20x512xf32>
    %cst_14 = arith.constant dense<0.000000e+00> : vector<2x512xf32>
    %14 = tpu.matmul %12, %13, %cst_14 {dimension_numbers = #tpu.dot_dimension_numbers<[1], [0], [0], [1], [0, 0, 1, 1], [], []>} : vector<2x20xf32>, vector<20x512xf32>, vector<2x512xf32> -> vector<2x512xf32>
    %15 = arith.addf %11, %14 : vector<2x512xf32>
    %16 = vector.extract_strided_slice %15 {offsets = [0, 0], sizes = [2, 128], strides = [1, 1]} : vector<2x512xf32> to vector<2x128xf32>
    %17 = arith.negf %16 : vector<2x128xf32>
    %18 = math.exp %17 : vector<2x128xf32>
    %cst_15 = arith.constant 1.000000e+00 : f32
    %19 = vector.broadcast %cst_15 : f32 to vector<2x128xf32>
    %20 = arith.addf %19, %18 : vector<2x128xf32>
    %21 = arith.divf %19, %20 : vector<2x128xf32>
    %22 = vector.extract_strided_slice %15 {offsets = [0, 128], sizes = [2, 128], strides = [1, 1]} : vector<2x512xf32> to vector<2x128xf32>
    %23 = arith.negf %22 : vector<2x128xf32>
    %24 = math.exp %23 : vector<2x128xf32>
    %cst_16 = arith.constant 1.000000e+00 : f32
    %25 = vector.broadcast %cst_16 : f32 to vector<2x128xf32>
    %26 = arith.addf %25, %24 : vector<2x128xf32>
    %27 = arith.divf %25, %26 : vector<2x128xf32>
    %28 = vector.extract_strided_slice %15 {offsets = [0, 256], sizes = [2, 128], strides = [1, 1]} : vector<2x512xf32> to vector<2x128xf32>
    %29 = math.tanh %28 : vector<2x128xf32>
    %30 = vector.extract_strided_slice %15 {offsets = [0, 384], sizes = [2, 128], strides = [1, 1]} : vector<2x512xf32> to vector<2x128xf32>
    %31 = arith.negf %30 : vector<2x128xf32>
    %32 = math.exp %31 : vector<2x128xf32>
    %cst_17 = arith.constant 1.000000e+00 : f32
    %33 = vector.broadcast %cst_17 : f32 to vector<2x128xf32>
    %34 = arith.addf %33, %32 : vector<2x128xf32>
    %35 = arith.divf %33, %34 : vector<2x128xf32>
    %36 = arith.mulf %27, %10 : vector<2x128xf32>
    %37 = arith.mulf %21, %29 : vector<2x128xf32>
    %38 = arith.addf %36, %37 : vector<2x128xf32>
    %39 = math.tanh %38 : vector<2x128xf32>
    %40 = arith.mulf %35, %39 : vector<2x128xf32>
    %41 = vector.extract_strided_slice %40 {offsets = [0, 0], sizes = [2, 20], strides = [1, 1]} : vector<2x128xf32> to vector<2x20xf32>
    %c0_18 = arith.constant 0 : index
    %c0_19 = arith.constant 0 : index
    %42 = vector.load %arg4[%c0_18, %c0_19] : memref<20x512xf32, #tpu.memory_space<vmem>>, vector<20x512xf32>
    %cst_20 = arith.constant dense<0.000000e+00> : vector<2x512xf32>
    %43 = tpu.matmul %41, %42, %cst_20 {dimension_numbers = #tpu.dot_dimension_numbers<[1], [0], [0], [1], [0, 0, 1, 1], [], []>} : vector<2x20xf32>, vector<20x512xf32>, vector<2x512xf32> -> vector<2x512xf32>
    %44 = vector.extract_strided_slice %10 {offsets = [0, 0], sizes = [2, 20], strides = [1, 1]} : vector<2x128xf32> to vector<2x20xf32>
    %c0_21 = arith.constant 0 : index
    %c0_22 = arith.constant 0 : index
    %45 = vector.load %arg5[%c0_21, %c0_22] : memref<20x512xf32, #tpu.memory_space<vmem>>, vector<20x512xf32>
    %cst_23 = arith.constant dense<0.000000e+00> : vector<2x512xf32>
    %46 = tpu.matmul %44, %45, %cst_23 {dimension_numbers = #tpu.dot_dimension_numbers<[1], [0], [0], [1], [0, 0, 1, 1], [], []>} : vector<2x20xf32>, vector<20x512xf32>, vector<2x512xf32> -> vector<2x512xf32>
    %47 = arith.addf %43, %46 : vector<2x512xf32>
    %48 = arith.addf %47, %9 : vector<2x512xf32>
    %49 = vector.extract_strided_slice %48 {offsets = [0, 0], sizes = [2, 128], strides = [1, 1]} : vector<2x512xf32> to vector<2x128xf32>
    %50 = arith.negf %49 : vector<2x128xf32>
    %51 = math.exp %50 : vector<2x128xf32>
    %cst_24 = arith.constant 1.000000e+00 : f32
    %52 = vector.broadcast %cst_24 : f32 to vector<2x128xf32>
    %53 = arith.addf %52, %51 : vector<2x128xf32>
    %54 = arith.divf %52, %53 : vector<2x128xf32>
    %55 = vector.extract_strided_slice %48 {offsets = [0, 128], sizes = [2, 128], strides = [1, 1]} : vector<2x512xf32> to vector<2x128xf32>
    %56 = arith.negf %55 : vector<2x128xf32>
    %57 = math.exp %56 : vector<2x128xf32>
    %cst_25 = arith.constant 1.000000e+00 : f32
    %58 = vector.broadcast %cst_25 : f32 to vector<2x128xf32>
    %59 = arith.addf %58, %57 : vector<2x128xf32>
    %60 = arith.divf %58, %59 : vector<2x128xf32>
    %61 = vector.extract_strided_slice %48 {offsets = [0, 256], sizes = [2, 128], strides = [1, 1]} : vector<2x512xf32> to vector<2x128xf32>
    %62 = math.tanh %61 : vector<2x128xf32>
    %63 = vector.extract_strided_slice %48 {offsets = [0, 384], sizes = [2, 128], strides = [1, 1]} : vector<2x512xf32> to vector<2x128xf32>
    %64 = arith.negf %63 : vector<2x128xf32>
    %65 = math.exp %64 : vector<2x128xf32>
    %cst_26 = arith.constant 1.000000e+00 : f32
    %66 = vector.broadcast %cst_26 : f32 to vector<2x128xf32>
    %67 = arith.addf %66, %65 : vector<2x128xf32>
    %68 = arith.divf %66, %67 : vector<2x128xf32>
    %69 = arith.mulf %60, %10 : vector<2x128xf32>
    %70 = arith.mulf %54, %62 : vector<2x128xf32>
    %71 = arith.addf %69, %70 : vector<2x128xf32>
    %72 = math.tanh %71 : vector<2x128xf32>
    %73 = arith.mulf %68, %72 : vector<2x128xf32>
    %c0_27 = arith.constant 0 : index
    %c0_28 = arith.constant 0 : index
    %74 = vector.load %arg11[%c0_27, %c0_28] : memref<16x128xf32, #tpu.memory_space<vmem>>, vector<2x128xf32>
    tpu.vector_store %arg11[%c0_27, %c0_28], %73 {strides = array<i32>} : memref<16x128xf32, #tpu.memory_space<vmem>>, vector<2x128xf32>,
    %c2 = arith.constant 2 : index
    %c0_29 = arith.constant 0 : index
    %75 = vector.load %arg10[%c2, %c0_29] : memref<16x512xf32, #tpu.memory_space<vmem>>, vector<2x512xf32>
    %76 = vector.extract_strided_slice %40 {offsets = [0, 0], sizes = [2, 20], strides = [1, 1]} : vector<2x128xf32> to vector<2x20xf32>
    %c0_30 = arith.constant 0 : index
    %c0_31 = arith.constant 0 : index
    %77 = vector.load %arg3[%c0_30, %c0_31] : memref<20x512xf32, #tpu.memory_space<vmem>>, vector<20x512xf32>
    %cst_32 = arith.constant dense<0.000000e+00> : vector<2x512xf32>
    %78 = tpu.matmul %76, %77, %cst_32 {dimension_numbers = #tpu.dot_dimension_numbers<[1], [0], [0], [1], [0, 0, 1, 1], [], []>} : vector<2x20xf32>, vector<20x512xf32>, vector<2x512xf32> -> vector<2x512xf32>
    %79 = arith.addf %75, %78 : vector<2x512xf32>
    %80 = vector.extract_strided_slice %79 {offsets = [0, 0], sizes = [2, 128], strides = [1, 1]} : vector<2x512xf32> to vector<2x128xf32>
    %81 = arith.negf %80 : vector<2x128xf32>
    %82 = math.exp %81 : vector<2x128xf32>
    %cst_33 = arith.constant 1.000000e+00 : f32
    %83 = vector.broadcast %cst_33 : f32 to vector<2x128xf32>
    %84 = arith.addf %83, %82 : vector<2x128xf32>
    %85 = arith.divf %83, %84 : vector<2x128xf32>
    %86 = vector.extract_strided_slice %79 {offsets = [0, 128], sizes = [2, 128], strides = [1, 1]} : vector<2x512xf32> to vector<2x128xf32>
    %87 = arith.negf %86 : vector<2x128xf32>
    %88 = math.exp %87 : vector<2x128xf32>
    %cst_34 = arith.constant 1.000000e+00 : f32
    %89 = vector.broadcast %cst_34 : f32 to vector<2x128xf32>
    %90 = arith.addf %89, %88 : vector<2x128xf32>
    %91 = arith.divf %89, %90 : vector<2x128xf32>
    %92 = vector.extract_strided_slice %79 {offsets = [0, 256], sizes = [2, 128], strides = [1, 1]} : vector<2x512xf32> to vector<2x128xf32>
    %93 = math.tanh %92 : vector<2x128xf32>
    %94 = vector.extract_strided_slice %79 {offsets = [0, 384], sizes = [2, 128], strides = [1, 1]} : vector<2x512xf32> to vector<2x128xf32>
    %95 = arith.negf %94 : vector<2x128xf32>
    %96 = math.exp %95 : vector<2x128xf32>
    %cst_35 = arith.constant 1.000000e+00 : f32
    %97 = vector.broadcast %cst_35 : f32 to vector<2x128xf32>
    %98 = arith.addf %97, %96 : vector<2x128xf32>
    %99 = arith.divf %97, %98 : vector<2x128xf32>
    %100 = arith.mulf %91, %38 : vector<2x128xf32>
    %101 = arith.mulf %85, %93 : vector<2x128xf32>
    %102 = arith.addf %100, %101 : vector<2x128xf32>
    %103 = math.tanh %102 : vector<2x128xf32>
    %104 = arith.mulf %99, %103 : vector<2x128xf32>
    %105 = vector.extract_strided_slice %104 {offsets = [0, 0], sizes = [2, 20], strides = [1, 1]} : vector<2x128xf32> to vector<2x20xf32>
    %c0_36 = arith.constant 0 : index
    %c0_37 = arith.constant 0 : index
    %106 = vector.load %arg4[%c0_36, %c0_37] : memref<20x512xf32, #tpu.memory_space<vmem>>, vector<20x512xf32>
    %cst_38 = arith.constant dense<0.000000e+00> : vector<2x512xf32>
    %107 = tpu.matmul %105, %106, %cst_38 {dimension_numbers = #tpu.dot_dimension_numbers<[1], [0], [0], [1], [0, 0, 1, 1], [], []>} : vector<2x20xf32>, vector<20x512xf32>, vector<2x512xf32> -> vector<2x512xf32>
    %108 = vector.extract_strided_slice %73 {offsets = [0, 0], sizes = [2, 20], strides = [1, 1]} : vector<2x128xf32> to vector<2x20xf32>
    %c0_39 = arith.constant 0 : index
    %c0_40 = arith.constant 0 : index
    %109 = vector.load %arg5[%c0_39, %c0_40] : memref<20x512xf32, #tpu.memory_space<vmem>>, vector<20x512xf32>
    %cst_41 = arith.constant dense<0.000000e+00> : vector<2x512xf32>
    %110 = tpu.matmul %108, %109, %cst_41 {dimension_numbers = #tpu.dot_dimension_numbers<[1], [0], [0], [1], [0, 0, 1, 1], [], []>} : vector<2x20xf32>, vector<20x512xf32>, vector<2x512xf32> -> vector<2x512xf32>
    %111 = arith.addf %107, %110 : vector<2x512xf32>
    %112 = arith.addf %111, %9 : vector<2x512xf32>
    %113 = vector.extract_strided_slice %112 {offsets = [0, 0], sizes = [2, 128], strides = [1, 1]} : vector<2x512xf32> to vector<2x128xf32>
    %114 = arith.negf %113 : vector<2x128xf32>
    %115 = math.exp %114 : vector<2x128xf32>
    %cst_42 = arith.constant 1.000000e+00 : f32
    %116 = vector.broadcast %cst_42 : f32 to vector<2x128xf32>
    %117 = arith.addf %116, %115 : vector<2x128xf32>
    %118 = arith.divf %116, %117 : vector<2x128xf32>
    %119 = vector.extract_strided_slice %112 {offsets = [0, 128], sizes = [2, 128], strides = [1, 1]} : vector<2x512xf32> to vector<2x128xf32>
    %120 = arith.negf %119 : vector<2x128xf32>
    %121 = math.exp %120 : vector<2x128xf32>
    %cst_43 = arith.constant 1.000000e+00 : f32
    %122 = vector.broadcast %cst_43 : f32 to vector<2x128xf32>
    %123 = arith.addf %122, %121 : vector<2x128xf32>
    %124 = arith.divf %122, %123 : vector<2x128xf32>
    %125 = vector.extract_strided_slice %112 {offsets = [0, 256], sizes = [2, 128], strides = [1, 1]} : vector<2x512xf32> to vector<2x128xf32>
    %126 = math.tanh %125 : vector<2x128xf32>
    %127 = vector.extract_strided_slice %112 {offsets = [0, 384], sizes = [2, 128], strides = [1, 1]} : vector<2x512xf32> to vector<2x128xf32>
    %128 = arith.negf %127 : vector<2x128xf32>
    %129 = math.exp %128 : vector<2x128xf32>
    %cst_44 = arith.constant 1.000000e+00 : f32
    %130 = vector.broadcast %cst_44 : f32 to vector<2x128xf32>
    %131 = arith.addf %130, %129 : vector<2x128xf32>
    %132 = arith.divf %130, %131 : vector<2x128xf32>
    %133 = arith.mulf %124, %71 : vector<2x128xf32>
    %134 = arith.mulf %118, %126 : vector<2x128xf32>
    %135 = arith.addf %133, %134 : vector<2x128xf32>
    %136 = math.tanh %135 : vector<2x128xf32>
    %137 = arith.mulf %132, %136 : vector<2x128xf32>
    %c2_45 = arith.constant 2 : index
    %c0_46 = arith.constant 0 : index
    %138 = vector.load %arg11[%c2_45, %c0_46] : memref<16x128xf32, #tpu.memory_space<vmem>>, vector<2x128xf32>
    tpu.vector_store %arg11[%c2_45, %c0_46], %137 {strides = array<i32>} : memref<16x128xf32, #tpu.memory_space<vmem>>, vector<2x128xf32>,
    %c4 = arith.constant 4 : index
    %c0_47 = arith.constant 0 : index
    %139 = vector.load %arg10[%c4, %c0_47] : memref<16x512xf32, #tpu.memory_space<vmem>>, vector<2x512xf32>
    %140 = vector.extract_strided_slice %104 {offsets = [0, 0], sizes = [2, 20], strides = [1, 1]} : vector<2x128xf32> to vector<2x20xf32>
    %c0_48 = arith.constant 0 : index
    %c0_49 = arith.constant 0 : index
    %141 = vector.load %arg3[%c0_48, %c0_49] : memref<20x512xf32, #tpu.memory_space<vmem>>, vector<20x512xf32>
    %cst_50 = arith.constant dense<0.000000e+00> : vector<2x512xf32>
    %142 = tpu.matmul %140, %141, %cst_50 {dimension_numbers = #tpu.dot_dimension_numbers<[1], [0], [0], [1], [0, 0, 1, 1], [], []>} : vector<2x20xf32>, vector<20x512xf32>, vector<2x512xf32> -> vector<2x512xf32>
    %143 = arith.addf %139, %142 : vector<2x512xf32>
    %144 = vector.extract_strided_slice %143 {offsets = [0, 0], sizes = [2, 128], strides = [1, 1]} : vector<2x512xf32> to vector<2x128xf32>
    %145 = arith.negf %144 : vector<2x128xf32>
    %146 = math.exp %145 : vector<2x128xf32>
    %cst_51 = arith.constant 1.000000e+00 : f32
    %147 = vector.broadcast %cst_51 : f32 to vector<2x128xf32>
    %148 = arith.addf %147, %146 : vector<2x128xf32>
    %149 = arith.divf %147, %148 : vector<2x128xf32>
    %150 = vector.extract_strided_slice %143 {offsets = [0, 128], sizes = [2, 128], strides = [1, 1]} : vector<2x512xf32> to vector<2x128xf32>
    %151 = arith.negf %150 : vector<2x128xf32>
    %152 = math.exp %151 : vector<2x128xf32>
    %cst_52 = arith.constant 1.000000e+00 : f32
    %153 = vector.broadcast %cst_52 : f32 to vector<2x128xf32>
    %154 = arith.addf %153, %152 : vector<2x128xf32>
    %155 = arith.divf %153, %154 : vector<2x128xf32>
    %156 = vector.extract_strided_slice %143 {offsets = [0, 256], sizes = [2, 128], strides = [1, 1]} : vector<2x512xf32> to vector<2x128xf32>
    %157 = math.tanh %156 : vector<2x128xf32>
    %158 = vector.extract_strided_slice %143 {offsets = [0, 384], sizes = [2, 128], strides = [1, 1]} : vector<2x512xf32> to vector<2x128xf32>
    %159 = arith.negf %158 : vector<2x128xf32>
    %160 = math.exp %159 : vector<2x128xf32>
    %cst_53 = arith.constant 1.000000e+00 : f32
    %161 = vector.broadcast %cst_53 : f32 to vector<2x128xf32>
    %162 = arith.addf %161, %160 : vector<2x128xf32>
    %163 = arith.divf %161, %162 : vector<2x128xf32>
    %164 = arith.mulf %155, %102 : vector<2x128xf32>
    %165 = arith.mulf %149, %157 : vector<2x128xf32>
    %166 = arith.addf %164, %165 : vector<2x128xf32>
    %167 = math.tanh %166 : vector<2x128xf32>
    %168 = arith.mulf %163, %167 : vector<2x128xf32>
    %169 = vector.extract_strided_slice %168 {offsets = [0, 0], sizes = [2, 20], strides = [1, 1]} : vector<2x128xf32> to vector<2x20xf32>
    %c0_54 = arith.constant 0 : index
    %c0_55 = arith.constant 0 : index
    %170 = vector.load %arg4[%c0_54, %c0_55] : memref<20x512xf32, #tpu.memory_space<vmem>>, vector<20x512xf32>
    %cst_56 = arith.constant dense<0.000000e+00> : vector<2x512xf32>
    %171 = tpu.matmul %169, %170, %cst_56 {dimension_numbers = #tpu.dot_dimension_numbers<[1], [0], [0], [1], [0, 0, 1, 1], [], []>} : vector<2x20xf32>, vector<20x512xf32>, vector<2x512xf32> -> vector<2x512xf32>
    %172 = vector.extract_strided_slice %137 {offsets = [0, 0], sizes = [2, 20], strides = [1, 1]} : vector<2x128xf32> to vector<2x20xf32>
    %c0_57 = arith.constant 0 : index
    %c0_58 = arith.constant 0 : index
    %173 = vector.load %arg5[%c0_57, %c0_58] : memref<20x512xf32, #tpu.memory_space<vmem>>, vector<20x512xf32>
    %cst_59 = arith.constant dense<0.000000e+00> : vector<2x512xf32>
    %174 = tpu.matmul %172, %173, %cst_59 {dimension_numbers = #tpu.dot_dimension_numbers<[1], [0], [0], [1], [0, 0, 1, 1], [], []>} : vector<2x20xf32>, vector<20x512xf32>, vector<2x512xf32> -> vector<2x512xf32>
    %175 = arith.addf %171, %174 : vector<2x512xf32>
    %176 = arith.addf %175, %9 : vector<2x512xf32>
    %177 = vector.extract_strided_slice %176 {offsets = [0, 0], sizes = [2, 128], strides = [1, 1]} : vector<2x512xf32> to vector<2x128xf32>
    %178 = arith.negf %177 : vector<2x128xf32>
    %179 = math.exp %178 : vector<2x128xf32>
    %cst_60 = arith.constant 1.000000e+00 : f32
    %180 = vector.broadcast %cst_60 : f32 to vector<2x128xf32>
    %181 = arith.addf %180, %179 : vector<2x128xf32>
    %182 = arith.divf %180, %181 : vector<2x128xf32>
    %183 = vector.extract_strided_slice %176 {offsets = [0, 128], sizes = [2, 128], strides = [1, 1]} : vector<2x512xf32> to vector<2x128xf32>
    %184 = arith.negf %183 : vector<2x128xf32>
    %185 = math.exp %184 : vector<2x128xf32>
    %cst_61 = arith.constant 1.000000e+00 : f32
    %186 = vector.broadcast %cst_61 : f32 to vector<2x128xf32>
    %187 = arith.addf %186, %185 : vector<2x128xf32>
    %188 = arith.divf %186, %187 : vector<2x128xf32>
    %189 = vector.extract_strided_slice %176 {offsets = [0, 256], sizes = [2, 128], strides = [1, 1]} : vector<2x512xf32> to vector<2x128xf32>
    %190 = math.tanh %189 : vector<2x128xf32>
    %191 = vector.extract_strided_slice %176 {offsets = [0, 384], sizes = [2, 128], strides = [1, 1]} : vector<2x512xf32> to vector<2x128xf32>
    %192 = arith.negf %191 : vector<2x128xf32>
    %193 = math.exp %192 : vector<2x128xf32>
    %cst_62 = arith.constant 1.000000e+00 : f32
    %194 = vector.broadcast %cst_62 : f32 to vector<2x128xf32>
    %195 = arith.addf %194, %193 : vector<2x128xf32>
    %196 = arith.divf %194, %195 : vector<2x128xf32>
    %197 = arith.mulf %188, %135 : vector<2x128xf32>
    %198 = arith.mulf %182, %190 : vector<2x128xf32>
    %199 = arith.addf %197, %198 : vector<2x128xf32>
    %200 = math.tanh %199 : vector<2x128xf32>
    %201 = arith.mulf %196, %200 : vector<2x128xf32>
    %c4_63 = arith.constant 4 : index
    %c0_64 = arith.constant 0 : index
    %202 = vector.load %arg11[%c4_63, %c0_64] : memref<16x128xf32, #tpu.memory_space<vmem>>, vector<2x128xf32>
    tpu.vector_store %arg11[%c4_63, %c0_64], %201 {strides = array<i32>} : memref<16x128xf32, #tpu.memory_space<vmem>>, vector<2x128xf32>,
    %c6 = arith.constant 6 : index
    %c0_65 = arith.constant 0 : index
    %203 = vector.load %arg10[%c6, %c0_65] : memref<16x512xf32, #tpu.memory_space<vmem>>, vector<2x512xf32>
    %204 = vector.extract_strided_slice %168 {offsets = [0, 0], sizes = [2, 20], strides = [1, 1]} : vector<2x128xf32> to vector<2x20xf32>
    %c0_66 = arith.constant 0 : index
    %c0_67 = arith.constant 0 : index
    %205 = vector.load %arg3[%c0_66, %c0_67] : memref<20x512xf32, #tpu.memory_space<vmem>>, vector<20x512xf32>
    %cst_68 = arith.constant dense<0.000000e+00> : vector<2x512xf32>
    %206 = tpu.matmul %204, %205, %cst_68 {dimension_numbers = #tpu.dot_dimension_numbers<[1], [0], [0], [1], [0, 0, 1, 1], [], []>} : vector<2x20xf32>, vector<20x512xf32>, vector<2x512xf32> -> vector<2x512xf32>
    %207 = arith.addf %203, %206 : vector<2x512xf32>
    %208 = vector.extract_strided_slice %207 {offsets = [0, 0], sizes = [2, 128], strides = [1, 1]} : vector<2x512xf32> to vector<2x128xf32>
    %209 = arith.negf %208 : vector<2x128xf32>
    %210 = math.exp %209 : vector<2x128xf32>
    %cst_69 = arith.constant 1.000000e+00 : f32
    %211 = vector.broadcast %cst_69 : f32 to vector<2x128xf32>
    %212 = arith.addf %211, %210 : vector<2x128xf32>
    %213 = arith.divf %211, %212 : vector<2x128xf32>
    %214 = vector.extract_strided_slice %207 {offsets = [0, 128], sizes = [2, 128], strides = [1, 1]} : vector<2x512xf32> to vector<2x128xf32>
    %215 = arith.negf %214 : vector<2x128xf32>
    %216 = math.exp %215 : vector<2x128xf32>
    %cst_70 = arith.constant 1.000000e+00 : f32
    %217 = vector.broadcast %cst_70 : f32 to vector<2x128xf32>
    %218 = arith.addf %217, %216 : vector<2x128xf32>
    %219 = arith.divf %217, %218 : vector<2x128xf32>
    %220 = vector.extract_strided_slice %207 {offsets = [0, 256], sizes = [2, 128], strides = [1, 1]} : vector<2x512xf32> to vector<2x128xf32>
    %221 = math.tanh %220 : vector<2x128xf32>
    %222 = vector.extract_strided_slice %207 {offsets = [0, 384], sizes = [2, 128], strides = [1, 1]} : vector<2x512xf32> to vector<2x128xf32>
    %223 = arith.negf %222 : vector<2x128xf32>
    %224 = math.exp %223 : vector<2x128xf32>
    %cst_71 = arith.constant 1.000000e+00 : f32
    %225 = vector.broadcast %cst_71 : f32 to vector<2x128xf32>
    %226 = arith.addf %225, %224 : vector<2x128xf32>
    %227 = arith.divf %225, %226 : vector<2x128xf32>
    %228 = arith.mulf %219, %166 : vector<2x128xf32>
    %229 = arith.mulf %213, %221 : vector<2x128xf32>
    %230 = arith.addf %228, %229 : vector<2x128xf32>
    %231 = math.tanh %230 : vector<2x128xf32>
    %232 = arith.mulf %227, %231 : vector<2x128xf32>
    %233 = vector.extract_strided_slice %232 {offsets = [0, 0], sizes = [2, 20], strides = [1, 1]} : vector<2x128xf32> to vector<2x20xf32>
    %c0_72 = arith.constant 0 : index
    %c0_73 = arith.constant 0 : index
    %234 = vector.load %arg4[%c0_72, %c0_73] : memref<20x512xf32, #tpu.memory_space<vmem>>, vector<20x512xf32>
    %cst_74 = arith.constant dense<0.000000e+00> : vector<2x512xf32>
    %235 = tpu.matmul %233, %234, %cst_74 {dimension_numbers = #tpu.dot_dimension_numbers<[1], [0], [0], [1], [0, 0, 1, 1], [], []>} : vector<2x20xf32>, vector<20x512xf32>, vector<2x512xf32> -> vector<2x512xf32>
    %236 = vector.extract_strided_slice %201 {offsets = [0, 0], sizes = [2, 20], strides = [1, 1]} : vector<2x128xf32> to vector<2x20xf32>
    %c0_75 = arith.constant 0 : index
    %c0_76 = arith.constant 0 : index
    %237 = vector.load %arg5[%c0_75, %c0_76] : memref<20x512xf32, #tpu.memory_space<vmem>>, vector<20x512xf32>
    %cst_77 = arith.constant dense<0.000000e+00> : vector<2x512xf32>
    %238 = tpu.matmul %236, %237, %cst_77 {dimension_numbers = #tpu.dot_dimension_numbers<[1], [0], [0], [1], [0, 0, 1, 1], [], []>} : vector<2x20xf32>, vector<20x512xf32>, vector<2x512xf32> -> vector<2x512xf32>
    %239 = arith.addf %235, %238 : vector<2x512xf32>
    %240 = arith.addf %239, %9 : vector<2x512xf32>
    %241 = vector.extract_strided_slice %240 {offsets = [0, 0], sizes = [2, 128], strides = [1, 1]} : vector<2x512xf32> to vector<2x128xf32>
    %242 = arith.negf %241 : vector<2x128xf32>
    %243 = math.exp %242 : vector<2x128xf32>
    %cst_78 = arith.constant 1.000000e+00 : f32
    %244 = vector.broadcast %cst_78 : f32 to vector<2x128xf32>
    %245 = arith.addf %244, %243 : vector<2x128xf32>
    %246 = arith.divf %244, %245 : vector<2x128xf32>
    %247 = vector.extract_strided_slice %240 {offsets = [0, 128], sizes = [2, 128], strides = [1, 1]} : vector<2x512xf32> to vector<2x128xf32>
    %248 = arith.negf %247 : vector<2x128xf32>
    %249 = math.exp %248 : vector<2x128xf32>
    %cst_79 = arith.constant 1.000000e+00 : f32
    %250 = vector.broadcast %cst_79 : f32 to vector<2x128xf32>
    %251 = arith.addf %250, %249 : vector<2x128xf32>
    %252 = arith.divf %250, %251 : vector<2x128xf32>
    %253 = vector.extract_strided_slice %240 {offsets = [0, 256], sizes = [2, 128], strides = [1, 1]} : vector<2x512xf32> to vector<2x128xf32>
    %254 = math.tanh %253 : vector<2x128xf32>
    %255 = vector.extract_strided_slice %240 {offsets = [0, 384], sizes = [2, 128], strides = [1, 1]} : vector<2x512xf32> to vector<2x128xf32>
    %256 = arith.negf %255 : vector<2x128xf32>
    %257 = math.exp %256 : vector<2x128xf32>
    %cst_80 = arith.constant 1.000000e+00 : f32
    %258 = vector.broadcast %cst_80 : f32 to vector<2x128xf32>
    %259 = arith.addf %258, %257 : vector<2x128xf32>
    %260 = arith.divf %258, %259 : vector<2x128xf32>
    %261 = arith.mulf %252, %199 : vector<2x128xf32>
    %262 = arith.mulf %246, %254 : vector<2x128xf32>
    %263 = arith.addf %261, %262 : vector<2x128xf32>
    %264 = math.tanh %263 : vector<2x128xf32>
    %265 = arith.mulf %260, %264 : vector<2x128xf32>
    %c6_81 = arith.constant 6 : index
    %c0_82 = arith.constant 0 : index
    %266 = vector.load %arg11[%c6_81, %c0_82] : memref<16x128xf32, #tpu.memory_space<vmem>>, vector<2x128xf32>
    tpu.vector_store %arg11[%c6_81, %c0_82], %265 {strides = array<i32>} : memref<16x128xf32, #tpu.memory_space<vmem>>, vector<2x128xf32>,
    %c8 = arith.constant 8 : index
    %c0_83 = arith.constant 0 : index
    %267 = vector.load %arg10[%c8, %c0_83] : memref<16x512xf32, #tpu.memory_space<vmem>>, vector<2x512xf32>
    %268 = vector.extract_strided_slice %232 {offsets = [0, 0], sizes = [2, 20], strides = [1, 1]} : vector<2x128xf32> to vector<2x20xf32>
    %c0_84 = arith.constant 0 : index
    %c0_85 = arith.constant 0 : index
    %269 = vector.load %arg3[%c0_84, %c0_85] : memref<20x512xf32, #tpu.memory_space<vmem>>, vector<20x512xf32>
    %cst_86 = arith.constant dense<0.000000e+00> : vector<2x512xf32>
    %270 = tpu.matmul %268, %269, %cst_86 {dimension_numbers = #tpu.dot_dimension_numbers<[1], [0], [0], [1], [0, 0, 1, 1], [], []>} : vector<2x20xf32>, vector<20x512xf32>, vector<2x512xf32> -> vector<2x512xf32>
    %271 = arith.addf %267, %270 : vector<2x512xf32>
    %272 = vector.extract_strided_slice %271 {offsets = [0, 0], sizes = [2, 128], strides = [1, 1]} : vector<2x512xf32> to vector<2x128xf32>
    %273 = arith.negf %272 : vector<2x128xf32>
    %274 = math.exp %273 : vector<2x128xf32>
    %cst_87 = arith.constant 1.000000e+00 : f32
    %275 = vector.broadcast %cst_87 : f32 to vector<2x128xf32>
    %276 = arith.addf %275, %274 : vector<2x128xf32>
    %277 = arith.divf %275, %276 : vector<2x128xf32>
    %278 = vector.extract_strided_slice %271 {offsets = [0, 128], sizes = [2, 128], strides = [1, 1]} : vector<2x512xf32> to vector<2x128xf32>
    %279 = arith.negf %278 : vector<2x128xf32>
    %280 = math.exp %279 : vector<2x128xf32>
    %cst_88 = arith.constant 1.000000e+00 : f32
    %281 = vector.broadcast %cst_88 : f32 to vector<2x128xf32>
    %282 = arith.addf %281, %280 : vector<2x128xf32>
    %283 = arith.divf %281, %282 : vector<2x128xf32>
    %284 = vector.extract_strided_slice %271 {offsets = [0, 256], sizes = [2, 128], strides = [1, 1]} : vector<2x512xf32> to vector<2x128xf32>
    %285 = math.tanh %284 : vector<2x128xf32>
    %286 = vector.extract_strided_slice %271 {offsets = [0, 384], sizes = [2, 128], strides = [1, 1]} : vector<2x512xf32> to vector<2x128xf32>
    %287 = arith.negf %286 : vector<2x128xf32>
    %288 = math.exp %287 : vector<2x128xf32>
    %cst_89 = arith.constant 1.000000e+00 : f32
    %289 = vector.broadcast %cst_89 : f32 to vector<2x128xf32>
    %290 = arith.addf %289, %288 : vector<2x128xf32>
    %291 = arith.divf %289, %290 : vector<2x128xf32>
    %292 = arith.mulf %283, %230 : vector<2x128xf32>
    %293 = arith.mulf %277, %285 : vector<2x128xf32>
    %294 = arith.addf %292, %293 : vector<2x128xf32>
    %295 = math.tanh %294 : vector<2x128xf32>
    %296 = arith.mulf %291, %295 : vector<2x128xf32>
    %297 = vector.extract_strided_slice %296 {offsets = [0, 0], sizes = [2, 20], strides = [1, 1]} : vector<2x128xf32> to vector<2x20xf32>
    %c0_90 = arith.constant 0 : index
    %c0_91 = arith.constant 0 : index
    %298 = vector.load %arg4[%c0_90, %c0_91] : memref<20x512xf32, #tpu.memory_space<vmem>>, vector<20x512xf32>
    %cst_92 = arith.constant dense<0.000000e+00> : vector<2x512xf32>
    %299 = tpu.matmul %297, %298, %cst_92 {dimension_numbers = #tpu.dot_dimension_numbers<[1], [0], [0], [1], [0, 0, 1, 1], [], []>} : vector<2x20xf32>, vector<20x512xf32>, vector<2x512xf32> -> vector<2x512xf32>
    %300 = vector.extract_strided_slice %265 {offsets = [0, 0], sizes = [2, 20], strides = [1, 1]} : vector<2x128xf32> to vector<2x20xf32>
    %c0_93 = arith.constant 0 : index
    %c0_94 = arith.constant 0 : index
    %301 = vector.load %arg5[%c0_93, %c0_94] : memref<20x512xf32, #tpu.memory_space<vmem>>, vector<20x512xf32>
    %cst_95 = arith.constant dense<0.000000e+00> : vector<2x512xf32>
    %302 = tpu.matmul %300, %301, %cst_95 {dimension_numbers = #tpu.dot_dimension_numbers<[1], [0], [0], [1], [0, 0, 1, 1], [], []>} : vector<2x20xf32>, vector<20x512xf32>, vector<2x512xf32> -> vector<2x512xf32>
    %303 = arith.addf %299, %302 : vector<2x512xf32>
    %304 = arith.addf %303, %9 : vector<2x512xf32>
    %305 = vector.extract_strided_slice %304 {offsets = [0, 0], sizes = [2, 128], strides = [1, 1]} : vector<2x512xf32> to vector<2x128xf32>
    %306 = arith.negf %305 : vector<2x128xf32>
    %307 = math.exp %306 : vector<2x128xf32>
    %cst_96 = arith.constant 1.000000e+00 : f32
    %308 = vector.broadcast %cst_96 : f32 to vector<2x128xf32>
    %309 = arith.addf %308, %307 : vector<2x128xf32>
    %310 = arith.divf %308, %309 : vector<2x128xf32>
    %311 = vector.extract_strided_slice %304 {offsets = [0, 128], sizes = [2, 128], strides = [1, 1]} : vector<2x512xf32> to vector<2x128xf32>
    %312 = arith.negf %311 : vector<2x128xf32>
    %313 = math.exp %312 : vector<2x128xf32>
    %cst_97 = arith.constant 1.000000e+00 : f32
    %314 = vector.broadcast %cst_97 : f32 to vector<2x128xf32>
    %315 = arith.addf %314, %313 : vector<2x128xf32>
    %316 = arith.divf %314, %315 : vector<2x128xf32>
    %317 = vector.extract_strided_slice %304 {offsets = [0, 256], sizes = [2, 128], strides = [1, 1]} : vector<2x512xf32> to vector<2x128xf32>
    %318 = math.tanh %317 : vector<2x128xf32>
    %319 = vector.extract_strided_slice %304 {offsets = [0, 384], sizes = [2, 128], strides = [1, 1]} : vector<2x512xf32> to vector<2x128xf32>
    %320 = arith.negf %319 : vector<2x128xf32>
    %321 = math.exp %320 : vector<2x128xf32>
    %cst_98 = arith.constant 1.000000e+00 : f32
    %322 = vector.broadcast %cst_98 : f32 to vector<2x128xf32>
    %323 = arith.addf %322, %321 : vector<2x128xf32>
    %324 = arith.divf %322, %323 : vector<2x128xf32>
    %325 = arith.mulf %316, %263 : vector<2x128xf32>
    %326 = arith.mulf %310, %318 : vector<2x128xf32>
    %327 = arith.addf %325, %326 : vector<2x128xf32>
    %328 = math.tanh %327 : vector<2x128xf32>
    %329 = arith.mulf %324, %328 : vector<2x128xf32>
    %c8_99 = arith.constant 8 : index
    %c0_100 = arith.constant 0 : index
    %330 = vector.load %arg11[%c8_99, %c0_100] : memref<16x128xf32, #tpu.memory_space<vmem>>, vector<2x128xf32>
    tpu.vector_store %arg11[%c8_99, %c0_100], %329 {strides = array<i32>} : memref<16x128xf32, #tpu.memory_space<vmem>>, vector<2x128xf32>,
    %c10 = arith.constant 10 : index
    %c0_101 = arith.constant 0 : index
    %331 = vector.load %arg10[%c10, %c0_101] : memref<16x512xf32, #tpu.memory_space<vmem>>, vector<2x512xf32>
    %332 = vector.extract_strided_slice %296 {offsets = [0, 0], sizes = [2, 20], strides = [1, 1]} : vector<2x128xf32> to vector<2x20xf32>
    %c0_102 = arith.constant 0 : index
    %c0_103 = arith.constant 0 : index
    %333 = vector.load %arg3[%c0_102, %c0_103] : memref<20x512xf32, #tpu.memory_space<vmem>>, vector<20x512xf32>
    %cst_104 = arith.constant dense<0.000000e+00> : vector<2x512xf32>
    %334 = tpu.matmul %332, %333, %cst_104 {dimension_numbers = #tpu.dot_dimension_numbers<[1], [0], [0], [1], [0, 0, 1, 1], [], []>} : vector<2x20xf32>, vector<20x512xf32>, vector<2x512xf32> -> vector<2x512xf32>
    %335 = arith.addf %331, %334 : vector<2x512xf32>
    %336 = vector.extract_strided_slice %335 {offsets = [0, 0], sizes = [2, 128], strides = [1, 1]} : vector<2x512xf32> to vector<2x128xf32>
    %337 = arith.negf %336 : vector<2x128xf32>
    %338 = math.exp %337 : vector<2x128xf32>
    %cst_105 = arith.constant 1.000000e+00 : f32
    %339 = vector.broadcast %cst_105 : f32 to vector<2x128xf32>
    %340 = arith.addf %339, %338 : vector<2x128xf32>
    %341 = arith.divf %339, %340 : vector<2x128xf32>
    %342 = vector.extract_strided_slice %335 {offsets = [0, 128], sizes = [2, 128], strides = [1, 1]} : vector<2x512xf32> to vector<2x128xf32>
    %343 = arith.negf %342 : vector<2x128xf32>
    %344 = math.exp %343 : vector<2x128xf32>
    %cst_106 = arith.constant 1.000000e+00 : f32
    %345 = vector.broadcast %cst_106 : f32 to vector<2x128xf32>
    %346 = arith.addf %345, %344 : vector<2x128xf32>
    %347 = arith.divf %345, %346 : vector<2x128xf32>
    %348 = vector.extract_strided_slice %335 {offsets = [0, 256], sizes = [2, 128], strides = [1, 1]} : vector<2x512xf32> to vector<2x128xf32>
    %349 = math.tanh %348 : vector<2x128xf32>
    %350 = vector.extract_strided_slice %335 {offsets = [0, 384], sizes = [2, 128], strides = [1, 1]} : vector<2x512xf32> to vector<2x128xf32>
    %351 = arith.negf %350 : vector<2x128xf32>
    %352 = math.exp %351 : vector<2x128xf32>
    %cst_107 = arith.constant 1.000000e+00 : f32
    %353 = vector.broadcast %cst_107 : f32 to vector<2x128xf32>
    %354 = arith.addf %353, %352 : vector<2x128xf32>
    %355 = arith.divf %353, %354 : vector<2x128xf32>
    %356 = arith.mulf %347, %294 : vector<2x128xf32>
    %357 = arith.mulf %341, %349 : vector<2x128xf32>
    %358 = arith.addf %356, %357 : vector<2x128xf32>
    %359 = math.tanh %358 : vector<2x128xf32>
    %360 = arith.mulf %355, %359 : vector<2x128xf32>
    %361 = vector.extract_strided_slice %360 {offsets = [0, 0], sizes = [2, 20], strides = [1, 1]} : vector<2x128xf32> to vector<2x20xf32>
    %c0_108 = arith.constant 0 : index
    %c0_109 = arith.constant 0 : index
    %362 = vector.load %arg4[%c0_108, %c0_109] : memref<20x512xf32, #tpu.memory_space<vmem>>, vector<20x512xf32>
    %cst_110 = arith.constant dense<0.000000e+00> : vector<2x512xf32>
    %363 = tpu.matmul %361, %362, %cst_110 {dimension_numbers = #tpu.dot_dimension_numbers<[1], [0], [0], [1], [0, 0, 1, 1], [], []>} : vector<2x20xf32>, vector<20x512xf32>, vector<2x512xf32> -> vector<2x512xf32>
    %364 = vector.extract_strided_slice %329 {offsets = [0, 0], sizes = [2, 20], strides = [1, 1]} : vector<2x128xf32> to vector<2x20xf32>
    %c0_111 = arith.constant 0 : index
    %c0_112 = arith.constant 0 : index
    %365 = vector.load %arg5[%c0_111, %c0_112] : memref<20x512xf32, #tpu.memory_space<vmem>>, vector<20x512xf32>
    %cst_113 = arith.constant dense<0.000000e+00> : vector<2x512xf32>
    %366 = tpu.matmul %364, %365, %cst_113 {dimension_numbers = #tpu.dot_dimension_numbers<[1], [0], [0], [1], [0, 0, 1, 1], [], []>} : vector<2x20xf32>, vector<20x512xf32>, vector<2x512xf32> -> vector<2x512xf32>
    %367 = arith.addf %363, %366 : vector<2x512xf32>
    %368 = arith.addf %367, %9 : vector<2x512xf32>
    %369 = vector.extract_strided_slice %368 {offsets = [0, 0], sizes = [2, 128], strides = [1, 1]} : vector<2x512xf32> to vector<2x128xf32>
    %370 = arith.negf %369 : vector<2x128xf32>
    %371 = math.exp %370 : vector<2x128xf32>
    %cst_114 = arith.constant 1.000000e+00 : f32
    %372 = vector.broadcast %cst_114 : f32 to vector<2x128xf32>
    %373 = arith.addf %372, %371 : vector<2x128xf32>
    %374 = arith.divf %372, %373 : vector<2x128xf32>
    %375 = vector.extract_strided_slice %368 {offsets = [0, 128], sizes = [2, 128], strides = [1, 1]} : vector<2x512xf32> to vector<2x128xf32>
    %376 = arith.negf %375 : vector<2x128xf32>
    %377 = math.exp %376 : vector<2x128xf32>
    %cst_115 = arith.constant 1.000000e+00 : f32
    %378 = vector.broadcast %cst_115 : f32 to vector<2x128xf32>
    %379 = arith.addf %378, %377 : vector<2x128xf32>
    %380 = arith.divf %378, %379 : vector<2x128xf32>
    %381 = vector.extract_strided_slice %368 {offsets = [0, 256], sizes = [2, 128], strides = [1, 1]} : vector<2x512xf32> to vector<2x128xf32>
    %382 = math.tanh %381 : vector<2x128xf32>
    %383 = vector.extract_strided_slice %368 {offsets = [0, 384], sizes = [2, 128], strides = [1, 1]} : vector<2x512xf32> to vector<2x128xf32>
    %384 = arith.negf %383 : vector<2x128xf32>
    %385 = math.exp %384 : vector<2x128xf32>
    %cst_116 = arith.constant 1.000000e+00 : f32
    %386 = vector.broadcast %cst_116 : f32 to vector<2x128xf32>
    %387 = arith.addf %386, %385 : vector<2x128xf32>
    %388 = arith.divf %386, %387 : vector<2x128xf32>
    %389 = arith.mulf %380, %327 : vector<2x128xf32>
    %390 = arith.mulf %374, %382 : vector<2x128xf32>
    %391 = arith.addf %389, %390 : vector<2x128xf32>
    %392 = math.tanh %391 : vector<2x128xf32>
    %393 = arith.mulf %388, %392 : vector<2x128xf32>
    %c10_117 = arith.constant 10 : index
    %c0_118 = arith.constant 0 : index
    %394 = vector.load %arg11[%c10_117, %c0_118] : memref<16x128xf32, #tpu.memory_space<vmem>>, vector<2x128xf32>
    tpu.vector_store %arg11[%c10_117, %c0_118], %393 {strides = array<i32>} : memref<16x128xf32, #tpu.memory_space<vmem>>, vector<2x128xf32>,
    %c12 = arith.constant 12 : index
    %c0_119 = arith.constant 0 : index
    %395 = vector.load %arg10[%c12, %c0_119] : memref<16x512xf32, #tpu.memory_space<vmem>>, vector<2x512xf32>
    %396 = vector.extract_strided_slice %360 {offsets = [0, 0], sizes = [2, 20], strides = [1, 1]} : vector<2x128xf32> to vector<2x20xf32>
    %c0_120 = arith.constant 0 : index
    %c0_121 = arith.constant 0 : index
    %397 = vector.load %arg3[%c0_120, %c0_121] : memref<20x512xf32, #tpu.memory_space<vmem>>, vector<20x512xf32>
    %cst_122 = arith.constant dense<0.000000e+00> : vector<2x512xf32>
    %398 = tpu.matmul %396, %397, %cst_122 {dimension_numbers = #tpu.dot_dimension_numbers<[1], [0], [0], [1], [0, 0, 1, 1], [], []>} : vector<2x20xf32>, vector<20x512xf32>, vector<2x512xf32> -> vector<2x512xf32>
    %399 = arith.addf %395, %398 : vector<2x512xf32>
    %400 = vector.extract_strided_slice %399 {offsets = [0, 0], sizes = [2, 128], strides = [1, 1]} : vector<2x512xf32> to vector<2x128xf32>
    %401 = arith.negf %400 : vector<2x128xf32>
    %402 = math.exp %401 : vector<2x128xf32>
    %cst_123 = arith.constant 1.000000e+00 : f32
    %403 = vector.broadcast %cst_123 : f32 to vector<2x128xf32>
    %404 = arith.addf %403, %402 : vector<2x128xf32>
    %405 = arith.divf %403, %404 : vector<2x128xf32>
    %406 = vector.extract_strided_slice %399 {offsets = [0, 128], sizes = [2, 128], strides = [1, 1]} : vector<2x512xf32> to vector<2x128xf32>
    %407 = arith.negf %406 : vector<2x128xf32>
    %408 = math.exp %407 : vector<2x128xf32>
    %cst_124 = arith.constant 1.000000e+00 : f32
    %409 = vector.broadcast %cst_124 : f32 to vector<2x128xf32>
    %410 = arith.addf %409, %408 : vector<2x128xf32>
    %411 = arith.divf %409, %410 : vector<2x128xf32>
    %412 = vector.extract_strided_slice %399 {offsets = [0, 256], sizes = [2, 128], strides = [1, 1]} : vector<2x512xf32> to vector<2x128xf32>
    %413 = math.tanh %412 : vector<2x128xf32>
    %414 = vector.extract_strided_slice %399 {offsets = [0, 384], sizes = [2, 128], strides = [1, 1]} : vector<2x512xf32> to vector<2x128xf32>
    %415 = arith.negf %414 : vector<2x128xf32>
    %416 = math.exp %415 : vector<2x128xf32>
    %cst_125 = arith.constant 1.000000e+00 : f32
    %417 = vector.broadcast %cst_125 : f32 to vector<2x128xf32>
    %418 = arith.addf %417, %416 : vector<2x128xf32>
    %419 = arith.divf %417, %418 : vector<2x128xf32>
    %420 = arith.mulf %411, %358 : vector<2x128xf32>
    %421 = arith.mulf %405, %413 : vector<2x128xf32>
    %422 = arith.addf %420, %421 : vector<2x128xf32>
    %423 = math.tanh %422 : vector<2x128xf32>
    %424 = arith.mulf %419, %423 : vector<2x128xf32>
    %425 = vector.extract_strided_slice %424 {offsets = [0, 0], sizes = [2, 20], strides = [1, 1]} : vector<2x128xf32> to vector<2x20xf32>
    %c0_126 = arith.constant 0 : index
    %c0_127 = arith.constant 0 : index
    %426 = vector.load %arg4[%c0_126, %c0_127] : memref<20x512xf32, #tpu.memory_space<vmem>>, vector<20x512xf32>
    %cst_128 = arith.constant dense<0.000000e+00> : vector<2x512xf32>
    %427 = tpu.matmul %425, %426, %cst_128 {dimension_numbers = #tpu.dot_dimension_numbers<[1], [0], [0], [1], [0, 0, 1, 1], [], []>} : vector<2x20xf32>, vector<20x512xf32>, vector<2x512xf32> -> vector<2x512xf32>
    %428 = vector.extract_strided_slice %393 {offsets = [0, 0], sizes = [2, 20], strides = [1, 1]} : vector<2x128xf32> to vector<2x20xf32>
    %c0_129 = arith.constant 0 : index
    %c0_130 = arith.constant 0 : index
    %429 = vector.load %arg5[%c0_129, %c0_130] : memref<20x512xf32, #tpu.memory_space<vmem>>, vector<20x512xf32>
    %cst_131 = arith.constant dense<0.000000e+00> : vector<2x512xf32>
    %430 = tpu.matmul %428, %429, %cst_131 {dimension_numbers = #tpu.dot_dimension_numbers<[1], [0], [0], [1], [0, 0, 1, 1], [], []>} : vector<2x20xf32>, vector<20x512xf32>, vector<2x512xf32> -> vector<2x512xf32>
    %431 = arith.addf %427, %430 : vector<2x512xf32>
    %432 = arith.addf %431, %9 : vector<2x512xf32>
    %433 = vector.extract_strided_slice %432 {offsets = [0, 0], sizes = [2, 128], strides = [1, 1]} : vector<2x512xf32> to vector<2x128xf32>
    %434 = arith.negf %433 : vector<2x128xf32>
    %435 = math.exp %434 : vector<2x128xf32>
    %cst_132 = arith.constant 1.000000e+00 : f32
    %436 = vector.broadcast %cst_132 : f32 to vector<2x128xf32>
    %437 = arith.addf %436, %435 : vector<2x128xf32>
    %438 = arith.divf %436, %437 : vector<2x128xf32>
    %439 = vector.extract_strided_slice %432 {offsets = [0, 128], sizes = [2, 128], strides = [1, 1]} : vector<2x512xf32> to vector<2x128xf32>
    %440 = arith.negf %439 : vector<2x128xf32>
    %441 = math.exp %440 : vector<2x128xf32>
    %cst_133 = arith.constant 1.000000e+00 : f32
    %442 = vector.broadcast %cst_133 : f32 to vector<2x128xf32>
    %443 = arith.addf %442, %441 : vector<2x128xf32>
    %444 = arith.divf %442, %443 : vector<2x128xf32>
    %445 = vector.extract_strided_slice %432 {offsets = [0, 256], sizes = [2, 128], strides = [1, 1]} : vector<2x512xf32> to vector<2x128xf32>
    %446 = math.tanh %445 : vector<2x128xf32>
    %447 = vector.extract_strided_slice %432 {offsets = [0, 384], sizes = [2, 128], strides = [1, 1]} : vector<2x512xf32> to vector<2x128xf32>
    %448 = arith.negf %447 : vector<2x128xf32>
    %449 = math.exp %448 : vector<2x128xf32>
    %cst_134 = arith.constant 1.000000e+00 : f32
    %450 = vector.broadcast %cst_134 : f32 to vector<2x128xf32>
    %451 = arith.addf %450, %449 : vector<2x128xf32>
    %452 = arith.divf %450, %451 : vector<2x128xf32>
    %453 = arith.mulf %444, %391 : vector<2x128xf32>
    %454 = arith.mulf %438, %446 : vector<2x128xf32>
    %455 = arith.addf %453, %454 : vector<2x128xf32>
    %456 = math.tanh %455 : vector<2x128xf32>
    %457 = arith.mulf %452, %456 : vector<2x128xf32>
    %c12_135 = arith.constant 12 : index
    %c0_136 = arith.constant 0 : index
    %458 = vector.load %arg11[%c12_135, %c0_136] : memref<16x128xf32, #tpu.memory_space<vmem>>, vector<2x128xf32>
    tpu.vector_store %arg11[%c12_135, %c0_136], %457 {strides = array<i32>} : memref<16x128xf32, #tpu.memory_space<vmem>>, vector<2x128xf32>,
    %c14 = arith.constant 14 : index
    %c0_137 = arith.constant 0 : index
    %459 = vector.load %arg10[%c14, %c0_137] : memref<16x512xf32, #tpu.memory_space<vmem>>, vector<2x512xf32>
    %460 = vector.extract_strided_slice %424 {offsets = [0, 0], sizes = [2, 20], strides = [1, 1]} : vector<2x128xf32> to vector<2x20xf32>
    %c0_138 = arith.constant 0 : index
    %c0_139 = arith.constant 0 : index
    %461 = vector.load %arg3[%c0_138, %c0_139] : memref<20x512xf32, #tpu.memory_space<vmem>>, vector<20x512xf32>
    %cst_140 = arith.constant dense<0.000000e+00> : vector<2x512xf32>
    %462 = tpu.matmul %460, %461, %cst_140 {dimension_numbers = #tpu.dot_dimension_numbers<[1], [0], [0], [1], [0, 0, 1, 1], [], []>} : vector<2x20xf32>, vector<20x512xf32>, vector<2x512xf32> -> vector<2x512xf32>
    %463 = arith.addf %459, %462 : vector<2x512xf32>
    %464 = vector.extract_strided_slice %463 {offsets = [0, 0], sizes = [2, 128], strides = [1, 1]} : vector<2x512xf32> to vector<2x128xf32>
    %465 = arith.negf %464 : vector<2x128xf32>
    %466 = math.exp %465 : vector<2x128xf32>
    %cst_141 = arith.constant 1.000000e+00 : f32
    %467 = vector.broadcast %cst_141 : f32 to vector<2x128xf32>
    %468 = arith.addf %467, %466 : vector<2x128xf32>
    %469 = arith.divf %467, %468 : vector<2x128xf32>
    %470 = vector.extract_strided_slice %463 {offsets = [0, 128], sizes = [2, 128], strides = [1, 1]} : vector<2x512xf32> to vector<2x128xf32>
    %471 = arith.negf %470 : vector<2x128xf32>
    %472 = math.exp %471 : vector<2x128xf32>
    %cst_142 = arith.constant 1.000000e+00 : f32
    %473 = vector.broadcast %cst_142 : f32 to vector<2x128xf32>
    %474 = arith.addf %473, %472 : vector<2x128xf32>
    %475 = arith.divf %473, %474 : vector<2x128xf32>
    %476 = vector.extract_strided_slice %463 {offsets = [0, 256], sizes = [2, 128], strides = [1, 1]} : vector<2x512xf32> to vector<2x128xf32>
    %477 = math.tanh %476 : vector<2x128xf32>
    %478 = vector.extract_strided_slice %463 {offsets = [0, 384], sizes = [2, 128], strides = [1, 1]} : vector<2x512xf32> to vector<2x128xf32>
    %479 = arith.negf %478 : vector<2x128xf32>
    %480 = math.exp %479 : vector<2x128xf32>
    %cst_143 = arith.constant 1.000000e+00 : f32
    %481 = vector.broadcast %cst_143 : f32 to vector<2x128xf32>
    %482 = arith.addf %481, %480 : vector<2x128xf32>
    %483 = arith.divf %481, %482 : vector<2x128xf32>
    %484 = arith.mulf %475, %422 : vector<2x128xf32>
    %485 = arith.mulf %469, %477 : vector<2x128xf32>
    %486 = arith.addf %484, %485 : vector<2x128xf32>
    %487 = math.tanh %486 : vector<2x128xf32>
    %488 = arith.mulf %483, %487 : vector<2x128xf32>
    %489 = vector.extract_strided_slice %488 {offsets = [0, 0], sizes = [2, 20], strides = [1, 1]} : vector<2x128xf32> to vector<2x20xf32>
    %c0_144 = arith.constant 0 : index
    %c0_145 = arith.constant 0 : index
    %490 = vector.load %arg4[%c0_144, %c0_145] : memref<20x512xf32, #tpu.memory_space<vmem>>, vector<20x512xf32>
    %cst_146 = arith.constant dense<0.000000e+00> : vector<2x512xf32>
    %491 = tpu.matmul %489, %490, %cst_146 {dimension_numbers = #tpu.dot_dimension_numbers<[1], [0], [0], [1], [0, 0, 1, 1], [], []>} : vector<2x20xf32>, vector<20x512xf32>, vector<2x512xf32> -> vector<2x512xf32>
    %492 = vector.extract_strided_slice %457 {offsets = [0, 0], sizes = [2, 20], strides = [1, 1]} : vector<2x128xf32> to vector<2x20xf32>
    %c0_147 = arith.constant 0 : index
    %c0_148 = arith.constant 0 : index
    %493 = vector.load %arg5[%c0_147, %c0_148] : memref<20x512xf32, #tpu.memory_space<vmem>>, vector<20x512xf32>
    %cst_149 = arith.constant dense<0.000000e+00> : vector<2x512xf32>
    %494 = tpu.matmul %492, %493, %cst_149 {dimension_numbers = #tpu.dot_dimension_numbers<[1], [0], [0], [1], [0, 0, 1, 1], [], []>} : vector<2x20xf32>, vector<20x512xf32>, vector<2x512xf32> -> vector<2x512xf32>
    %495 = arith.addf %491, %494 : vector<2x512xf32>
    %496 = arith.addf %495, %9 : vector<2x512xf32>
    %497 = vector.extract_strided_slice %496 {offsets = [0, 0], sizes = [2, 128], strides = [1, 1]} : vector<2x512xf32> to vector<2x128xf32>
    %498 = arith.negf %497 : vector<2x128xf32>
    %499 = math.exp %498 : vector<2x128xf32>
    %cst_150 = arith.constant 1.000000e+00 : f32
    %500 = vector.broadcast %cst_150 : f32 to vector<2x128xf32>
    %501 = arith.addf %500, %499 : vector<2x128xf32>
    %502 = arith.divf %500, %501 : vector<2x128xf32>
    %503 = vector.extract_strided_slice %496 {offsets = [0, 128], sizes = [2, 128], strides = [1, 1]} : vector<2x512xf32> to vector<2x128xf32>
    %504 = arith.negf %503 : vector<2x128xf32>
    %505 = math.exp %504 : vector<2x128xf32>
    %cst_151 = arith.constant 1.000000e+00 : f32
    %506 = vector.broadcast %cst_151 : f32 to vector<2x128xf32>
    %507 = arith.addf %506, %505 : vector<2x128xf32>
    %508 = arith.divf %506, %507 : vector<2x128xf32>
    %509 = vector.extract_strided_slice %496 {offsets = [0, 256], sizes = [2, 128], strides = [1, 1]} : vector<2x512xf32> to vector<2x128xf32>
    %510 = math.tanh %509 : vector<2x128xf32>
    %511 = vector.extract_strided_slice %496 {offsets = [0, 384], sizes = [2, 128], strides = [1, 1]} : vector<2x512xf32> to vector<2x128xf32>
    %512 = arith.negf %511 : vector<2x128xf32>
    %513 = math.exp %512 : vector<2x128xf32>
    %cst_152 = arith.constant 1.000000e+00 : f32
    %514 = vector.broadcast %cst_152 : f32 to vector<2x128xf32>
    %515 = arith.addf %514, %513 : vector<2x128xf32>
    %516 = arith.divf %514, %515 : vector<2x128xf32>
    %517 = arith.mulf %508, %455 : vector<2x128xf32>
    %518 = arith.mulf %502, %510 : vector<2x128xf32>
    %519 = arith.addf %517, %518 : vector<2x128xf32>
    %520 = math.tanh %519 : vector<2x128xf32>
    %521 = arith.mulf %516, %520 : vector<2x128xf32>
    %c14_153 = arith.constant 14 : index
    %c0_154 = arith.constant 0 : index
    %522 = vector.load %arg11[%c14_153, %c0_154] : memref<16x128xf32, #tpu.memory_space<vmem>>, vector<2x128xf32>
    tpu.vector_store %arg11[%c14_153, %c0_154], %521 {strides = array<i32>} : memref<16x128xf32, #tpu.memory_space<vmem>>, vector<2x128xf32>,
    %c0_155 = arith.constant 0 : index
    %c0_156 = arith.constant 0 : index
    %523 = vector.load %arg11[%c0_155, %c0_156] : memref<16x128xf32, #tpu.memory_space<vmem>>, vector<16x128xf32>
    %c0_157 = arith.constant 0 : index
    %c0_158 = arith.constant 0 : index
    %524 = vector.load %arg7[%c0_157, %c0_158] : memref<128x1xf32, #tpu.memory_space<vmem>>, vector<128x1xf32>
    %cst_159 = arith.constant dense<0.000000e+00> : vector<16x1xf32>
    %525 = tpu.matmul %523, %524, %cst_159 {dimension_numbers = #tpu.dot_dimension_numbers<[1], [0], [0], [1], [0, 0, 1, 1], [], []>} : vector<16x128xf32>, vector<128x1xf32>, vector<16x1xf32> -> vector<16x1xf32>
    %c0_160 = arith.constant 0 : index
    %c0_161 = arith.constant 0 : index
    %526 = vector.load %arg8[%c0_160, %c0_161] : memref<1x1xf32, #tpu.memory_space<vmem>>, vector<1x1xf32>
    %527 = vector.broadcast %526 : vector<1x1xf32> to vector<16x1xf32>
    %528 = arith.addf %525, %527 : vector<16x1xf32>
    %c0_162 = arith.constant 0 : index
    %c0_163 = arith.constant 0 : index
    %529 = vector.load %arg9[%c0_162, %c0_163] : memref<16x1xf32, #tpu.memory_space<vmem>>, vector<16x1xf32>
    tpu.vector_store %arg9[%c0_162, %c0_163], %528 {strides = array<i32>} : memref<16x1xf32, #tpu.memory_space<vmem>>, vector<16x1xf32>,
    return
  }
}

</mosaic_0001>

<llo_original>
// kernel: tpu_custom_call.1
$region0: #{tpu_custom_call.1}
  #allocation0 [shape = 'u32[]', space=smem, size = 0x4, offset = 0x4, fixed_abs, tag = 'smem constant byte address 0x4 - core index']
  #allocation1 [shape = 'u32[144,128]{1,0:T(1,128)}', space=vmem, size = 0x12000, scoped, tag = 'internal scratch']
  #allocation2 [shape = 'f32[16,512]{1,0:T(8,128)}', space=vmem, size = 0x8000, scoped, tag = 'scratch operand']
  #allocation3 [shape = 'f32[16,128]{1,0:T(8,128)}', space=vmem, size = 0x2000, scoped, tag = 'scratch operand']
  #allocation4 [shape = 'f32[1,1]{1,0:T(1,128)S(1)}', space=vmem, size = 0x200, scoped, tag = 'scoped memory for tpu_custom_call.1']
  %s0 = inlined_call_operand.vmem [shape: f32[16,10], index: 0, kind: input, shape index: {}]
  %s1 = inlined_call_operand.hbm [shape: f32[10,512], index: 1, kind: input, shape index: {}]
  %s2 = inlined_call_operand.vmem [shape: f32[1,512], index: 2, kind: input, shape index: {}]
  %s3 = inlined_call_operand.vmem [shape: f32[20,512], index: 3, kind: input, shape index: {}]
  %s4 = inlined_call_operand.hbm [shape: f32[20,512], index: 4, kind: input, shape index: {}]
  %s5 = inlined_call_operand.hbm [shape: f32[20,512], index: 5, kind: input, shape index: {}]
  %s6 = inlined_call_operand.vmem [shape: f32[1,512], index: 6, kind: input, shape index: {}]
  %s7 = inlined_call_operand.vmem [shape: f32[128,1], index: 7, kind: input, shape index: {}]
  %s8 = inlined_call_operand.<no memory space> [shape: f32[1,1], index: 8, kind: input, shape index: {}]
  %s9 = inlined_call_operand.vmem [shape: f32[16,1], index: 9, kind: output, shape index: {}]
  %s10 = sld [smem:[#allocation0]]
  $region58: #{tpu_custom_call.1} parent=0
    _
  %s12 = ssub.s32 1, %s10
  %s13 = scalar_select 0, %s12, %s10
  %v14 = vstv %s8
  %15 = vst [vmem:[#allocation4] sm:$0x1] %v14
  $region1: #{tpu_custom_call.1} parent=0
    #allocation5 [shape = 'u8[32768]{0}', space=vmem, size = 0x8000, scoped, tag = 'input window, operand 1, single buffered']
    #allocation6 [shape = 's32[1]{0}', space=sflag, size = 0x4, scoped, tag = 'scoped memory for tpu_custom_call.1']
    #allocation7 [shape = 'u8[49152]{0}', space=vmem, size = 0xc000, scoped, tag = 'input window, operand 4, single buffered']
    #allocation8 [shape = 's32[1]{0}', space=sflag, size = 0x4, scoped, tag = 'scoped memory for tpu_custom_call.1']
    #allocation9 [shape = 'u8[49152]{0}', space=vmem, size = 0xc000, scoped, tag = 'input window, operand 5, single buffered']
    %16 = vsyncpa [#allocation6], 0
    %17 = vsyncpa [#allocation8], 0
    // Predicated region
    $region2: #{tpu_custom_call.1} parent=1 // pred_check
      _
    $region3: #{tpu_custom_call.1} parent=1 // pred_check_branch
      %19 = sbr.rel (0) target = $region5
    $region4: #{tpu_custom_call.1} parent=1 // pred_region
      _
    $region5: #{tpu_custom_call.1} parent=1 // pred_fallthru
      _
    // Predicated region
    $region6: #{tpu_custom_call.1} parent=1 // pred_check
      _
    $region7: #{tpu_custom_call.1} parent=1 // pred_check_branch
      %21 = sbr.rel (0) target = $region9
    $region8: #{tpu_custom_call.1} parent=1 // pred_region
      %s23 = ssub.s32 1024, 1024
      %24 = vsyncadd [#allocation6], %s23
      %s25 = sshll.u32 [#allocation5], 4
      %s26 = int_to_ptr.vmem [resolvable:$true] %s25
      %31 = dma.hbm_to_vmem [thread:$0]  %s1, 1024, %s26, [#allocation6], 512, 512, 32
    $region9: #{tpu_custom_call.1} parent=1 // pred_fallthru
      _
    // Predicated region
    $region10: #{tpu_custom_call.1} parent=1 // pred_check
      _
    $region11: #{tpu_custom_call.1} parent=1 // pred_check_branch
      %33 = sbr.rel (0) target = $region13
    $region12: #{tpu_custom_call.1} parent=1 // pred_region
      _
    $region13: #{tpu_custom_call.1} parent=1 // pred_fallthru
      _
    // Predicated region
    $region14: #{tpu_custom_call.1} parent=1 // pred_check
      _
    $region15: #{tpu_custom_call.1} parent=1 // pred_check_branch
      %35 = sbr.rel (0) target = $region17
    $region16: #{tpu_custom_call.1} parent=1 // pred_region
      _
    $region17: #{tpu_custom_call.1} parent=1 // pred_fallthru
      _
    // Predicated region
    $region18: #{tpu_custom_call.1} parent=1 // pred_check
      _
    $region19: #{tpu_custom_call.1} parent=1 // pred_check_branch
      %37 = sbr.rel (0) target = $region21
    $region20: #{tpu_custom_call.1} parent=1 // pred_region
      %s39 = ssub.s32 1536, 1536
      %40 = vsyncadd [#allocation8], %s39
      %s41 = sshll.u32 [#allocation7], 4
      %s42 = int_to_ptr.vmem [resolvable:$true] %s41
      %47 = dma.hbm_to_vmem [thread:$0]  %s4, 1536, %s42, [#allocation8], 512, 512, 32
    $region21: #{tpu_custom_call.1} parent=1 // pred_fallthru
      _
    // Predicated region
    $region22: #{tpu_custom_call.1} parent=1 // pred_check
      _
    $region23: #{tpu_custom_call.1} parent=1 // pred_check_branch
      %49 = sbr.rel (0) target = $region25
    $region24: #{tpu_custom_call.1} parent=1 // pred_region
      %s51 = ssub.s32 1536, 1536
      %52 = vsyncadd [#allocation8], %s51
      %s53 = sshll.u32 [#allocation9], 4
      %s54 = int_to_ptr.vmem [resolvable:$true] %s53
      %59 = dma.hbm_to_vmem [thread:$0]  %s5, 1536, %s54, [#allocation8], 512, 512, 32
    $region25: #{tpu_custom_call.1} parent=1 // pred_fallthru
      _
    // Predicated region
    $region26: #{tpu_custom_call.1} parent=1 // pred_check
      _
    $region27: #{tpu_custom_call.1} parent=1 // pred_check_branch
      %61 = sbr.rel (0) target = $region29
    $region28: #{tpu_custom_call.1} parent=1 // pred_region
      _
    $region29: #{tpu_custom_call.1} parent=1 // pred_fallthru
      _
    // Predicated region
    $region30: #{tpu_custom_call.1} parent=1 // pred_check
      _
    $region31: #{tpu_custom_call.1} parent=1 // pred_check_branch
      %63 = sbr.rel (0) target = $region33
    $region32: #{tpu_custom_call.1} parent=1 // pred_region
      _
    $region33: #{tpu_custom_call.1} parent=1 // pred_fallthru
      _
    // Predicated region
    $region34: #{tpu_custom_call.1} parent=1 // pred_check
      _
    $region35: #{tpu_custom_call.1} parent=1 // pred_check_branch
      %65 = sbr.rel (0) target = $region37
    $region36: #{tpu_custom_call.1} parent=1 // pred_region
      _
    $region37: #{tpu_custom_call.1} parent=1 // pred_fallthru
      _
    // Predicated region
    $region38: #{tpu_custom_call.1} parent=1 // pred_check
      _
    $region39: #{tpu_custom_call.1} parent=1 // pred_check_branch
      %67 = sbr.rel (0) target = $region41
    $region40: #{tpu_custom_call.1} parent=1 // pred_region
      %68 = dma.done [#allocation6], 1024
    $region41: #{tpu_custom_call.1} parent=1 // pred_fallthru
      _
    // Predicated region
    $region42: #{tpu_custom_call.1} parent=1 // pred_check
      _
    $region43: #{tpu_custom_call.1} parent=1 // pred_check_branch
      %70 = sbr.rel (0) target = $region45
    $region44: #{tpu_custom_call.1} parent=1 // pred_region
      %71 = dma.done [#allocation8], 1536
    $region45: #{tpu_custom_call.1} parent=1 // pred_fallthru
      _
    // Predicated region
    $region46: #{tpu_custom_call.1} parent=1 // pred_check
      _
    $region47: #{tpu_custom_call.1} parent=1 // pred_check_branch
      %73 = sbr.rel (0) target = $region49
    $region48: #{tpu_custom_call.1} parent=1 // pred_region
      %74 = dma.done [#allocation8], 1536
    $region49: #{tpu_custom_call.1} parent=1 // pred_fallthru
      _
    %v75 = vld [vmem:[%s0] sm:$0xff]
    %v76 = vld [vmem:[%s0 + $0x8] sm:$0xff]
    %v77 = vld [vmem:[#allocation5] sm:$0xff]
    %v78 = vld [vmem:[#allocation5 + $0x8] sm:$0xff]
    %v79 = vld [vmem:[#allocation5 + $0x10] sm:$0xff]
    %v80 = vld [vmem:[#allocation5 + $0x18] sm:$0xff]
    %v81 = vld [vmem:[#allocation5 + $0x20] sm:$0x3]
    %v82 = vld [vmem:[#allocation5 + $0x28] sm:$0x3]
    %v83 = vld [vmem:[#allocation5 + $0x30] sm:$0x3]
    %v84 = vld [vmem:[#allocation5 + $0x38] sm:$0x3]
    %v85 = vld [vmem:[%s2] sm:$0xf]
    %v87 = vlaneseq
    %v88 = vshrl.u32 %v87, 7
    %v89 = vsub.s32 0, %v88
    %v90 = vrot.slane %v85, %v89
    %v91 = vlaneseq
    %v92 = vshrl.u32 %v91, 7
    %v93 = vsub.s32 1, %v92
    %v94 = vrot.slane %v85, %v93
    %v95 = vlaneseq
    %v96 = vshrl.u32 %v95, 7
    %v97 = vsub.s32 2, %v96
    %v98 = vrot.slane %v85, %v97
    %v99 = vlaneseq
    %v100 = vshrl.u32 %v99, 7
    %v101 = vsub.s32 3, %v100
    %v102 = vrot.slane %v85, %v101
    %vm107 = vcmask 80896
    %v109 = vsel %vm107, %v75, 0
    %v112 = vsel %vm107, %v76, 0
    %vm114 = vcmask 1041408
    %v116 = vsel %vm114, %v81, 0
    %v119 = vsel %vm114, %v82, 0
    %v122 = vsel %vm114, %v83, 0
    %v125 = vsel %vm114, %v84, 0
    %127 = vmatprep.subr.mxu0 0.0
    %128 = vmatpush1.msra.mxu0 0.0
    %129 = vmatprep.subr.mxu0 0.0
    %130 = vmatpush1.msra.mxu0 0.0
    %131 = vmatprep.subr.mxu0 0.0
    %132 = vmatpush1.msra.mxu0 0.0
    %133 = vmatprep.subr.mxu0 0.0
    %134 = vmatpush1.msra.mxu0 0.0
    %135 = vmatprep.subr.mxu0 0.0
    %136 = vmatpush1.msra.mxu0 0.0
    %137 = vmatprep.subr.mxu0 0.0
    %138 = vmatpush1.msra.mxu0 0.0
    %139 = vmatprep.subr.mxu0 0.0
    %140 = vmatpush1.msra.mxu0 0.0
    %141 = vmatprep.subr.mxu0 0.0
    %142 = vmatpush1.msra.mxu0 0.0
    %143 = vmatprep.subr.mxu0 0.0
    %144 = vmatpush1.msra.mxu0 0.0
    %145 = vmatprep.subr.mxu0 0.0
    %146 = vmatpush1.msra.mxu0 0.0
    %147 = vmatprep.subr.mxu0 0.0
    %148 = vmatpush1.msra.mxu0 0.0
    %149 = vmatprep.subr.mxu0 0.0
    %150 = vmatpush1.msra.mxu0 0.0
    %151 = vmatprep.subr.mxu0 0.0
    %152 = vmatpush1.msra.mxu0 0.0
    %153 = vmatprep.subr.mxu0 0.0
    %154 = vmatpush1.msra.mxu0 0.0
    %155 = vmatprep.subr.mxu0 %v119
    %156 = vmatpush1.msra.mxu0 %v116
    %157 = vmatprep.subr.mxu0 %v78
    %158 = vmatpush1.msra.mxu0 %v77
    %159 = vmatprep.subr.mxu0 0.0
    %160 = vmatpush2.msra.mxu0 0.0
    %161 = vmatprep.subr.mxu0 0.0
    %162 = vmatpush2.msra.mxu0 0.0
    %163 = vmatprep.subr.mxu0 0.0
    %164 = vmatpush2.msra.mxu0 0.0
    %165 = vmatprep.subr.mxu0 0.0
    %166 = vmatpush2.msra.mxu0 0.0
    %167 = vmatprep.subr.mxu0 0.0
    %168 = vmatpush2.msra.mxu0 0.0
    %169 = vmatprep.subr.mxu0 0.0
    %170 = vmatpush2.msra.mxu0 0.0
    %171 = vmatprep.subr.mxu0 0.0
    %172 = vmatpush2.msra.mxu0 0.0
    %173 = vmatprep.subr.mxu0 0.0
    %174 = vmatpush2.msra.mxu0 0.0
    %175 = vmatprep.subr.mxu0 0.0
    %176 = vmatpush2.msra.mxu0 0.0
    %177 = vmatprep.subr.mxu0 0.0
    %178 = vmatpush2.msra.mxu0 0.0
    %179 = vmatprep.subr.mxu0 0.0
    %180 = vmatpush2.msra.mxu0 0.0
    %181 = vmatprep.subr.mxu0 0.0
    %182 = vmatpush2.msra.mxu0 0.0
    %183 = vmatprep.subr.mxu0 0.0
    %184 = vmatpush2.msra.mxu0 0.0
    %185 = vmatprep.subr.mxu0 0.0
    %186 = vmatpush2.msra.mxu0 0.0
    %187 = vmatprep.subr.mxu0 0.0
    %188 = vmatpush2.msra.mxu0 0.0
    %189 = vmatprep.subr.mxu0 0.0
    %190 = vmatpush2.msra.mxu0 0.0
    %191 = vmatprep.mubr.f32.mxu0 0.0
    %192 = vmatmul.mubr.f32.gmra.mxu0 %v109
    %v193 = vpop.f32.mrf.mxu0
    %v194 = vadd.f32 %v90, %v193
    %v195 = vpop.f32.mrf.mxu0
    %v196 = vadd.f32 %v94, %v195
    %197 = vmatprep.mubr.f32.mxu0 0.0
    %198 = vmatmul.mubr.f32.gmra.mxu0 %v112
    %v199 = vpop.f32.mrf.mxu0
    %v200 = vadd.f32 %v90, %v199
    %v201 = vpop.f32.mrf.mxu0
    %v202 = vadd.f32 %v94, %v201
    %203 = vdwg.mxu0
    %204 = vmatprep.subr.mxu0 0.0
    %205 = vmatpush1.msra.mxu0 0.0
    %206 = vmatprep.subr.mxu0 0.0
    %207 = vmatpush1.msra.mxu0 0.0
    %208 = vmatprep.subr.mxu0 0.0
    %209 = vmatpush1.msra.mxu0 0.0
    %210 = vmatprep.subr.mxu0 0.0
    %211 = vmatpush1.msra.mxu0 0.0
    %212 = vmatprep.subr.mxu0 0.0
    %213 = vmatpush1.msra.mxu0 0.0
    %214 = vmatprep.subr.mxu0 0.0
    %215 = vmatpush1.msra.mxu0 0.0
    %216 = vmatprep.subr.mxu0 0.0
    %217 = vmatpush1.msra.mxu0 0.0
    %218 = vmatprep.subr.mxu0 0.0
    %219 = vmatpush1.msra.mxu0 0.0
    %220 = vmatprep.subr.mxu0 0.0
    %221 = vmatpush1.msra.mxu0 0.0
    %222 = vmatprep.subr.mxu0 0.0
    %223 = vmatpush1.msra.mxu0 0.0
    %224 = vmatprep.subr.mxu0 0.0
    %225 = vmatpush1.msra.mxu0 0.0
    %226 = vmatprep.subr.mxu0 0.0
    %227 = vmatpush1.msra.mxu0 0.0
    %228 = vmatprep.subr.mxu0 0.0
    %229 = vmatpush1.msra.mxu0 0.0
    %230 = vmatprep.subr.mxu0 0.0
    %231 = vmatpush1.msra.mxu0 0.0
    %232 = vmatprep.subr.mxu0 %v125
    %233 = vmatpush1.msra.mxu0 %v122
    %234 = vmatprep.subr.mxu0 %v80
    %235 = vmatpush1.msra.mxu0 %v79
    %236 = vmatprep.subr.mxu0 0.0
    %237 = vmatpush2.msra.mxu0 0.0
    %238 = vmatprep.subr.mxu0 0.0
    %239 = vmatpush2.msra.mxu0 0.0
    %240 = vmatprep.subr.mxu0 0.0
    %241 = vmatpush2.msra.mxu0 0.0
    %242 = vmatprep.subr.mxu0 0.0
    %243 = vmatpush2.msra.mxu0 0.0
    %244 = vmatprep.subr.mxu0 0.0
    %245 = vmatpush2.msra.mxu0 0.0
    %246 = vmatprep.subr.mxu0 0.0
    %247 = vmatpush2.msra.mxu0 0.0
    %248 = vmatprep.subr.mxu0 0.0
    %249 = vmatpush2.msra.mxu0 0.0
    %250 = vmatprep.subr.mxu0 0.0
    %251 = vmatpush2.msra.mxu0 0.0
    %252 = vmatprep.subr.mxu0 0.0
    %253 = vmatpush2.msra.mxu0 0.0
    %254 = vmatprep.subr.mxu0 0.0
    %255 = vmatpush2.msra.mxu0 0.0
    %256 = vmatprep.subr.mxu0 0.0
    %257 = vmatpush2.msra.mxu0 0.0
    %258 = vmatprep.subr.mxu0 0.0
    %259 = vmatpush2.msra.mxu0 0.0
    %260 = vmatprep.subr.mxu0 0.0
    %261 = vmatpush2.msra.mxu0 0.0
    %262 = vmatprep.subr.mxu0 0.0
    %263 = vmatpush2.msra.mxu0 0.0
    %264 = vmatprep.subr.mxu0 0.0
    %265 = vmatpush2.msra.mxu0 0.0
    %266 = vmatprep.subr.mxu0 0.0
    %267 = vmatpush2.msra.mxu0 0.0
    %268 = vmatprep.mubr.f32.mxu0 0.0
    %269 = vmatmul.mubr.f32.gmra.mxu0 %v109
    %v270 = vpop.f32.mrf.mxu0
    %v271 = vadd.f32 %v98, %v270
    %v272 = vpop.f32.mrf.mxu0
    %v273 = vadd.f32 %v102, %v272
    %274 = vmatprep.mubr.f32.mxu0 0.0
    %275 = vmatmul.mubr.f32.gmra.mxu0 %v112
    %v276 = vpop.f32.mrf.mxu0
    %v277 = vadd.f32 %v98, %v276
    %v278 = vpop.f32.mrf.mxu0
    %v279 = vadd.f32 %v102, %v278
    %280 = vdwg.mxu0
    %281 = vst [vmem:[#allocation2] sm:$0xff] %v194
    %282 = vst [vmem:[#allocation2 + $0x8] sm:$0xff] %v196
    %283 = vst [vmem:[#allocation2 + $0x10] sm:$0xff] %v271
    %284 = vst [vmem:[#allocation2 + $0x18] sm:$0xff] %v273
    %285 = vst [vmem:[#allocation2 + $0x20] sm:$0xff] %v200
    %286 = vst [vmem:[#allocation2 + $0x28] sm:$0xff] %v202
    %287 = vst [vmem:[#allocation2 + $0x30] sm:$0xff] %v277
    %288 = vst [vmem:[#allocation2 + $0x38] sm:$0xff] %v279
    %v289 = vld [vmem:[%s6] sm:$0xf]
    %v291 = vlaneseq
    %v292 = vshrl.u32 %v291, 7
    %v293 = vsub.s32 0, %v292
    %v294 = vrot.slane %v289, %v293
    %v295 = vlaneseq
    %v296 = vshrl.u32 %v295, 7
    %v297 = vsub.s32 1, %v296
    %v298 = vrot.slane %v289, %v297
    %v299 = vlaneseq
    %v300 = vshrl.u32 %v299, 7
    %v301 = vsub.s32 2, %v300
    %v302 = vrot.slane %v289, %v301
    %v303 = vlaneseq
    %v304 = vshrl.u32 %v303, 7
    %v305 = vsub.s32 3, %v304
    %v306 = vrot.slane %v289, %v305
    %v311 = vld [vmem:[#allocation2] sm:$0x3]
    %v312 = vld [vmem:[#allocation2 + $0x8] sm:$0x3]
    %v313 = vld [vmem:[#allocation2 + $0x10] sm:$0x3]
    %v314 = vld [vmem:[#allocation2 + $0x18] sm:$0x3]
    %v315 = vld [vmem:[%s3] sm:$0xff]
    %v316 = vld [vmem:[%s3 + $0x8] sm:$0xff]
    %v317 = vld [vmem:[%s3 + $0x10] sm:$0xff]
    %v318 = vld [vmem:[%s3 + $0x18] sm:$0xff]
    %v319 = vld [vmem:[%s3 + $0x20] sm:$0xff]
    %v320 = vld [vmem:[%s3 + $0x28] sm:$0xff]
    %v321 = vld [vmem:[%s3 + $0x30] sm:$0xff]
    %v322 = vld [vmem:[%s3 + $0x38] sm:$0xff]
    %v323 = vld [vmem:[%s3 + $0x40] sm:$0xf]
    %v324 = vld [vmem:[%s3 + $0x48] sm:$0xf]
    %v325 = vld [vmem:[%s3 + $0x50] sm:$0xf]
    %v326 = vld [vmem:[%s3 + $0x58] sm:$0xf]
    %vm327 = vcmask 162816
    %v329 = vsel %vm327, 0.0, 0
    %vm331 = vcmask 1043456
    %v333 = vsel %vm331, %v323, 0
    %v336 = vsel %vm331, %v324, 0
    %v339 = vsel %vm331, %v325, 0
    %v342 = vsel %vm331, %v326, 0
    %344 = vmatprep.subr.mxu0 0.0
    %345 = vmatpush1.msra.mxu0 0.0
    %346 = vmatprep.subr.mxu0 0.0
    %347 = vmatpush1.msra.mxu0 0.0
    %348 = vmatprep.subr.mxu0 0.0
    %349 = vmatpush1.msra.mxu0 0.0
    %350 = vmatprep.subr.mxu0 0.0
    %351 = vmatpush1.msra.mxu0 0.0
    %352 = vmatprep.subr.mxu0 0.0
    %353 = vmatpush1.msra.mxu0 0.0
    %354 = vmatprep.subr.mxu0 0.0
    %355 = vmatpush1.msra.mxu0 0.0
    %356 = vmatprep.subr.mxu0 0.0
    %357 = vmatpush1.msra.mxu0 0.0
    %358 = vmatprep.subr.mxu0 0.0
    %359 = vmatpush1.msra.mxu0 0.0
    %360 = vmatprep.subr.mxu0 0.0
    %361 = vmatpush1.msra.mxu0 0.0
    %362 = vmatprep.subr.mxu0 0.0
    %363 = vmatpush1.msra.mxu0 0.0
    %364 = vmatprep.subr.mxu0 0.0
    %365 = vmatpush1.msra.mxu0 0.0
    %366 = vmatprep.subr.mxu0 0.0
    %367 = vmatpush1.msra.mxu0 0.0
    %368 = vmatprep.subr.mxu0 0.0
    %369 = vmatpush1.msra.mxu0 0.0
    %370 = vmatprep.subr.mxu0 %v336
    %371 = vmatpush1.msra.mxu0 %v333
    %372 = vmatprep.subr.mxu0 %v320
    %373 = vmatpush1.msra.mxu0 %v319
    %374 = vmatprep.subr.mxu0 %v316
    %375 = vmatpush1.msra.mxu0 %v315
    %376 = vmatprep.subr.mxu0 0.0
    %377 = vmatpush2.msra.mxu0 0.0
    %378 = vmatprep.subr.mxu0 0.0
    %379 = vmatpush2.msra.mxu0 0.0
    %380 = vmatprep.subr.mxu0 0.0
    %381 = vmatpush2.msra.mxu0 0.0
    %382 = vmatprep.subr.mxu0 0.0
    %383 = vmatpush2.msra.mxu0 0.0
    %384 = vmatprep.subr.mxu0 0.0
    %385 = vmatpush2.msra.mxu0 0.0
    %386 = vmatprep.subr.mxu0 0.0
    %387 = vmatpush2.msra.mxu0 0.0
    %388 = vmatprep.subr.mxu0 0.0
    %389 = vmatpush2.msra.mxu0 0.0
    %390 = vmatprep.subr.mxu0 0.0
    %391 = vmatpush2.msra.mxu0 0.0
    %392 = vmatprep.subr.mxu0 0.0
    %393 = vmatpush2.msra.mxu0 0.0
    %394 = vmatprep.subr.mxu0 0.0
    %395 = vmatpush2.msra.mxu0 0.0
    %396 = vmatprep.subr.mxu0 0.0
    %397 = vmatpush2.msra.mxu0 0.0
    %398 = vmatprep.subr.mxu0 0.0
    %399 = vmatpush2.msra.mxu0 0.0
    %400 = vmatprep.subr.mxu0 0.0
    %401 = vmatpush2.msra.mxu0 0.0
    %402 = vmatprep.subr.mxu0 0.0
    %403 = vmatpush2.msra.mxu0 0.0
    %404 = vmatprep.subr.mxu0 0.0
    %405 = vmatpush2.msra.mxu0 0.0
    %406 = vmatprep.subr.mxu0 0.0
    %407 = vmatpush2.msra.mxu0 0.0
    %408 = vmatprep.mubr.f32.mxu0 0.0
    %409 = vmatmul.mubr.f32.gmra.mxu0 %v329
    %v410 = vpop.f32.mrf.mxu0
    %v411 = vadd.f32 0.0, %v410
    %v412 = vpop.f32.mrf.mxu0
    %v413 = vadd.f32 0.0, %v412
    %414 = vdwg.mxu0
    %415 = vmatprep.subr.mxu0 0.0
    %416 = vmatpush1.msra.mxu0 0.0
    %417 = vmatprep.subr.mxu0 0.0
    %418 = vmatpush1.msra.mxu0 0.0
    %419 = vmatprep.subr.mxu0 0.0
    %420 = vmatpush1.msra.mxu0 0.0
    %421 = vmatprep.subr.mxu0 0.0
    %422 = vmatpush1.msra.mxu0 0.0
    %423 = vmatprep.subr.mxu0 0.0
    %424 = vmatpush1.msra.mxu0 0.0
    %425 = vmatprep.subr.mxu0 0.0
    %426 = vmatpush1.msra.mxu0 0.0
    %427 = vmatprep.subr.mxu0 0.0
    %428 = vmatpush1.msra.mxu0 0.0
    %429 = vmatprep.subr.mxu0 0.0
    %430 = vmatpush1.msra.mxu0 0.0
    %431 = vmatprep.subr.mxu0 0.0
    %432 = vmatpush1.msra.mxu0 0.0
    %433 = vmatprep.subr.mxu0 0.0
    %434 = vmatpush1.msra.mxu0 0.0
    %435 = vmatprep.subr.mxu0 0.0
    %436 = vmatpush1.msra.mxu0 0.0
    %437 = vmatprep.subr.mxu0 0.0
    %438 = vmatpush1.msra.mxu0 0.0
    %439 = vmatprep.subr.mxu0 0.0
    %440 = vmatpush1.msra.mxu0 0.0
    %441 = vmatprep.subr.mxu0 %v342
    %442 = vmatpush1.msra.mxu0 %v339
    %443 = vmatprep.subr.mxu0 %v322
    %444 = vmatpush1.msra.mxu0 %v321
    %445 = vmatprep.subr.mxu0 %v318
    %446 = vmatpush1.msra.mxu0 %v317
    %447 = vmatprep.subr.mxu0 0.0
    %448 = vmatpush2.msra.mxu0 0.0
    %449 = vmatprep.subr.mxu0 0.0
    %450 = vmatpush2.msra.mxu0 0.0
    %451 = vmatprep.subr.mxu0 0.0
    %452 = vmatpush2.msra.mxu0 0.0
    %453 = vmatprep.subr.mxu0 0.0
    %454 = vmatpush2.msra.mxu0 0.0
    %455 = vmatprep.subr.mxu0 0.0
    %456 = vmatpush2.msra.mxu0 0.0
    %457 = vmatprep.subr.mxu0 0.0
    %458 = vmatpush2.msra.mxu0 0.0
    %459 = vmatprep.subr.mxu0 0.0
    %460 = vmatpush2.msra.mxu0 0.0
    %461 = vmatprep.subr.mxu0 0.0
    %462 = vmatpush2.msra.mxu0 0.0
    %463 = vmatprep.subr.mxu0 0.0
    %464 = vmatpush2.msra.mxu0 0.0
    %465 = vmatprep.subr.mxu0 0.0
    %466 = vmatpush2.msra.mxu0 0.0
    %467 = vmatprep.subr.mxu0 0.0
    %468 = vmatpush2.msra.mxu0 0.0
    %469 = vmatprep.subr.mxu0 0.0
    %470 = vmatpush2.msra.mxu0 0.0
    %471 = vmatprep.subr.mxu0 0.0
    %472 = vmatpush2.msra.mxu0 0.0
    %473 = vmatprep.subr.mxu0 0.0
    %474 = vmatpush2.msra.mxu0 0.0
    %475 = vmatprep.subr.mxu0 0.0
    %476 = vmatpush2.msra.mxu0 0.0
    %477 = vmatprep.subr.mxu0 0.0
    %478 = vmatpush2.msra.mxu0 0.0
    %479 = vmatprep.mubr.f32.mxu0 0.0
    %480 = vmatmul.mubr.f32.gmra.mxu0 %v329
    %v481 = vpop.f32.mrf.mxu0
    %v482 = vadd.f32 0.0, %v481
    %v483 = vpop.f32.mrf.mxu0
    %v484 = vadd.f32 0.0, %v483
    %485 = vdwg.mxu0
    %v486 = vadd.f32 %v311, %v411
    %v487 = vadd.f32 %v312, %v413
    %v488 = vadd.f32 %v313, %v482
    %v489 = vadd.f32 %v314, %v484
    %v490 = vxor.u32 %v486, 2147483648
    %v491 = vmul.f32 %v490, 1.442695
    %v492 = vpow.pop %v491
    %v493 = vadd.f32 %v492, 1.0
    %v494 = vrcp.pop %v493
    %v495 = vmul.f32 1.0, %v494
    %v496 = vxor.u32 %v487, 2147483648
    %v497 = vmul.f32 %v496, 1.442695
    %v498 = vpow.pop %v497
    %v499 = vadd.f32 %v498, 1.0
    %v500 = vrcp.pop %v499
    %v501 = vmul.f32 1.0, %v500
    %v502 = vtanh.pop %v488
    %v503 = vxor.u32 %v489, 2147483648
    %v504 = vmul.f32 %v503, 1.442695
    %v505 = vpow.pop %v504
    %v506 = vadd.f32 %v505, 1.0
    %v507 = vrcp.pop %v506
    %v508 = vmul.f32 1.0, %v507
    %v509 = vmul.f32 %v501, 0.0
    %v510 = vmul.f32 %v495, %v502
    %v511 = vadd.f32 %v509, %v510
    %v512 = vtanh.pop %v511
    %v513 = vmul.f32 %v508, %v512
    %v514 = vld [vmem:[#allocation7] sm:$0xff]
    %v515 = vld [vmem:[#allocation7 + $0x8] sm:$0xff]
    %v516 = vld [vmem:[#allocation7 + $0x10] sm:$0xff]
    %v517 = vld [vmem:[#allocation7 + $0x18] sm:$0xff]
    %v518 = vld [vmem:[#allocation7 + $0x20] sm:$0xff]
    %v519 = vld [vmem:[#allocation7 + $0x28] sm:$0xff]
    %v520 = vld [vmem:[#allocation7 + $0x30] sm:$0xff]
    %v521 = vld [vmem:[#allocation7 + $0x38] sm:$0xff]
    %v522 = vld [vmem:[#allocation7 + $0x40] sm:$0xf]
    %v523 = vld [vmem:[#allocation7 + $0x48] sm:$0xf]
    %v524 = vld [vmem:[#allocation7 + $0x50] sm:$0xf]
    %v525 = vld [vmem:[#allocation7 + $0x58] sm:$0xf]
    %v526 = vld [vmem:[#allocation9] sm:$0xff]
    %v527 = vld [vmem:[#allocation9 + $0x8] sm:$0xff]
    %v528 = vld [vmem:[#allocation9 + $0x10] sm:$0xff]
    %v529 = vld [vmem:[#allocation9 + $0x18] sm:$0xff]
    %v530 = vld [vmem:[#allocation9 + $0x20] sm:$0xff]
    %v531 = vld [vmem:[#allocation9 + $0x28] sm:$0xff]
    %v532 = vld [vmem:[#allocation9 + $0x30] sm:$0xff]
    %v533 = vld [vmem:[#allocation9 + $0x38] sm:$0xff]
    %v534 = vld [vmem:[#allocation9 + $0x40] sm:$0xf]
    %v535 = vld [vmem:[#allocation9 + $0x48] sm:$0xf]
    %v536 = vld [vmem:[#allocation9 + $0x50] sm:$0xf]
    %v537 = vld [vmem:[#allocation9 + $0x58] sm:$0xf]
    %v539 = vsel %vm331, %v534, 0
    %v542 = vsel %vm331, %v535, 0
    %v545 = vsel %vm331, %v536, 0
    %v548 = vsel %vm331, %v537, 0
    %550 = vmatprep.subr.mxu0 0.0
    %551 = vmatpush1.msra.mxu0 0.0
    %552 = vmatprep.subr.mxu0 0.0
    %553 = vmatpush1.msra.mxu0 0.0
    %554 = vmatprep.subr.mxu0 0.0
    %555 = vmatpush1.msra.mxu0 0.0
    %556 = vmatprep.subr.mxu0 0.0
    %557 = vmatpush1.msra.mxu0 0.0
    %558 = vmatprep.subr.mxu0 0.0
    %559 = vmatpush1.msra.mxu0 0.0
    %560 = vmatprep.subr.mxu0 0.0
    %561 = vmatpush1.msra.mxu0 0.0
    %562 = vmatprep.subr.mxu0 0.0
    %563 = vmatpush1.msra.mxu0 0.0
    %564 = vmatprep.subr.mxu0 0.0
    %565 = vmatpush1.msra.mxu0 0.0
    %566 = vmatprep.subr.mxu0 0.0
    %567 = vmatpush1.msra.mxu0 0.0
    %568 = vmatprep.subr.mxu0 0.0
    %569 = vmatpush1.msra.mxu0 0.0
    %570 = vmatprep.subr.mxu0 0.0
    %571 = vmatpush1.msra.mxu0 0.0
    %572 = vmatprep.subr.mxu0 0.0
    %573 = vmatpush1.msra.mxu0 0.0
    %574 = vmatprep.subr.mxu0 0.0
    %575 = vmatpush1.msra.mxu0 0.0
    %576 = vmatprep.subr.mxu0 %v542
    %577 = vmatpush1.msra.mxu0 %v539
    %578 = vmatprep.subr.mxu0 %v531
    %579 = vmatpush1.msra.mxu0 %v530
    %580 = vmatprep.subr.mxu0 %v527
    %581 = vmatpush1.msra.mxu0 %v526
    %582 = vmatprep.subr.mxu0 0.0
    %583 = vmatpush2.msra.mxu0 0.0
    %584 = vmatprep.subr.mxu0 0.0
    %585 = vmatpush2.msra.mxu0 0.0
    %586 = vmatprep.subr.mxu0 0.0
    %587 = vmatpush2.msra.mxu0 0.0
    %588 = vmatprep.subr.mxu0 0.0
    %589 = vmatpush2.msra.mxu0 0.0
    %590 = vmatprep.subr.mxu0 0.0
    %591 = vmatpush2.msra.mxu0 0.0
    %592 = vmatprep.subr.mxu0 0.0
    %593 = vmatpush2.msra.mxu0 0.0
    %594 = vmatprep.subr.mxu0 0.0
    %595 = vmatpush2.msra.mxu0 0.0
    %596 = vmatprep.subr.mxu0 0.0
    %597 = vmatpush2.msra.mxu0 0.0
    %598 = vmatprep.subr.mxu0 0.0
    %599 = vmatpush2.msra.mxu0 0.0
    %600 = vmatprep.subr.mxu0 0.0
    %601 = vmatpush2.msra.mxu0 0.0
    %602 = vmatprep.subr.mxu0 0.0
    %603 = vmatpush2.msra.mxu0 0.0
    %604 = vmatprep.subr.mxu0 0.0
    %605 = vmatpush2.msra.mxu0 0.0
    %606 = vmatprep.subr.mxu0 0.0
    %607 = vmatpush2.msra.mxu0 0.0
    %608 = vmatprep.subr.mxu0 0.0
    %609 = vmatpush2.msra.mxu0 0.0
    %610 = vmatprep.subr.mxu0 0.0
    %611 = vmatpush2.msra.mxu0 0.0
    %612 = vmatprep.subr.mxu0 0.0
    %613 = vmatpush2.msra.mxu0 0.0
    %614 = vmatprep.mubr.f32.mxu0 0.0
    %615 = vmatmul.mubr.f32.gmra.mxu0 %v329
    %v616 = vpop.f32.mrf.mxu0
    %v617 = vadd.f32 0.0, %v616
    %v618 = vpop.f32.mrf.mxu0
    %v619 = vadd.f32 0.0, %v618
    %620 = vdwg.mxu0
    %621 = vmatprep.subr.mxu0 0.0
    %622 = vmatpush1.msra.mxu0 0.0
    %623 = vmatprep.subr.mxu0 0.0
    %624 = vmatpush1.msra.mxu0 0.0
    %625 = vmatprep.subr.mxu0 0.0
    %626 = vmatpush1.msra.mxu0 0.0
    %627 = vmatprep.subr.mxu0 0.0
    %628 = vmatpush1.msra.mxu0 0.0
    %629 = vmatprep.subr.mxu0 0.0
    %630 = vmatpush1.msra.mxu0 0.0
    %631 = vmatprep.subr.mxu0 0.0
    %632 = vmatpush1.msra.mxu0 0.0
    %633 = vmatprep.subr.mxu0 0.0
    %634 = vmatpush1.msra.mxu0 0.0
    %635 = vmatprep.subr.mxu0 0.0
    %636 = vmatpush1.msra.mxu0 0.0
    %637 = vmatprep.subr.mxu0 0.0
    %638 = vmatpush1.msra.mxu0 0.0
    %639 = vmatprep.subr.mxu0 0.0
    %640 = vmatpush1.msra.mxu0 0.0
    %641 = vmatprep.subr.mxu0 0.0
    %642 = vmatpush1.msra.mxu0 0.0
    %643 = vmatprep.subr.mxu0 0.0
    %644 = vmatpush1.msra.mxu0 0.0
    %645 = vmatprep.subr.mxu0 0.0
    %646 = vmatpush1.msra.mxu0 0.0
    %647 = vmatprep.subr.mxu0 %v548
    %648 = vmatpush1.msra.mxu0 %v545
    %649 = vmatprep.subr.mxu0 %v533
    %650 = vmatpush1.msra.mxu0 %v532
    %651 = vmatprep.subr.mxu0 %v529
    %652 = vmatpush1.msra.mxu0 %v528
    %653 = vmatprep.subr.mxu0 0.0
    %654 = vmatpush2.msra.mxu0 0.0
    %655 = vmatprep.subr.mxu0 0.0
    %656 = vmatpush2.msra.mxu0 0.0
    %657 = vmatprep.subr.mxu0 0.0
    %658 = vmatpush2.msra.mxu0 0.0
    %659 = vmatprep.subr.mxu0 0.0
    %660 = vmatpush2.msra.mxu0 0.0
    %661 = vmatprep.subr.mxu0 0.0
    %662 = vmatpush2.msra.mxu0 0.0
    %663 = vmatprep.subr.mxu0 0.0
    %664 = vmatpush2.msra.mxu0 0.0
    %665 = vmatprep.subr.mxu0 0.0
    %666 = vmatpush2.msra.mxu0 0.0
    %667 = vmatprep.subr.mxu0 0.0
    %668 = vmatpush2.msra.mxu0 0.0
    %669 = vmatprep.subr.mxu0 0.0
    %670 = vmatpush2.msra.mxu0 0.0
    %671 = vmatprep.subr.mxu0 0.0
    %672 = vmatpush2.msra.mxu0 0.0
    %673 = vmatprep.subr.mxu0 0.0
    %674 = vmatpush2.msra.mxu0 0.0
    %675 = vmatprep.subr.mxu0 0.0
    %676 = vmatpush2.msra.mxu0 0.0
    %677 = vmatprep.subr.mxu0 0.0
    %678 = vmatpush2.msra.mxu0 0.0
    %679 = vmatprep.subr.mxu0 0.0
    %680 = vmatpush2.msra.mxu0 0.0
    %681 = vmatprep.subr.mxu0 0.0
    %682 = vmatpush2.msra.mxu0 0.0
    %683 = vmatprep.subr.mxu0 0.0
    %684 = vmatpush2.msra.mxu0 0.0
    %685 = vmatprep.mubr.f32.mxu0 0.0
    %686 = vmatmul.mubr.f32.gmra.mxu0 %v329
    %v687 = vpop.f32.mrf.mxu0
    %v688 = vadd.f32 0.0, %v687
    %v689 = vpop.f32.mrf.mxu0
    %v690 = vadd.f32 0.0, %v689
    %691 = vdwg.mxu0
    %v693 = vsel %vm327, %v513, 0
    %v696 = vsel %vm331, %v522, 0
    %v699 = vsel %vm331, %v523, 0
    %v702 = vsel %vm331, %v524, 0
    %v705 = vsel %vm331, %v525, 0
    %707 = vmatprep.subr.mxu0 0.0
    %708 = vmatpush1.msra.mxu0 0.0
    %709 = vmatprep.subr.mxu0 0.0
    %710 = vmatpush1.msra.mxu0 0.0
    %711 = vmatprep.subr.mxu0 0.0
    %712 = vmatpush1.msra.mxu0 0.0
    %713 = vmatprep.subr.mxu0 0.0
    %714 = vmatpush1.msra.mxu0 0.0
    %715 = vmatprep.subr.mxu0 0.0
    %716 = vmatpush1.msra.mxu0 0.0
    %717 = vmatprep.subr.mxu0 0.0
    %718 = vmatpush1.msra.mxu0 0.0
    %719 = vmatprep.subr.mxu0 0.0
    %720 = vmatpush1.msra.mxu0 0.0
    %721 = vmatprep.subr.mxu0 0.0
    %722 = vmatpush1.msra.mxu0 0.0
    %723 = vmatprep.subr.mxu0 0.0
    %724 = vmatpush1.msra.mxu0 0.0
    %725 = vmatprep.subr.mxu0 0.0
    %726 = vmatpush1.msra.mxu0 0.0
    %727 = vmatprep.subr.mxu0 0.0
    %728 = vmatpush1.msra.mxu0 0.0
    %729 = vmatprep.subr.mxu0 0.0
    %730 = vmatpush1.msra.mxu0 0.0
    %731 = vmatprep.subr.mxu0 0.0
    %732 = vmatpush1.msra.mxu0 0.0
    %733 = vmatprep.subr.mxu0 %v699
    %734 = vmatpush1.msra.mxu0 %v696
    %735 = vmatprep.subr.mxu0 %v519
    %736 = vmatpush1.msra.mxu0 %v518
    %737 = vmatprep.subr.mxu0 %v515
    %738 = vmatpush1.msra.mxu0 %v514
    %739 = vmatprep.subr.mxu0 0.0
    %740 = vmatpush2.msra.mxu0 0.0
    %741 = vmatprep.subr.mxu0 0.0
    %742 = vmatpush2.msra.mxu0 0.0
    %743 = vmatprep.subr.mxu0 0.0
    %744 = vmatpush2.msra.mxu0 0.0
    %745 = vmatprep.subr.mxu0 0.0
    %746 = vmatpush2.msra.mxu0 0.0
    %747 = vmatprep.subr.mxu0 0.0
    %748 = vmatpush2.msra.mxu0 0.0
    %749 = vmatprep.subr.mxu0 0.0
    %750 = vmatpush2.msra.mxu0 0.0
    %751 = vmatprep.subr.mxu0 0.0
    %752 = vmatpush2.msra.mxu0 0.0
    %753 = vmatprep.subr.mxu0 0.0
    %754 = vmatpush2.msra.mxu0 0.0
    %755 = vmatprep.subr.mxu0 0.0
    %756 = vmatpush2.msra.mxu0 0.0
    %757 = vmatprep.subr.mxu0 0.0
    %758 = vmatpush2.msra.mxu0 0.0
    %759 = vmatprep.subr.mxu0 0.0
    %760 = vmatpush2.msra.mxu0 0.0
    %761 = vmatprep.subr.mxu0 0.0
    %762 = vmatpush2.msra.mxu0 0.0
    %763 = vmatprep.subr.mxu0 0.0
    %764 = vmatpush2.msra.mxu0 0.0
    %765 = vmatprep.subr.mxu0 0.0
    %766 = vmatpush2.msra.mxu0 0.0
    %767 = vmatprep.subr.mxu0 0.0
    %768 = vmatpush2.msra.mxu0 0.0
    %769 = vmatprep.subr.mxu0 0.0
    %770 = vmatpush2.msra.mxu0 0.0
    %771 = vmatprep.mubr.f32.mxu0 0.0
    %772 = vmatmul.mubr.f32.gmra.mxu0 %v693
    %v773 = vpop.f32.mrf.mxu0
    %v774 = vadd.f32 %v617, %v773
    %v775 = vpop.f32.mrf.mxu0
    %v776 = vadd.f32 %v619, %v775
    %777 = vdwg.mxu0
    %778 = vmatprep.subr.mxu0 0.0
    %779 = vmatpush1.msra.mxu0 0.0
    %780 = vmatprep.subr.mxu0 0.0
    %781 = vmatpush1.msra.mxu0 0.0
    %782 = vmatprep.subr.mxu0 0.0
    %783 = vmatpush1.msra.mxu0 0.0
    %784 = vmatprep.subr.mxu0 0.0
    %785 = vmatpush1.msra.mxu0 0.0
    %786 = vmatprep.subr.mxu0 0.0
    %787 = vmatpush1.msra.mxu0 0.0
    %788 = vmatprep.subr.mxu0 0.0
    %789 = vmatpush1.msra.mxu0 0.0
    %790 = vmatprep.subr.mxu0 0.0
    %791 = vmatpush1.msra.mxu0 0.0
    %792 = vmatprep.subr.mxu0 0.0
    %793 = vmatpush1.msra.mxu0 0.0
    %794 = vmatprep.subr.mxu0 0.0
    %795 = vmatpush1.msra.mxu0 0.0
    %796 = vmatprep.subr.mxu0 0.0
    %797 = vmatpush1.msra.mxu0 0.0
    %798 = vmatprep.subr.mxu0 0.0
    %799 = vmatpush1.msra.mxu0 0.0
    %800 = vmatprep.subr.mxu0 0.0
    %801 = vmatpush1.msra.mxu0 0.0
    %802 = vmatprep.subr.mxu0 0.0
    %803 = vmatpush1.msra.mxu0 0.0
    %804 = vmatprep.subr.mxu0 %v705
    %805 = vmatpush1.msra.mxu0 %v702
    %806 = vmatprep.subr.mxu0 %v521
    %807 = vmatpush1.msra.mxu0 %v520
    %808 = vmatprep.subr.mxu0 %v517
    %809 = vmatpush1.msra.mxu0 %v516
    %810 = vmatprep.subr.mxu0 0.0
    %811 = vmatpush2.msra.mxu0 0.0
    %812 = vmatprep.subr.mxu0 0.0
    %813 = vmatpush2.msra.mxu0 0.0
    %814 = vmatprep.subr.mxu0 0.0
    %815 = vmatpush2.msra.mxu0 0.0
    %816 = vmatprep.subr.mxu0 0.0
    %817 = vmatpush2.msra.mxu0 0.0
    %818 = vmatprep.subr.mxu0 0.0
    %819 = vmatpush2.msra.mxu0 0.0
    %820 = vmatprep.subr.mxu0 0.0
    %821 = vmatpush2.msra.mxu0 0.0
    %822 = vmatprep.subr.mxu0 0.0
    %823 = vmatpush2.msra.mxu0 0.0
    %824 = vmatprep.subr.mxu0 0.0
    %825 = vmatpush2.msra.mxu0 0.0
    %826 = vmatprep.subr.mxu0 0.0
    %827 = vmatpush2.msra.mxu0 0.0
    %828 = vmatprep.subr.mxu0 0.0
    %829 = vmatpush2.msra.mxu0 0.0
    %830 = vmatprep.subr.mxu0 0.0
    %831 = vmatpush2.msra.mxu0 0.0
    %832 = vmatprep.subr.mxu0 0.0
    %833 = vmatpush2.msra.mxu0 0.0
    %834 = vmatprep.subr.mxu0 0.0
    %835 = vmatpush2.msra.mxu0 0.0
    %836 = vmatprep.subr.mxu0 0.0
    %837 = vmatpush2.msra.mxu0 0.0
    %838 = vmatprep.subr.mxu0 0.0
    %839 = vmatpush2.msra.mxu0 0.0
    %840 = vmatprep.subr.mxu0 0.0
    %841 = vmatpush2.msra.mxu0 0.0
    %842 = vmatprep.mubr.f32.mxu0 0.0
    %843 = vmatmul.mubr.f32.gmra.mxu0 %v693
    %v844 = vpop.f32.mrf.mxu0
    %v845 = vadd.f32 %v688, %v844
    %v846 = vpop.f32.mrf.mxu0
    %v847 = vadd.f32 %v690, %v846
    %848 = vdwg.mxu0
    %v849 = vadd.f32 %v774, %v294
    %v850 = vadd.f32 %v776, %v298
    %v851 = vadd.f32 %v845, %v302
    %v852 = vadd.f32 %v847, %v306
    %v853 = vxor.u32 %v849, 2147483648
    %v854 = vmul.f32 %v853, 1.442695
    %v855 = vpow.pop %v854
    %v856 = vadd.f32 %v855, 1.0
    %v857 = vrcp.pop %v856
    %v858 = vmul.f32 1.0, %v857
    %v859 = vxor.u32 %v850, 2147483648
    %v860 = vmul.f32 %v859, 1.442695
    %v861 = vpow.pop %v860
    %v862 = vadd.f32 %v861, 1.0
    %v863 = vrcp.pop %v862
    %v864 = vmul.f32 1.0, %v863
    %v865 = vtanh.pop %v851
    %v866 = vxor.u32 %v852, 2147483648
    %v867 = vmul.f32 %v866, 1.442695
    %v868 = vpow.pop %v867
    %v869 = vadd.f32 %v868, 1.0
    %v870 = vrcp.pop %v869
    %v871 = vmul.f32 1.0, %v870
    %v872 = vmul.f32 %v864, 0.0
    %v873 = vmul.f32 %v858, %v865
    %v874 = vadd.f32 %v872, %v873
    %v875 = vtanh.pop %v874
    %v876 = vmul.f32 %v871, %v875
    %877 = vst [vmem:[#allocation3] sm:$0x3] %v876
    %v878 = vld [vmem:[#allocation2] sm:$0xc]
    %v879 = vld [vmem:[#allocation2 + $0x8] sm:$0xc]
    %v880 = vld [vmem:[#allocation2 + $0x10] sm:$0xc]
    %v881 = vld [vmem:[#allocation2 + $0x18] sm:$0xc]
    %v882 = vld [vmem:[%s3] sm:$0xff]
    %v883 = vld [vmem:[%s3 + $0x8] sm:$0xff]
    %v884 = vld [vmem:[%s3 + $0x10] sm:$0xff]
    %v885 = vld [vmem:[%s3 + $0x18] sm:$0xff]
    %v886 = vld [vmem:[%s3 + $0x20] sm:$0xff]
    %v887 = vld [vmem:[%s3 + $0x28] sm:$0xff]
    %v888 = vld [vmem:[%s3 + $0x30] sm:$0xff]
    %v889 = vld [vmem:[%s3 + $0x38] sm:$0xff]
    %v890 = vld [vmem:[%s3 + $0x40] sm:$0xf]
    %v891 = vld [vmem:[%s3 + $0x48] sm:$0xf]
    %v892 = vld [vmem:[%s3 + $0x50] sm:$0xf]
    %v893 = vld [vmem:[%s3 + $0x58] sm:$0xf]
    %v895 = vsel %vm331, %v890, 0
    %v898 = vsel %vm331, %v891, 0
    %v901 = vsel %vm331, %v892, 0
    %v904 = vsel %vm331, %v893, 0
    %906 = vmatprep.subr.mxu0 0.0
    %907 = vmatpush1.msra.mxu0 0.0
    %908 = vmatprep.subr.mxu0 0.0
    %909 = vmatpush1.msra.mxu0 0.0
    %910 = vmatprep.subr.mxu0 0.0
    %911 = vmatpush1.msra.mxu0 0.0
    %912 = vmatprep.subr.mxu0 0.0
    %913 = vmatpush1.msra.mxu0 0.0
    %914 = vmatprep.subr.mxu0 0.0
    %915 = vmatpush1.msra.mxu0 0.0
    %916 = vmatprep.subr.mxu0 0.0
    %917 = vmatpush1.msra.mxu0 0.0
    %918 = vmatprep.subr.mxu0 0.0
    %919 = vmatpush1.msra.mxu0 0.0
    %920 = vmatprep.subr.mxu0 0.0
    %921 = vmatpush1.msra.mxu0 0.0
    %922 = vmatprep.subr.mxu0 0.0
    %923 = vmatpush1.msra.mxu0 0.0
    %924 = vmatprep.subr.mxu0 0.0
    %925 = vmatpush1.msra.mxu0 0.0
    %926 = vmatprep.subr.mxu0 0.0
    %927 = vmatpush1.msra.mxu0 0.0
    %928 = vmatprep.subr.mxu0 0.0
    %929 = vmatpush1.msra.mxu0 0.0
    %930 = vmatprep.subr.mxu0 0.0
    %931 = vmatpush1.msra.mxu0 0.0
    %932 = vmatprep.subr.mxu0 %v898
    %933 = vmatpush1.msra.mxu0 %v895
    %934 = vmatprep.subr.mxu0 %v887
    %935 = vmatpush1.msra.mxu0 %v886
    %936 = vmatprep.subr.mxu0 %v883
    %937 = vmatpush1.msra.mxu0 %v882
    %938 = vmatprep.subr.mxu0 0.0
    %939 = vmatpush2.msra.mxu0 0.0
    %940 = vmatprep.subr.mxu0 0.0
    %941 = vmatpush2.msra.mxu0 0.0
    %942 = vmatprep.subr.mxu0 0.0
    %943 = vmatpush2.msra.mxu0 0.0
    %944 = vmatprep.subr.mxu0 0.0
    %945 = vmatpush2.msra.mxu0 0.0
    %946 = vmatprep.subr.mxu0 0.0
    %947 = vmatpush2.msra.mxu0 0.0
    %948 = vmatprep.subr.mxu0 0.0
    %949 = vmatpush2.msra.mxu0 0.0
    %950 = vmatprep.subr.mxu0 0.0
    %951 = vmatpush2.msra.mxu0 0.0
    %952 = vmatprep.subr.mxu0 0.0
    %953 = vmatpush2.msra.mxu0 0.0
    %954 = vmatprep.subr.mxu0 0.0
    %955 = vmatpush2.msra.mxu0 0.0
    %956 = vmatprep.subr.mxu0 0.0
    %957 = vmatpush2.msra.mxu0 0.0
    %958 = vmatprep.subr.mxu0 0.0
    %959 = vmatpush2.msra.mxu0 0.0
    %960 = vmatprep.subr.mxu0 0.0
    %961 = vmatpush2.msra.mxu0 0.0
    %962 = vmatprep.subr.mxu0 0.0
    %963 = vmatpush2.msra.mxu0 0.0
    %964 = vmatprep.subr.mxu0 0.0
    %965 = vmatpush2.msra.mxu0 0.0
    %966 = vmatprep.subr.mxu0 0.0
    %967 = vmatpush2.msra.mxu0 0.0
    %968 = vmatprep.subr.mxu0 0.0
    %969 = vmatpush2.msra.mxu0 0.0
    %970 = vmatprep.mubr.f32.mxu0 0.0
    %971 = vmatmul.mubr.f32.gmra.mxu0 %v693
    %v972 = vpop.f32.mrf.mxu0
    %v973 = vadd.f32 0.0, %v972
    %v974 = vpop.f32.mrf.mxu0
    %v975 = vadd.f32 0.0, %v974
    %976 = vdwg.mxu0
    %977 = vmatprep.subr.mxu0 0.0
    %978 = vmatpush1.msra.mxu0 0.0
    %979 = vmatprep.subr.mxu0 0.0
    %980 = vmatpush1.msra.mxu0 0.0
    %981 = vmatprep.subr.mxu0 0.0
    %982 = vmatpush1.msra.mxu0 0.0
    %983 = vmatprep.subr.mxu0 0.0
    %984 = vmatpush1.msra.mxu0 0.0
    %985 = vmatprep.subr.mxu0 0.0
    %986 = vmatpush1.msra.mxu0 0.0
    %987 = vmatprep.subr.mxu0 0.0
    %988 = vmatpush1.msra.mxu0 0.0
    %989 = vmatprep.subr.mxu0 0.0
    %990 = vmatpush1.msra.mxu0 0.0
    %991 = vmatprep.subr.mxu0 0.0
    %992 = vmatpush1.msra.mxu0 0.0
    %993 = vmatprep.subr.mxu0 0.0
    %994 = vmatpush1.msra.mxu0 0.0
    %995 = vmatprep.subr.mxu0 0.0
    %996 = vmatpush1.msra.mxu0 0.0
    %997 = vmatprep.subr.mxu0 0.0
    %998 = vmatpush1.msra.mxu0 0.0
    %999 = vmatprep.subr.mxu0 0.0
    %1000 = vmatpush1.msra.mxu0 0.0
    %1001 = vmatprep.subr.mxu0 0.0
    %1002 = vmatpush1.msra.mxu0 0.0
    %1003 = vmatprep.subr.mxu0 %v904
    %1004 = vmatpush1.msra.mxu0 %v901
    %1005 = vmatprep.subr.mxu0 %v889
    %1006 = vmatpush1.msra.mxu0 %v888
    %1007 = vmatprep.subr.mxu0 %v885
    %1008 = vmatpush1.msra.mxu0 %v884
    %1009 = vmatprep.subr.mxu0 0.0
    %1010 = vmatpush2.msra.mxu0 0.0
    %1011 = vmatprep.subr.mxu0 0.0
    %1012 = vmatpush2.msra.mxu0 0.0
    %1013 = vmatprep.subr.mxu0 0.0
    %1014 = vmatpush2.msra.mxu0 0.0
    %1015 = vmatprep.subr.mxu0 0.0
    %1016 = vmatpush2.msra.mxu0 0.0
    %1017 = vmatprep.subr.mxu0 0.0
    %1018 = vmatpush2.msra.mxu0 0.0
    %1019 = vmatprep.subr.mxu0 0.0
    %1020 = vmatpush2.msra.mxu0 0.0
    %1021 = vmatprep.subr.mxu0 0.0
    %1022 = vmatpush2.msra.mxu0 0.0
    %1023 = vmatprep.subr.mxu0 0.0
    %1024 = vmatpush2.msra.mxu0 0.0
    %1025 = vmatprep.subr.mxu0 0.0
    %1026 = vmatpush2.msra.mxu0 0.0
    %1027 = vmatprep.subr.mxu0 0.0
    %1028 = vmatpush2.msra.mxu0 0.0
    %1029 = vmatprep.subr.mxu0 0.0
    %1030 = vmatpush2.msra.mxu0 0.0
    %1031 = vmatprep.subr.mxu0 0.0
    %1032 = vmatpush2.msra.mxu0 0.0
    %1033 = vmatprep.subr.mxu0 0.0
    %1034 = vmatpush2.msra.mxu0 0.0
    %1035 = vmatprep.subr.mxu0 0.0
    %1036 = vmatpush2.msra.mxu0 0.0
    %1037 = vmatprep.subr.mxu0 0.0
    %1038 = vmatpush2.msra.mxu0 0.0
    %1039 = vmatprep.subr.mxu0 0.0
    %1040 = vmatpush2.msra.mxu0 0.0
    %1041 = vmatprep.mubr.f32.mxu0 0.0
    %1042 = vmatmul.mubr.f32.gmra.mxu0 %v693
    %v1043 = vpop.f32.mrf.mxu0
    %v1044 = vadd.f32 0.0, %v1043
    %v1045 = vpop.f32.mrf.mxu0
    %v1046 = vadd.f32 0.0, %v1045
    %1047 = vdwg.mxu0
    %v1052 = vrot.slane %v973, 6
    %v1053 = vrot.slane %v975, 6
    %v1054 = vrot.slane %v1044, 6
    %v1055 = vrot.slane %v1046, 6
    %v1060 = vadd.f32 %v878, %v1052
    %v1061 = vadd.f32 %v879, %v1053
    %v1062 = vadd.f32 %v880, %v1054
    %v1063 = vadd.f32 %v881, %v1055
    %v1064 = vxor.u32 %v1060, 2147483648
    %v1065 = vmul.f32 %v1064, 1.442695
    %v1066 = vpow.pop %v1065
    %v1067 = vadd.f32 %v1066, 1.0
    %v1068 = vrcp.pop %v1067
    %v1069 = vmul.f32 1.0, %v1068
    %v1070 = vxor.u32 %v1061, 2147483648
    %v1071 = vmul.f32 %v1070, 1.442695
    %v1072 = vpow.pop %v1071
    %v1073 = vadd.f32 %v1072, 1.0
    %v1074 = vrcp.pop %v1073
    %v1075 = vmul.f32 1.0, %v1074
    %v1076 = vtanh.pop %v1062
    %v1077 = vxor.u32 %v1063, 2147483648
    %v1078 = vmul.f32 %v1077, 1.442695
    %v1079 = vpow.pop %v1078
    %v1080 = vadd.f32 %v1079, 1.0
    %v1081 = vrcp.pop %v1080
    %v1082 = vmul.f32 1.0, %v1081
    %v1084 = vrot.slane %v511, 6
    %v1086 = vmul.f32 %v1075, %v1084
    %v1087 = vmul.f32 %v1069, %v1076
    %v1088 = vadd.f32 %v1086, %v1087
    %v1089 = vtanh.pop %v1088
    %v1090 = vmul.f32 %v1082, %v1089
    %v1091 = vld [vmem:[#allocation7] sm:$0xff]
    %v1092 = vld [vmem:[#allocation7 + $0x8] sm:$0xff]
    %v1093 = vld [vmem:[#allocation7 + $0x10] sm:$0xff]
    %v1094 = vld [vmem:[#allocation7 + $0x18] sm:$0xff]
    %v1095 = vld [vmem:[#allocation7 + $0x20] sm:$0xff]
    %v1096 = vld [vmem:[#allocation7 + $0x28] sm:$0xff]
    %v1097 = vld [vmem:[#allocation7 + $0x30] sm:$0xff]
    %v1098 = vld [vmem:[#allocation7 + $0x38] sm:$0xff]
    %v1099 = vld [vmem:[#allocation7 + $0x40] sm:$0xf]
    %v1100 = vld [vmem:[#allocation7 + $0x48] sm:$0xf]
    %v1101 = vld [vmem:[#allocation7 + $0x50] sm:$0xf]
    %v1102 = vld [vmem:[#allocation7 + $0x58] sm:$0xf]
    %v1103 = vld [vmem:[#allocation9] sm:$0xff]
    %v1104 = vld [vmem:[#allocation9 + $0x8] sm:$0xff]
    %v1105 = vld [vmem:[#allocation9 + $0x10] sm:$0xff]
    %v1106 = vld [vmem:[#allocation9 + $0x18] sm:$0xff]
    %v1107 = vld [vmem:[#allocation9 + $0x20] sm:$0xff]
    %v1108 = vld [vmem:[#allocation9 + $0x28] sm:$0xff]
    %v1109 = vld [vmem:[#allocation9 + $0x30] sm:$0xff]
    %v1110 = vld [vmem:[#allocation9 + $0x38] sm:$0xff]
    %v1111 = vld [vmem:[#allocation9 + $0x40] sm:$0xf]
    %v1112 = vld [vmem:[#allocation9 + $0x48] sm:$0xf]
    %v1113 = vld [vmem:[#allocation9 + $0x50] sm:$0xf]
    %v1114 = vld [vmem:[#allocation9 + $0x58] sm:$0xf]
    %v1116 = vsel %vm327, %v876, 0
    %v1119 = vsel %vm331, %v1111, 0
    %v1122 = vsel %vm331, %v1112, 0
    %v1125 = vsel %vm331, %v1113, 0
    %v1128 = vsel %vm331, %v1114, 0
    %1130 = vmatprep.subr.mxu0 0.0
    %1131 = vmatpush1.msra.mxu0 0.0
    %1132 = vmatprep.subr.mxu0 0.0
    %1133 = vmatpush1.msra.mxu0 0.0
    %1134 = vmatprep.subr.mxu0 0.0
    %1135 = vmatpush1.msra.mxu0 0.0
    %1136 = vmatprep.subr.mxu0 0.0
    %1137 = vmatpush1.msra.mxu0 0.0
    %1138 = vmatprep.subr.mxu0 0.0
    %1139 = vmatpush1.msra.mxu0 0.0
    %1140 = vmatprep.subr.mxu0 0.0
    %1141 = vmatpush1.msra.mxu0 0.0
    %1142 = vmatprep.subr.mxu0 0.0
    %1143 = vmatpush1.msra.mxu0 0.0
    %1144 = vmatprep.subr.mxu0 0.0
    %1145 = vmatpush1.msra.mxu0 0.0
    %1146 = vmatprep.subr.mxu0 0.0
    %1147 = vmatpush1.msra.mxu0 0.0
    %1148 = vmatprep.subr.mxu0 0.0
    %1149 = vmatpush1.msra.mxu0 0.0
    %1150 = vmatprep.subr.mxu0 0.0
    %1151 = vmatpush1.msra.mxu0 0.0
    %1152 = vmatprep.subr.mxu0 0.0
    %1153 = vmatpush1.msra.mxu0 0.0
    %1154 = vmatprep.subr.mxu0 0.0
    %1155 = vmatpush1.msra.mxu0 0.0
    %1156 = vmatprep.subr.mxu0 %v1122
    %1157 = vmatpush1.msra.mxu0 %v1119
    %1158 = vmatprep.subr.mxu0 %v1108
    %1159 = vmatpush1.msra.mxu0 %v1107
    %1160 = vmatprep.subr.mxu0 %v1104
    %1161 = vmatpush1.msra.mxu0 %v1103
    %1162 = vmatprep.subr.mxu0 0.0
    %1163 = vmatpush2.msra.mxu0 0.0
    %1164 = vmatprep.subr.mxu0 0.0
    %1165 = vmatpush2.msra.mxu0 0.0
    %1166 = vmatprep.subr.mxu0 0.0
    %1167 = vmatpush2.msra.mxu0 0.0
    %1168 = vmatprep.subr.mxu0 0.0
    %1169 = vmatpush2.msra.mxu0 0.0
    %1170 = vmatprep.subr.mxu0 0.0
    %1171 = vmatpush2.msra.mxu0 0.0
    %1172 = vmatprep.subr.mxu0 0.0
    %1173 = vmatpush2.msra.mxu0 0.0
    %1174 = vmatprep.subr.mxu0 0.0
    %1175 = vmatpush2.msra.mxu0 0.0
    %1176 = vmatprep.subr.mxu0 0.0
    %1177 = vmatpush2.msra.mxu0 0.0
    %1178 = vmatprep.subr.mxu0 0.0
    %1179 = vmatpush2.msra.mxu0 0.0
    %1180 = vmatprep.subr.mxu0 0.0
    %1181 = vmatpush2.msra.mxu0 0.0
    %1182 = vmatprep.subr.mxu0 0.0
    %1183 = vmatpush2.msra.mxu0 0.0
    %1184 = vmatprep.subr.mxu0 0.0
    %1185 = vmatpush2.msra.mxu0 0.0
    %1186 = vmatprep.subr.mxu0 0.0
    %1187 = vmatpush2.msra.mxu0 0.0
    %1188 = vmatprep.subr.mxu0 0.0
    %1189 = vmatpush2.msra.mxu0 0.0
    %1190 = vmatprep.subr.mxu0 0.0
    %1191 = vmatpush2.msra.mxu0 0.0
    %1192 = vmatprep.subr.mxu0 0.0
    %1193 = vmatpush2.msra.mxu0 0.0
    %1194 = vmatprep.mubr.f32.mxu0 0.0
    %1195 = vmatmul.mubr.f32.gmra.mxu0 %v1116
    %v1196 = vpop.f32.mrf.mxu0
    %v1197 = vadd.f32 0.0, %v1196
    %v1198 = vpop.f32.mrf.mxu0
    %v1199 = vadd.f32 0.0, %v1198
    %1200 = vdwg.mxu0
    %1201 = vmatprep.subr.mxu0 0.0
    %1202 = vmatpush1.msra.mxu0 0.0
    %1203 = vmatprep.subr.mxu0 0.0
    %1204 = vmatpush1.msra.mxu0 0.0
    %1205 = vmatprep.subr.mxu0 0.0
    %1206 = vmatpush1.msra.mxu0 0.0
    %1207 = vmatprep.subr.mxu0 0.0
    %1208 = vmatpush1.msra.mxu0 0.0
    %1209 = vmatprep.subr.mxu0 0.0
    %1210 = vmatpush1.msra.mxu0 0.0
    %1211 = vmatprep.subr.mxu0 0.0
    %1212 = vmatpush1.msra.mxu0 0.0
    %1213 = vmatprep.subr.mxu0 0.0
    %1214 = vmatpush1.msra.mxu0 0.0
    %1215 = vmatprep.subr.mxu0 0.0
    %1216 = vmatpush1.msra.mxu0 0.0
    %1217 = vmatprep.subr.mxu0 0.0
    %1218 = vmatpush1.msra.mxu0 0.0
    %1219 = vmatprep.subr.mxu0 0.0
    %1220 = vmatpush1.msra.mxu0 0.0
    %1221 = vmatprep.subr.mxu0 0.0
    %1222 = vmatpush1.msra.mxu0 0.0
    %1223 = vmatprep.subr.mxu0 0.0
    %1224 = vmatpush1.msra.mxu0 0.0
    %1225 = vmatprep.subr.mxu0 0.0
    %1226 = vmatpush1.msra.mxu0 0.0
    %1227 = vmatprep.subr.mxu0 %v1128
    %1228 = vmatpush1.msra.mxu0 %v1125
    %1229 = vmatprep.subr.mxu0 %v1110
    %1230 = vmatpush1.msra.mxu0 %v1109
    %1231 = vmatprep.subr.mxu0 %v1106
    %1232 = vmatpush1.msra.mxu0 %v1105
    %1233 = vmatprep.subr.mxu0 0.0
    %1234 = vmatpush2.msra.mxu0 0.0
    %1235 = vmatprep.subr.mxu0 0.0
    %1236 = vmatpush2.msra.mxu0 0.0
    %1237 = vmatprep.subr.mxu0 0.0
    %1238 = vmatpush2.msra.mxu0 0.0
    %1239 = vmatprep.subr.mxu0 0.0
    %1240 = vmatpush2.msra.mxu0 0.0
    %1241 = vmatprep.subr.mxu0 0.0
    %1242 = vmatpush2.msra.mxu0 0.0
    %1243 = vmatprep.subr.mxu0 0.0
    %1244 = vmatpush2.msra.mxu0 0.0
    %1245 = vmatprep.subr.mxu0 0.0
    %1246 = vmatpush2.msra.mxu0 0.0
    %1247 = vmatprep.subr.mxu0 0.0
    %1248 = vmatpush2.msra.mxu0 0.0
    %1249 = vmatprep.subr.mxu0 0.0
    %1250 = vmatpush2.msra.mxu0 0.0
    %1251 = vmatprep.subr.mxu0 0.0
    %1252 = vmatpush2.msra.mxu0 0.0
    %1253 = vmatprep.subr.mxu0 0.0
    %1254 = vmatpush2.msra.mxu0 0.0
    %1255 = vmatprep.subr.mxu0 0.0
    %1256 = vmatpush2.msra.mxu0 0.0
    %1257 = vmatprep.subr.mxu0 0.0
    %1258 = vmatpush2.msra.mxu0 0.0
    %1259 = vmatprep.subr.mxu0 0.0
    %1260 = vmatpush2.msra.mxu0 0.0
    %1261 = vmatprep.subr.mxu0 0.0
    %1262 = vmatpush2.msra.mxu0 0.0
    %1263 = vmatprep.subr.mxu0 0.0
    %1264 = vmatpush2.msra.mxu0 0.0
    %1265 = vmatprep.mubr.f32.mxu0 0.0
    %1266 = vmatmul.mubr.f32.gmra.mxu0 %v1116
    %v1267 = vpop.f32.mrf.mxu0
    %v1268 = vadd.f32 0.0, %v1267
    %v1269 = vpop.f32.mrf.mxu0
    %v1270 = vadd.f32 0.0, %v1269
    %1271 = vdwg.mxu0
    %v1273 = vrot.slane %v1090, 2
    %v1274 = vsel %vm327, %v1273, 0
    %v1277 = vsel %vm331, %v1099, 0
    %v1280 = vsel %vm331, %v1100, 0
    %v1283 = vsel %vm331, %v1101, 0
    %v1286 = vsel %vm331, %v1102, 0
    %1288 = vmatprep.subr.mxu0 0.0
    %1289 = vmatpush1.msra.mxu0 0.0
    %1290 = vmatprep.subr.mxu0 0.0
    %1291 = vmatpush1.msra.mxu0 0.0
    %1292 = vmatprep.subr.mxu0 0.0
    %1293 = vmatpush1.msra.mxu0 0.0
    %1294 = vmatprep.subr.mxu0 0.0
    %1295 = vmatpush1.msra.mxu0 0.0
    %1296 = vmatprep.subr.mxu0 0.0
    %1297 = vmatpush1.msra.mxu0 0.0
    %1298 = vmatprep.subr.mxu0 0.0
    %1299 = vmatpush1.msra.mxu0 0.0
    %1300 = vmatprep.subr.mxu0 0.0
    %1301 = vmatpush1.msra.mxu0 0.0
    %1302 = vmatprep.subr.mxu0 0.0
    %1303 = vmatpush1.msra.mxu0 0.0
    %1304 = vmatprep.subr.mxu0 0.0
    %1305 = vmatpush1.msra.mxu0 0.0
    %1306 = vmatprep.subr.mxu0 0.0
    %1307 = vmatpush1.msra.mxu0 0.0
    %1308 = vmatprep.subr.mxu0 0.0
    %1309 = vmatpush1.msra.mxu0 0.0
    %1310 = vmatprep.subr.mxu0 0.0
    %1311 = vmatpush1.msra.mxu0 0.0
    %1312 = vmatprep.subr.mxu0 0.0
    %1313 = vmatpush1.msra.mxu0 0.0
    %1314 = vmatprep.subr.mxu0 %v1280
    %1315 = vmatpush1.msra.mxu0 %v1277
    %1316 = vmatprep.subr.mxu0 %v1096
    %1317 = vmatpush1.msra.mxu0 %v1095
    %1318 = vmatprep.subr.mxu0 %v1092
    %1319 = vmatpush1.msra.mxu0 %v1091
    %1320 = vmatprep.subr.mxu0 0.0
    %1321 = vmatpush2.msra.mxu0 0.0
    %1322 = vmatprep.subr.mxu0 0.0
    %1323 = vmatpush2.msra.mxu0 0.0
    %1324 = vmatprep.subr.mxu0 0.0
    %1325 = vmatpush2.msra.mxu0 0.0
    %1326 = vmatprep.subr.mxu0 0.0
    %1327 = vmatpush2.msra.mxu0 0.0
    %1328 = vmatprep.subr.mxu0 0.0
    %1329 = vmatpush2.msra.mxu0 0.0
    %1330 = vmatprep.subr.mxu0 0.0
    %1331 = vmatpush2.msra.mxu0 0.0
    %1332 = vmatprep.subr.mxu0 0.0
    %1333 = vmatpush2.msra.mxu0 0.0
    %1334 = vmatprep.subr.mxu0 0.0
    %1335 = vmatpush2.msra.mxu0 0.0
    %1336 = vmatprep.subr.mxu0 0.0
    %1337 = vmatpush2.msra.mxu0 0.0
    %1338 = vmatprep.subr.mxu0 0.0
    %1339 = vmatpush2.msra.mxu0 0.0
    %1340 = vmatprep.subr.mxu0 0.0
    %1341 = vmatpush2.msra.mxu0 0.0
    %1342 = vmatprep.subr.mxu0 0.0
    %1343 = vmatpush2.msra.mxu0 0.0
    %1344 = vmatprep.subr.mxu0 0.0
    %1345 = vmatpush2.msra.mxu0 0.0
    %1346 = vmatprep.subr.mxu0 0.0
    %1347 = vmatpush2.msra.mxu0 0.0
    %1348 = vmatprep.subr.mxu0 0.0
    %1349 = vmatpush2.msra.mxu0 0.0
    %1350 = vmatprep.subr.mxu0 0.0
    %1351 = vmatpush2.msra.mxu0 0.0
    %1352 = vmatprep.mubr.f32.mxu0 0.0
    %1353 = vmatmul.mubr.f32.gmra.mxu0 %v1274
    %v1354 = vpop.f32.mrf.mxu0
    %v1355 = vadd.f32 %v1197, %v1354
    %v1356 = vpop.f32.mrf.mxu0
    %v1357 = vadd.f32 %v1199, %v1356
    %1358 = vdwg.mxu0
    %1359 = vmatprep.subr.mxu0 0.0
    %1360 = vmatpush1.msra.mxu0 0.0
    %1361 = vmatprep.subr.mxu0 0.0
    %1362 = vmatpush1.msra.mxu0 0.0
    %1363 = vmatprep.subr.mxu0 0.0
    %1364 = vmatpush1.msra.mxu0 0.0
    %1365 = vmatprep.subr.mxu0 0.0
    %1366 = vmatpush1.msra.mxu0 0.0
    %1367 = vmatprep.subr.mxu0 0.0
    %1368 = vmatpush1.msra.mxu0 0.0
    %1369 = vmatprep.subr.mxu0 0.0
    %1370 = vmatpush1.msra.mxu0 0.0
    %1371 = vmatprep.subr.mxu0 0.0
    %1372 = vmatpush1.msra.mxu0 0.0
    %1373 = vmatprep.subr.mxu0 0.0
    %1374 = vmatpush1.msra.mxu0 0.0
    %1375 = vmatprep.subr.mxu0 0.0
    %1376 = vmatpush1.msra.mxu0 0.0
    %1377 = vmatprep.subr.mxu0 0.0
    %1378 = vmatpush1.msra.mxu0 0.0
    %1379 = vmatprep.subr.mxu0 0.0
    %1380 = vmatpush1.msra.mxu0 0.0
    %1381 = vmatprep.subr.mxu0 0.0
    %1382 = vmatpush1.msra.mxu0 0.0
    %1383 = vmatprep.subr.mxu0 0.0
    %1384 = vmatpush1.msra.mxu0 0.0
    %1385 = vmatprep.subr.mxu0 %v1286
    %1386 = vmatpush1.msra.mxu0 %v1283
    %1387 = vmatprep.subr.mxu0 %v1098
    %1388 = vmatpush1.msra.mxu0 %v1097
    %1389 = vmatprep.subr.mxu0 %v1094
    %1390 = vmatpush1.msra.mxu0 %v1093
    %1391 = vmatprep.subr.mxu0 0.0
    %1392 = vmatpush2.msra.mxu0 0.0
    %1393 = vmatprep.subr.mxu0 0.0
    %1394 = vmatpush2.msra.mxu0 0.0
    %1395 = vmatprep.subr.mxu0 0.0
    %1396 = vmatpush2.msra.mxu0 0.0
    %1397 = vmatprep.subr.mxu0 0.0
    %1398 = vmatpush2.msra.mxu0 0.0
    %1399 = vmatprep.subr.mxu0 0.0
    %1400 = vmatpush2.msra.mxu0 0.0
    %1401 = vmatprep.subr.mxu0 0.0
    %1402 = vmatpush2.msra.mxu0 0.0
    %1403 = vmatprep.subr.mxu0 0.0
    %1404 = vmatpush2.msra.mxu0 0.0
    %1405 = vmatprep.subr.mxu0 0.0
    %1406 = vmatpush2.msra.mxu0 0.0
    %1407 = vmatprep.subr.mxu0 0.0
    %1408 = vmatpush2.msra.mxu0 0.0
    %1409 = vmatprep.subr.mxu0 0.0
    %1410 = vmatpush2.msra.mxu0 0.0
    %1411 = vmatprep.subr.mxu0 0.0
    %1412 = vmatpush2.msra.mxu0 0.0
    %1413 = vmatprep.subr.mxu0 0.0
    %1414 = vmatpush2.msra.mxu0 0.0
    %1415 = vmatprep.subr.mxu0 0.0
    %1416 = vmatpush2.msra.mxu0 0.0
    %1417 = vmatprep.subr.mxu0 0.0
    %1418 = vmatpush2.msra.mxu0 0.0
    %1419 = vmatprep.subr.mxu0 0.0
    %1420 = vmatpush2.msra.mxu0 0.0
    %1421 = vmatprep.subr.mxu0 0.0
    %1422 = vmatpush2.msra.mxu0 0.0
    %1423 = vmatprep.mubr.f32.mxu0 0.0
    %1424 = vmatmul.mubr.f32.gmra.mxu0 %v1274
    %v1425 = vpop.f32.mrf.mxu0
    %v1426 = vadd.f32 %v1268, %v1425
    %v1427 = vpop.f32.mrf.mxu0
    %v1428 = vadd.f32 %v1270, %v1427
    %1429 = vdwg.mxu0
    %v1430 = vadd.f32 %v1355, %v294
    %v1431 = vadd.f32 %v1357, %v298
    %v1432 = vadd.f32 %v1426, %v302
    %v1433 = vadd.f32 %v1428, %v306
    %v1434 = vxor.u32 %v1430, 2147483648
    %v1435 = vmul.f32 %v1434, 1.442695
    %v1436 = vpow.pop %v1435
    %v1437 = vadd.f32 %v1436, 1.0
    %v1438 = vrcp.pop %v1437
    %v1439 = vmul.f32 1.0, %v1438
    %v1440 = vxor.u32 %v1431, 2147483648
    %v1441 = vmul.f32 %v1440, 1.442695
    %v1442 = vpow.pop %v1441
    %v1443 = vadd.f32 %v1442, 1.0
    %v1444 = vrcp.pop %v1443
    %v1445 = vmul.f32 1.0, %v1444
    %v1446 = vtanh.pop %v1432
    %v1447 = vxor.u32 %v1433, 2147483648
    %v1448 = vmul.f32 %v1447, 1.442695
    %v1449 = vpow.pop %v1448
    %v1450 = vadd.f32 %v1449, 1.0
    %v1451 = vrcp.pop %v1450
    %v1452 = vmul.f32 1.0, %v1451
    %v1453 = vmul.f32 %v1445, %v874
    %v1454 = vmul.f32 %v1439, %v1446
    %v1455 = vadd.f32 %v1453, %v1454
    %v1456 = vtanh.pop %v1455
    %v1457 = vmul.f32 %v1452, %v1456
    %1458 = vst [vmem:[#allocation3 + $0x2] sm:$0x3] %v1457
    %v1459 = vld [vmem:[#allocation2] sm:$0x30]
    %v1460 = vld [vmem:[#allocation2 + $0x8] sm:$0x30]
    %v1461 = vld [vmem:[#allocation2 + $0x10] sm:$0x30]
    %v1462 = vld [vmem:[#allocation2 + $0x18] sm:$0x30]
    %v1463 = vld [vmem:[%s3] sm:$0xff]
    %v1464 = vld [vmem:[%s3 + $0x8] sm:$0xff]
    %v1465 = vld [vmem:[%s3 + $0x10] sm:$0xff]
    %v1466 = vld [vmem:[%s3 + $0x18] sm:$0xff]
    %v1467 = vld [vmem:[%s3 + $0x20] sm:$0xff]
    %v1468 = vld [vmem:[%s3 + $0x28] sm:$0xff]
    %v1469 = vld [vmem:[%s3 + $0x30] sm:$0xff]
    %v1470 = vld [vmem:[%s3 + $0x38] sm:$0xff]
    %v1471 = vld [vmem:[%s3 + $0x40] sm:$0xf]
    %v1472 = vld [vmem:[%s3 + $0x48] sm:$0xf]
    %v1473 = vld [vmem:[%s3 + $0x50] sm:$0xf]
    %v1474 = vld [vmem:[%s3 + $0x58] sm:$0xf]
    %v1476 = vsel %vm331, %v1471, 0
    %v1479 = vsel %vm331, %v1472, 0
    %v1482 = vsel %vm331, %v1473, 0
    %v1485 = vsel %vm331, %v1474, 0
    %1487 = vmatprep.subr.mxu0 0.0
    %1488 = vmatpush1.msra.mxu0 0.0
    %1489 = vmatprep.subr.mxu0 0.0
    %1490 = vmatpush1.msra.mxu0 0.0
    %1491 = vmatprep.subr.mxu0 0.0
    %1492 = vmatpush1.msra.mxu0 0.0
    %1493 = vmatprep.subr.mxu0 0.0
    %1494 = vmatpush1.msra.mxu0 0.0
    %1495 = vmatprep.subr.mxu0 0.0
    %1496 = vmatpush1.msra.mxu0 0.0
    %1497 = vmatprep.subr.mxu0 0.0
    %1498 = vmatpush1.msra.mxu0 0.0
    %1499 = vmatprep.subr.mxu0 0.0
    %1500 = vmatpush1.msra.mxu0 0.0
    %1501 = vmatprep.subr.mxu0 0.0
    %1502 = vmatpush1.msra.mxu0 0.0
    %1503 = vmatprep.subr.mxu0 0.0
    %1504 = vmatpush1.msra.mxu0 0.0
    %1505 = vmatprep.subr.mxu0 0.0
    %1506 = vmatpush1.msra.mxu0 0.0
    %1507 = vmatprep.subr.mxu0 0.0
    %1508 = vmatpush1.msra.mxu0 0.0
    %1509 = vmatprep.subr.mxu0 0.0
    %1510 = vmatpush1.msra.mxu0 0.0
    %1511 = vmatprep.subr.mxu0 0.0
    %1512 = vmatpush1.msra.mxu0 0.0
    %1513 = vmatprep.subr.mxu0 %v1479
    %1514 = vmatpush1.msra.mxu0 %v1476
    %1515 = vmatprep.subr.mxu0 %v1468
    %1516 = vmatpush1.msra.mxu0 %v1467
    %1517 = vmatprep.subr.mxu0 %v1464
    %1518 = vmatpush1.msra.mxu0 %v1463
    %1519 = vmatprep.subr.mxu0 0.0
    %1520 = vmatpush2.msra.mxu0 0.0
    %1521 = vmatprep.subr.mxu0 0.0
    %1522 = vmatpush2.msra.mxu0 0.0
    %1523 = vmatprep.subr.mxu0 0.0
    %1524 = vmatpush2.msra.mxu0 0.0
    %1525 = vmatprep.subr.mxu0 0.0
    %1526 = vmatpush2.msra.mxu0 0.0
    %1527 = vmatprep.subr.mxu0 0.0
    %1528 = vmatpush2.msra.mxu0 0.0
    %1529 = vmatprep.subr.mxu0 0.0
    %1530 = vmatpush2.msra.mxu0 0.0
    %1531 = vmatprep.subr.mxu0 0.0
    %1532 = vmatpush2.msra.mxu0 0.0
    %1533 = vmatprep.subr.mxu0 0.0
    %1534 = vmatpush2.msra.mxu0 0.0
    %1535 = vmatprep.subr.mxu0 0.0
    %1536 = vmatpush2.msra.mxu0 0.0
    %1537 = vmatprep.subr.mxu0 0.0
    %1538 = vmatpush2.msra.mxu0 0.0
    %1539 = vmatprep.subr.mxu0 0.0
    %1540 = vmatpush2.msra.mxu0 0.0
    %1541 = vmatprep.subr.mxu0 0.0
    %1542 = vmatpush2.msra.mxu0 0.0
    %1543 = vmatprep.subr.mxu0 0.0
    %1544 = vmatpush2.msra.mxu0 0.0
    %1545 = vmatprep.subr.mxu0 0.0
    %1546 = vmatpush2.msra.mxu0 0.0
    %1547 = vmatprep.subr.mxu0 0.0
    %1548 = vmatpush2.msra.mxu0 0.0
    %1549 = vmatprep.subr.mxu0 0.0
    %1550 = vmatpush2.msra.mxu0 0.0
    %1551 = vmatprep.mubr.f32.mxu0 0.0
    %1552 = vmatmul.mubr.f32.gmra.mxu0 %v1274
    %v1553 = vpop.f32.mrf.mxu0
    %v1554 = vadd.f32 0.0, %v1553
    %v1555 = vpop.f32.mrf.mxu0
    %v1556 = vadd.f32 0.0, %v1555
    %1557 = vdwg.mxu0
    %1558 = vmatprep.subr.mxu0 0.0
    %1559 = vmatpush1.msra.mxu0 0.0
    %1560 = vmatprep.subr.mxu0 0.0
    %1561 = vmatpush1.msra.mxu0 0.0
    %1562 = vmatprep.subr.mxu0 0.0
    %1563 = vmatpush1.msra.mxu0 0.0
    %1564 = vmatprep.subr.mxu0 0.0
    %1565 = vmatpush1.msra.mxu0 0.0
    %1566 = vmatprep.subr.mxu0 0.0
    %1567 = vmatpush1.msra.mxu0 0.0
    %1568 = vmatprep.subr.mxu0 0.0
    %1569 = vmatpush1.msra.mxu0 0.0
    %1570 = vmatprep.subr.mxu0 0.0
    %1571 = vmatpush1.msra.mxu0 0.0
    %1572 = vmatprep.subr.mxu0 0.0
    %1573 = vmatpush1.msra.mxu0 0.0
    %1574 = vmatprep.subr.mxu0 0.0
    %1575 = vmatpush1.msra.mxu0 0.0
    %1576 = vmatprep.subr.mxu0 0.0
    %1577 = vmatpush1.msra.mxu0 0.0
    %1578 = vmatprep.subr.mxu0 0.0
    %1579 = vmatpush1.msra.mxu0 0.0
    %1580 = vmatprep.subr.mxu0 0.0
    %1581 = vmatpush1.msra.mxu0 0.0
    %1582 = vmatprep.subr.mxu0 0.0
    %1583 = vmatpush1.msra.mxu0 0.0
    %1584 = vmatprep.subr.mxu0 %v1485
    %1585 = vmatpush1.msra.mxu0 %v1482
    %1586 = vmatprep.subr.mxu0 %v1470
    %1587 = vmatpush1.msra.mxu0 %v1469
    %1588 = vmatprep.subr.mxu0 %v1466
    %1589 = vmatpush1.msra.mxu0 %v1465
    %1590 = vmatprep.subr.mxu0 0.0
    %1591 = vmatpush2.msra.mxu0 0.0
    %1592 = vmatprep.subr.mxu0 0.0
    %1593 = vmatpush2.msra.mxu0 0.0
    %1594 = vmatprep.subr.mxu0 0.0
    %1595 = vmatpush2.msra.mxu0 0.0
    %1596 = vmatprep.subr.mxu0 0.0
    %1597 = vmatpush2.msra.mxu0 0.0
    %1598 = vmatprep.subr.mxu0 0.0
    %1599 = vmatpush2.msra.mxu0 0.0
    %1600 = vmatprep.subr.mxu0 0.0
    %1601 = vmatpush2.msra.mxu0 0.0
    %1602 = vmatprep.subr.mxu0 0.0
    %1603 = vmatpush2.msra.mxu0 0.0
    %1604 = vmatprep.subr.mxu0 0.0
    %1605 = vmatpush2.msra.mxu0 0.0
    %1606 = vmatprep.subr.mxu0 0.0
    %1607 = vmatpush2.msra.mxu0 0.0
    %1608 = vmatprep.subr.mxu0 0.0
    %1609 = vmatpush2.msra.mxu0 0.0
    %1610 = vmatprep.subr.mxu0 0.0
    %1611 = vmatpush2.msra.mxu0 0.0
    %1612 = vmatprep.subr.mxu0 0.0
    %1613 = vmatpush2.msra.mxu0 0.0
    %1614 = vmatprep.subr.mxu0 0.0
    %1615 = vmatpush2.msra.mxu0 0.0
    %1616 = vmatprep.subr.mxu0 0.0
    %1617 = vmatpush2.msra.mxu0 0.0
    %1618 = vmatprep.subr.mxu0 0.0
    %1619 = vmatpush2.msra.mxu0 0.0
    %1620 = vmatprep.subr.mxu0 0.0
    %1621 = vmatpush2.msra.mxu0 0.0
    %1622 = vmatprep.mubr.f32.mxu0 0.0
    %1623 = vmatmul.mubr.f32.gmra.mxu0 %v1274
    %v1624 = vpop.f32.mrf.mxu0
    %v1625 = vadd.f32 0.0, %v1624
    %v1626 = vpop.f32.mrf.mxu0
    %v1627 = vadd.f32 0.0, %v1626
    %1628 = vdwg.mxu0
    %v1633 = vrot.slane %v1554, 4
    %v1634 = vrot.slane %v1556, 4
    %v1635 = vrot.slane %v1625, 4
    %v1636 = vrot.slane %v1627, 4
    %v1641 = vadd.f32 %v1459, %v1633
    %v1642 = vadd.f32 %v1460, %v1634
    %v1643 = vadd.f32 %v1461, %v1635
    %v1644 = vadd.f32 %v1462, %v1636
    %v1645 = vxor.u32 %v1641, 2147483648
    %v1646 = vmul.f32 %v1645, 1.442695
    %v1647 = vpow.pop %v1646
    %v1648 = vadd.f32 %v1647, 1.0
    %v1649 = vrcp.pop %v1648
    %v1650 = vmul.f32 1.0, %v1649
    %v1651 = vxor.u32 %v1642, 2147483648
    %v1652 = vmul.f32 %v1651, 1.442695
    %v1653 = vpow.pop %v1652
    %v1654 = vadd.f32 %v1653, 1.0
    %v1655 = vrcp.pop %v1654
    %v1656 = vmul.f32 1.0, %v1655
    %v1657 = vtanh.pop %v1643
    %v1658 = vxor.u32 %v1644, 2147483648
    %v1659 = vmul.f32 %v1658, 1.442695
    %v1660 = vpow.pop %v1659
    %v1661 = vadd.f32 %v1660, 1.0
    %v1662 = vrcp.pop %v1661
    %v1663 = vmul.f32 1.0, %v1662
    %v1665 = vrot.slane %v1088, 6
    %v1667 = vmul.f32 %v1656, %v1665
    %v1668 = vmul.f32 %v1650, %v1657
    %v1669 = vadd.f32 %v1667, %v1668
    %v1670 = vtanh.pop %v1669
    %v1671 = vmul.f32 %v1663, %v1670
    %v1672 = vld [vmem:[#allocation7] sm:$0xff]
    %v1673 = vld [vmem:[#allocation7 + $0x8] sm:$0xff]
    %v1674 = vld [vmem:[#allocation7 + $0x10] sm:$0xff]
    %v1675 = vld [vmem:[#allocation7 + $0x18] sm:$0xff]
    %v1676 = vld [vmem:[#allocation7 + $0x20] sm:$0xff]
    %v1677 = vld [vmem:[#allocation7 + $0x28] sm:$0xff]
    %v1678 = vld [vmem:[#allocation7 + $0x30] sm:$0xff]
    %v1679 = vld [vmem:[#allocation7 + $0x38] sm:$0xff]
    %v1680 = vld [vmem:[#allocation7 + $0x40] sm:$0xf]
    %v1681 = vld [vmem:[#allocation7 + $0x48] sm:$0xf]
    %v1682 = vld [vmem:[#allocation7 + $0x50] sm:$0xf]
    %v1683 = vld [vmem:[#allocation7 + $0x58] sm:$0xf]
    %v1684 = vld [vmem:[#allocation9] sm:$0xff]
    %v1685 = vld [vmem:[#allocation9 + $0x8] sm:$0xff]
    %v1686 = vld [vmem:[#allocation9 + $0x10] sm:$0xff]
    %v1687 = vld [vmem:[#allocation9 + $0x18] sm:$0xff]
    %v1688 = vld [vmem:[#allocation9 + $0x20] sm:$0xff]
    %v1689 = vld [vmem:[#allocation9 + $0x28] sm:$0xff]
    %v1690 = vld [vmem:[#allocation9 + $0x30] sm:$0xff]
    %v1691 = vld [vmem:[#allocation9 + $0x38] sm:$0xff]
    %v1692 = vld [vmem:[#allocation9 + $0x40] sm:$0xf]
    %v1693 = vld [vmem:[#allocation9 + $0x48] sm:$0xf]
    %v1694 = vld [vmem:[#allocation9 + $0x50] sm:$0xf]
    %v1695 = vld [vmem:[#allocation9 + $0x58] sm:$0xf]
    %v1697 = vsel %vm327, %v1457, 0
    %v1700 = vsel %vm331, %v1692, 0
    %v1703 = vsel %vm331, %v1693, 0
    %v1706 = vsel %vm331, %v1694, 0
    %v1709 = vsel %vm331, %v1695, 0
    %1711 = vmatprep.subr.mxu0 0.0
    %1712 = vmatpush1.msra.mxu0 0.0
    %1713 = vmatprep.subr.mxu0 0.0
    %1714 = vmatpush1.msra.mxu0 0.0
    %1715 = vmatprep.subr.mxu0 0.0
    %1716 = vmatpush1.msra.mxu0 0.0
    %1717 = vmatprep.subr.mxu0 0.0
    %1718 = vmatpush1.msra.mxu0 0.0
    %1719 = vmatprep.subr.mxu0 0.0
    %1720 = vmatpush1.msra.mxu0 0.0
    %1721 = vmatprep.subr.mxu0 0.0
    %1722 = vmatpush1.msra.mxu0 0.0
    %1723 = vmatprep.subr.mxu0 0.0
    %1724 = vmatpush1.msra.mxu0 0.0
    %1725 = vmatprep.subr.mxu0 0.0
    %1726 = vmatpush1.msra.mxu0 0.0
    %1727 = vmatprep.subr.mxu0 0.0
    %1728 = vmatpush1.msra.mxu0 0.0
    %1729 = vmatprep.subr.mxu0 0.0
    %1730 = vmatpush1.msra.mxu0 0.0
    %1731 = vmatprep.subr.mxu0 0.0
    %1732 = vmatpush1.msra.mxu0 0.0
    %1733 = vmatprep.subr.mxu0 0.0
    %1734 = vmatpush1.msra.mxu0 0.0
    %1735 = vmatprep.subr.mxu0 0.0
    %1736 = vmatpush1.msra.mxu0 0.0
    %1737 = vmatprep.subr.mxu0 %v1703
    %1738 = vmatpush1.msra.mxu0 %v1700
    %1739 = vmatprep.subr.mxu0 %v1689
    %1740 = vmatpush1.msra.mxu0 %v1688
    %1741 = vmatprep.subr.mxu0 %v1685
    %1742 = vmatpush1.msra.mxu0 %v1684
    %1743 = vmatprep.subr.mxu0 0.0
    %1744 = vmatpush2.msra.mxu0 0.0
    %1745 = vmatprep.subr.mxu0 0.0
    %1746 = vmatpush2.msra.mxu0 0.0
    %1747 = vmatprep.subr.mxu0 0.0
    %1748 = vmatpush2.msra.mxu0 0.0
    %1749 = vmatprep.subr.mxu0 0.0
    %1750 = vmatpush2.msra.mxu0 0.0
    %1751 = vmatprep.subr.mxu0 0.0
    %1752 = vmatpush2.msra.mxu0 0.0
    %1753 = vmatprep.subr.mxu0 0.0
    %1754 = vmatpush2.msra.mxu0 0.0
    %1755 = vmatprep.subr.mxu0 0.0
    %1756 = vmatpush2.msra.mxu0 0.0
    %1757 = vmatprep.subr.mxu0 0.0
    %1758 = vmatpush2.msra.mxu0 0.0
    %1759 = vmatprep.subr.mxu0 0.0
    %1760 = vmatpush2.msra.mxu0 0.0
    %1761 = vmatprep.subr.mxu0 0.0
    %1762 = vmatpush2.msra.mxu0 0.0
    %1763 = vmatprep.subr.mxu0 0.0
    %1764 = vmatpush2.msra.mxu0 0.0
    %1765 = vmatprep.subr.mxu0 0.0
    %1766 = vmatpush2.msra.mxu0 0.0
    %1767 = vmatprep.subr.mxu0 0.0
    %1768 = vmatpush2.msra.mxu0 0.0
    %1769 = vmatprep.subr.mxu0 0.0
    %1770 = vmatpush2.msra.mxu0 0.0
    %1771 = vmatprep.subr.mxu0 0.0
    %1772 = vmatpush2.msra.mxu0 0.0
    %1773 = vmatprep.subr.mxu0 0.0
    %1774 = vmatpush2.msra.mxu0 0.0
    %1775 = vmatprep.mubr.f32.mxu0 0.0
    %1776 = vmatmul.mubr.f32.gmra.mxu0 %v1697
    %v1777 = vpop.f32.mrf.mxu0
    %v1778 = vadd.f32 0.0, %v1777
    %v1779 = vpop.f32.mrf.mxu0
    %v1780 = vadd.f32 0.0, %v1779
    %1781 = vdwg.mxu0
    %1782 = vmatprep.subr.mxu0 0.0
    %1783 = vmatpush1.msra.mxu0 0.0
    %1784 = vmatprep.subr.mxu0 0.0
    %1785 = vmatpush1.msra.mxu0 0.0
    %1786 = vmatprep.subr.mxu0 0.0
    %1787 = vmatpush1.msra.mxu0 0.0
    %1788 = vmatprep.subr.mxu0 0.0
    %1789 = vmatpush1.msra.mxu0 0.0
    %1790 = vmatprep.subr.mxu0 0.0
    %1791 = vmatpush1.msra.mxu0 0.0
    %1792 = vmatprep.subr.mxu0 0.0
    %1793 = vmatpush1.msra.mxu0 0.0
    %1794 = vmatprep.subr.mxu0 0.0
    %1795 = vmatpush1.msra.mxu0 0.0
    %1796 = vmatprep.subr.mxu0 0.0
    %1797 = vmatpush1.msra.mxu0 0.0
    %1798 = vmatprep.subr.mxu0 0.0
    %1799 = vmatpush1.msra.mxu0 0.0
    %1800 = vmatprep.subr.mxu0 0.0
    %1801 = vmatpush1.msra.mxu0 0.0
    %1802 = vmatprep.subr.mxu0 0.0
    %1803 = vmatpush1.msra.mxu0 0.0
    %1804 = vmatprep.subr.mxu0 0.0
    %1805 = vmatpush1.msra.mxu0 0.0
    %1806 = vmatprep.subr.mxu0 0.0
    %1807 = vmatpush1.msra.mxu0 0.0
    %1808 = vmatprep.subr.mxu0 %v1709
    %1809 = vmatpush1.msra.mxu0 %v1706
    %1810 = vmatprep.subr.mxu0 %v1691
    %1811 = vmatpush1.msra.mxu0 %v1690
    %1812 = vmatprep.subr.mxu0 %v1687
    %1813 = vmatpush1.msra.mxu0 %v1686
    %1814 = vmatprep.subr.mxu0 0.0
    %1815 = vmatpush2.msra.mxu0 0.0
    %1816 = vmatprep.subr.mxu0 0.0
    %1817 = vmatpush2.msra.mxu0 0.0
    %1818 = vmatprep.subr.mxu0 0.0
    %1819 = vmatpush2.msra.mxu0 0.0
    %1820 = vmatprep.subr.mxu0 0.0
    %1821 = vmatpush2.msra.mxu0 0.0
    %1822 = vmatprep.subr.mxu0 0.0
    %1823 = vmatpush2.msra.mxu0 0.0
    %1824 = vmatprep.subr.mxu0 0.0
    %1825 = vmatpush2.msra.mxu0 0.0
    %1826 = vmatprep.subr.mxu0 0.0
    %1827 = vmatpush2.msra.mxu0 0.0
    %1828 = vmatprep.subr.mxu0 0.0
    %1829 = vmatpush2.msra.mxu0 0.0
    %1830 = vmatprep.subr.mxu0 0.0
    %1831 = vmatpush2.msra.mxu0 0.0
    %1832 = vmatprep.subr.mxu0 0.0
    %1833 = vmatpush2.msra.mxu0 0.0
    %1834 = vmatprep.subr.mxu0 0.0
    %1835 = vmatpush2.msra.mxu0 0.0
    %1836 = vmatprep.subr.mxu0 0.0
    %1837 = vmatpush2.msra.mxu0 0.0
    %1838 = vmatprep.subr.mxu0 0.0
    %1839 = vmatpush2.msra.mxu0 0.0
    %1840 = vmatprep.subr.mxu0 0.0
    %1841 = vmatpush2.msra.mxu0 0.0
    %1842 = vmatprep.subr.mxu0 0.0
    %1843 = vmatpush2.msra.mxu0 0.0
    %1844 = vmatprep.subr.mxu0 0.0
    %1845 = vmatpush2.msra.mxu0 0.0
    %1846 = vmatprep.mubr.f32.mxu0 0.0
    %1847 = vmatmul.mubr.f32.gmra.mxu0 %v1697
    %v1848 = vpop.f32.mrf.mxu0
    %v1849 = vadd.f32 0.0, %v1848
    %v1850 = vpop.f32.mrf.mxu0
    %v1851 = vadd.f32 0.0, %v1850
    %1852 = vdwg.mxu0
    %v1854 = vrot.slane %v1671, 4
    %v1855 = vsel %vm327, %v1854, 0
    %v1858 = vsel %vm331, %v1680, 0
    %v1861 = vsel %vm331, %v1681, 0
    %v1864 = vsel %vm331, %v1682, 0
    %v1867 = vsel %vm331, %v1683, 0
    %1869 = vmatprep.subr.mxu0 0.0
    %1870 = vmatpush1.msra.mxu0 0.0
    %1871 = vmatprep.subr.mxu0 0.0
    %1872 = vmatpush1.msra.mxu0 0.0
    %1873 = vmatprep.subr.mxu0 0.0
    %1874 = vmatpush1.msra.mxu0 0.0
    %1875 = vmatprep.subr.mxu0 0.0
    %1876 = vmatpush1.msra.mxu0 0.0
    %1877 = vmatprep.subr.mxu0 0.0
    %1878 = vmatpush1.msra.mxu0 0.0
    %1879 = vmatprep.subr.mxu0 0.0
    %1880 = vmatpush1.msra.mxu0 0.0
    %1881 = vmatprep.subr.mxu0 0.0
    %1882 = vmatpush1.msra.mxu0 0.0
    %1883 = vmatprep.subr.mxu0 0.0
    %1884 = vmatpush1.msra.mxu0 0.0
    %1885 = vmatprep.subr.mxu0 0.0
    %1886 = vmatpush1.msra.mxu0 0.0
    %1887 = vmatprep.subr.mxu0 0.0
    %1888 = vmatpush1.msra.mxu0 0.0
    %1889 = vmatprep.subr.mxu0 0.0
    %1890 = vmatpush1.msra.mxu0 0.0
    %1891 = vmatprep.subr.mxu0 0.0
    %1892 = vmatpush1.msra.mxu0 0.0
    %1893 = vmatprep.subr.mxu0 0.0
    %1894 = vmatpush1.msra.mxu0 0.0
    %1895 = vmatprep.subr.mxu0 %v1861
    %1896 = vmatpush1.msra.mxu0 %v1858
    %1897 = vmatprep.subr.mxu0 %v1677
    %1898 = vmatpush1.msra.mxu0 %v1676
    %1899 = vmatprep.subr.mxu0 %v1673
    %1900 = vmatpush1.msra.mxu0 %v1672
    %1901 = vmatprep.subr.mxu0 0.0
    %1902 = vmatpush2.msra.mxu0 0.0
    %1903 = vmatprep.subr.mxu0 0.0
    %1904 = vmatpush2.msra.mxu0 0.0
    %1905 = vmatprep.subr.mxu0 0.0
    %1906 = vmatpush2.msra.mxu0 0.0
    %1907 = vmatprep.subr.mxu0 0.0
    %1908 = vmatpush2.msra.mxu0 0.0
    %1909 = vmatprep.subr.mxu0 0.0
    %1910 = vmatpush2.msra.mxu0 0.0
    %1911 = vmatprep.subr.mxu0 0.0
    %1912 = vmatpush2.msra.mxu0 0.0
    %1913 = vmatprep.subr.mxu0 0.0
    %1914 = vmatpush2.msra.mxu0 0.0
    %1915 = vmatprep.subr.mxu0 0.0
    %1916 = vmatpush2.msra.mxu0 0.0
    %1917 = vmatprep.subr.mxu0 0.0
    %1918 = vmatpush2.msra.mxu0 0.0
    %1919 = vmatprep.subr.mxu0 0.0
    %1920 = vmatpush2.msra.mxu0 0.0
    %1921 = vmatprep.subr.mxu0 0.0
    %1922 = vmatpush2.msra.mxu0 0.0
    %1923 = vmatprep.subr.mxu0 0.0
    %1924 = vmatpush2.msra.mxu0 0.0
    %1925 = vmatprep.subr.mxu0 0.0
    %1926 = vmatpush2.msra.mxu0 0.0
    %1927 = vmatprep.subr.mxu0 0.0
    %1928 = vmatpush2.msra.mxu0 0.0
    %1929 = vmatprep.subr.mxu0 0.0
    %1930 = vmatpush2.msra.mxu0 0.0
    %1931 = vmatprep.subr.mxu0 0.0
    %1932 = vmatpush2.msra.mxu0 0.0
    %1933 = vmatprep.mubr.f32.mxu0 0.0
    %1934 = vmatmul.mubr.f32.gmra.mxu0 %v1855
    %v1935 = vpop.f32.mrf.mxu0
    %v1936 = vadd.f32 %v1778, %v1935
    %v1937 = vpop.f32.mrf.mxu0
    %v1938 = vadd.f32 %v1780, %v1937
    %1939 = vdwg.mxu0
    %1940 = vmatprep.subr.mxu0 0.0
    %1941 = vmatpush1.msra.mxu0 0.0
    %1942 = vmatprep.subr.mxu0 0.0
    %1943 = vmatpush1.msra.mxu0 0.0
    %1944 = vmatprep.subr.mxu0 0.0
    %1945 = vmatpush1.msra.mxu0 0.0
    %1946 = vmatprep.subr.mxu0 0.0
    %1947 = vmatpush1.msra.mxu0 0.0
    %1948 = vmatprep.subr.mxu0 0.0
    %1949 = vmatpush1.msra.mxu0 0.0
    %1950 = vmatprep.subr.mxu0 0.0
    %1951 = vmatpush1.msra.mxu0 0.0
    %1952 = vmatprep.subr.mxu0 0.0
    %1953 = vmatpush1.msra.mxu0 0.0
    %1954 = vmatprep.subr.mxu0 0.0
    %1955 = vmatpush1.msra.mxu0 0.0
    %1956 = vmatprep.subr.mxu0 0.0
    %1957 = vmatpush1.msra.mxu0 0.0
    %1958 = vmatprep.subr.mxu0 0.0
    %1959 = vmatpush1.msra.mxu0 0.0
    %1960 = vmatprep.subr.mxu0 0.0
    %1961 = vmatpush1.msra.mxu0 0.0
    %1962 = vmatprep.subr.mxu0 0.0
    %1963 = vmatpush1.msra.mxu0 0.0
    %1964 = vmatprep.subr.mxu0 0.0
    %1965 = vmatpush1.msra.mxu0 0.0
    %1966 = vmatprep.subr.mxu0 %v1867
    %1967 = vmatpush1.msra.mxu0 %v1864
    %1968 = vmatprep.subr.mxu0 %v1679
    %1969 = vmatpush1.msra.mxu0 %v1678
    %1970 = vmatprep.subr.mxu0 %v1675
    %1971 = vmatpush1.msra.mxu0 %v1674
    %1972 = vmatprep.subr.mxu0 0.0
    %1973 = vmatpush2.msra.mxu0 0.0
    %1974 = vmatprep.subr.mxu0 0.0
    %1975 = vmatpush2.msra.mxu0 0.0
    %1976 = vmatprep.subr.mxu0 0.0
    %1977 = vmatpush2.msra.mxu0 0.0
    %1978 = vmatprep.subr.mxu0 0.0
    %1979 = vmatpush2.msra.mxu0 0.0
    %1980 = vmatprep.subr.mxu0 0.0
    %1981 = vmatpush2.msra.mxu0 0.0
    %1982 = vmatprep.subr.mxu0 0.0
    %1983 = vmatpush2.msra.mxu0 0.0
    %1984 = vmatprep.subr.mxu0 0.0
    %1985 = vmatpush2.msra.mxu0 0.0
    %1986 = vmatprep.subr.mxu0 0.0
    %1987 = vmatpush2.msra.mxu0 0.0
    %1988 = vmatprep.subr.mxu0 0.0
    %1989 = vmatpush2.msra.mxu0 0.0
    %1990 = vmatprep.subr.mxu0 0.0
    %1991 = vmatpush2.msra.mxu0 0.0
    %1992 = vmatprep.subr.mxu0 0.0
    %1993 = vmatpush2.msra.mxu0 0.0
    %1994 = vmatprep.subr.mxu0 0.0
    %1995 = vmatpush2.msra.mxu0 0.0
    %1996 = vmatprep.subr.mxu0 0.0
    %1997 = vmatpush2.msra.mxu0 0.0
    %1998 = vmatprep.subr.mxu0 0.0
    %1999 = vmatpush2.msra.mxu0 0.0
    %2000 = vmatprep.subr.mxu0 0.0
    %2001 = vmatpush2.msra.mxu0 0.0
    %2002 = vmatprep.subr.mxu0 0.0
    %2003 = vmatpush2.msra.mxu0 0.0
    %2004 = vmatprep.mubr.f32.mxu0 0.0
    %2005 = vmatmul.mubr.f32.gmra.mxu0 %v1855
    %v2006 = vpop.f32.mrf.mxu0
    %v2007 = vadd.f32 %v1849, %v2006
    %v2008 = vpop.f32.mrf.mxu0
    %v2009 = vadd.f32 %v1851, %v2008
    %2010 = vdwg.mxu0
    %v2011 = vadd.f32 %v1936, %v294
    %v2012 = vadd.f32 %v1938, %v298
    %v2013 = vadd.f32 %v2007, %v302
    %v2014 = vadd.f32 %v2009, %v306
    %v2015 = vxor.u32 %v2011, 2147483648
    %v2016 = vmul.f32 %v2015, 1.442695
    %v2017 = vpow.pop %v2016
    %v2018 = vadd.f32 %v2017, 1.0
    %v2019 = vrcp.pop %v2018
    %v2020 = vmul.f32 1.0, %v2019
    %v2021 = vxor.u32 %v2012, 2147483648
    %v2022 = vmul.f32 %v2021, 1.442695
    %v2023 = vpow.pop %v2022
    %v2024 = vadd.f32 %v2023, 1.0
    %v2025 = vrcp.pop %v2024
    %v2026 = vmul.f32 1.0, %v2025
    %v2027 = vtanh.pop %v2013
    %v2028 = vxor.u32 %v2014, 2147483648
    %v2029 = vmul.f32 %v2028, 1.442695
    %v2030 = vpow.pop %v2029
    %v2031 = vadd.f32 %v2030, 1.0
    %v2032 = vrcp.pop %v2031
    %v2033 = vmul.f32 1.0, %v2032
    %v2034 = vmul.f32 %v2026, %v1455
    %v2035 = vmul.f32 %v2020, %v2027
    %v2036 = vadd.f32 %v2034, %v2035
    %v2037 = vtanh.pop %v2036
    %v2038 = vmul.f32 %v2033, %v2037
    %2039 = vst [vmem:[#allocation3 + $0x4] sm:$0x3] %v2038
    %v2040 = vld [vmem:[#allocation2] sm:$0xc0]
    %v2041 = vld [vmem:[#allocation2 + $0x8] sm:$0xc0]
    %v2042 = vld [vmem:[#allocation2 + $0x10] sm:$0xc0]
    %v2043 = vld [vmem:[#allocation2 + $0x18] sm:$0xc0]
    %v2044 = vld [vmem:[%s3] sm:$0xff]
    %v2045 = vld [vmem:[%s3 + $0x8] sm:$0xff]
    %v2046 = vld [vmem:[%s3 + $0x10] sm:$0xff]
    %v2047 = vld [vmem:[%s3 + $0x18] sm:$0xff]
    %v2048 = vld [vmem:[%s3 + $0x20] sm:$0xff]
    %v2049 = vld [vmem:[%s3 + $0x28] sm:$0xff]
    %v2050 = vld [vmem:[%s3 + $0x30] sm:$0xff]
    %v2051 = vld [vmem:[%s3 + $0x38] sm:$0xff]
    %v2052 = vld [vmem:[%s3 + $0x40] sm:$0xf]
    %v2053 = vld [vmem:[%s3 + $0x48] sm:$0xf]
    %v2054 = vld [vmem:[%s3 + $0x50] sm:$0xf]
    %v2055 = vld [vmem:[%s3 + $0x58] sm:$0xf]
    %v2057 = vsel %vm331, %v2052, 0
    %v2060 = vsel %vm331, %v2053, 0
    %v2063 = vsel %vm331, %v2054, 0
    %v2066 = vsel %vm331, %v2055, 0
    %2068 = vmatprep.subr.mxu0 0.0
    %2069 = vmatpush1.msra.mxu0 0.0
    %2070 = vmatprep.subr.mxu0 0.0
    %2071 = vmatpush1.msra.mxu0 0.0
    %2072 = vmatprep.subr.mxu0 0.0
    %2073 = vmatpush1.msra.mxu0 0.0
    %2074 = vmatprep.subr.mxu0 0.0
    %2075 = vmatpush1.msra.mxu0 0.0
    %2076 = vmatprep.subr.mxu0 0.0
    %2077 = vmatpush1.msra.mxu0 0.0
    %2078 = vmatprep.subr.mxu0 0.0
    %2079 = vmatpush1.msra.mxu0 0.0
    %2080 = vmatprep.subr.mxu0 0.0
    %2081 = vmatpush1.msra.mxu0 0.0
    %2082 = vmatprep.subr.mxu0 0.0
    %2083 = vmatpush1.msra.mxu0 0.0
    %2084 = vmatprep.subr.mxu0 0.0
    %2085 = vmatpush1.msra.mxu0 0.0
    %2086 = vmatprep.subr.mxu0 0.0
    %2087 = vmatpush1.msra.mxu0 0.0
    %2088 = vmatprep.subr.mxu0 0.0
    %2089 = vmatpush1.msra.mxu0 0.0
    %2090 = vmatprep.subr.mxu0 0.0
    %2091 = vmatpush1.msra.mxu0 0.0
    %2092 = vmatprep.subr.mxu0 0.0
    %2093 = vmatpush1.msra.mxu0 0.0
    %2094 = vmatprep.subr.mxu0 %v2060
    %2095 = vmatpush1.msra.mxu0 %v2057
    %2096 = vmatprep.subr.mxu0 %v2049
    %2097 = vmatpush1.msra.mxu0 %v2048
    %2098 = vmatprep.subr.mxu0 %v2045
    %2099 = vmatpush1.msra.mxu0 %v2044
    %2100 = vmatprep.subr.mxu0 0.0
    %2101 = vmatpush2.msra.mxu0 0.0
    %2102 = vmatprep.subr.mxu0 0.0
    %2103 = vmatpush2.msra.mxu0 0.0
    %2104 = vmatprep.subr.mxu0 0.0
    %2105 = vmatpush2.msra.mxu0 0.0
    %2106 = vmatprep.subr.mxu0 0.0
    %2107 = vmatpush2.msra.mxu0 0.0
    %2108 = vmatprep.subr.mxu0 0.0
    %2109 = vmatpush2.msra.mxu0 0.0
    %2110 = vmatprep.subr.mxu0 0.0
    %2111 = vmatpush2.msra.mxu0 0.0
    %2112 = vmatprep.subr.mxu0 0.0
    %2113 = vmatpush2.msra.mxu0 0.0
    %2114 = vmatprep.subr.mxu0 0.0
    %2115 = vmatpush2.msra.mxu0 0.0
    %2116 = vmatprep.subr.mxu0 0.0
    %2117 = vmatpush2.msra.mxu0 0.0
    %2118 = vmatprep.subr.mxu0 0.0
    %2119 = vmatpush2.msra.mxu0 0.0
    %2120 = vmatprep.subr.mxu0 0.0
    %2121 = vmatpush2.msra.mxu0 0.0
    %2122 = vmatprep.subr.mxu0 0.0
    %2123 = vmatpush2.msra.mxu0 0.0
    %2124 = vmatprep.subr.mxu0 0.0
    %2125 = vmatpush2.msra.mxu0 0.0
    %2126 = vmatprep.subr.mxu0 0.0
    %2127 = vmatpush2.msra.mxu0 0.0
    %2128 = vmatprep.subr.mxu0 0.0
    %2129 = vmatpush2.msra.mxu0 0.0
    %2130 = vmatprep.subr.mxu0 0.0
    %2131 = vmatpush2.msra.mxu0 0.0
    %2132 = vmatprep.mubr.f32.mxu0 0.0
    %2133 = vmatmul.mubr.f32.gmra.mxu0 %v1855
    %v2134 = vpop.f32.mrf.mxu0
    %v2135 = vadd.f32 0.0, %v2134
    %v2136 = vpop.f32.mrf.mxu0
    %v2137 = vadd.f32 0.0, %v2136
    %2138 = vdwg.mxu0
    %2139 = vmatprep.subr.mxu0 0.0
    %2140 = vmatpush1.msra.mxu0 0.0
    %2141 = vmatprep.subr.mxu0 0.0
    %2142 = vmatpush1.msra.mxu0 0.0
    %2143 = vmatprep.subr.mxu0 0.0
    %2144 = vmatpush1.msra.mxu0 0.0
    %2145 = vmatprep.subr.mxu0 0.0
    %2146 = vmatpush1.msra.mxu0 0.0
    %2147 = vmatprep.subr.mxu0 0.0
    %2148 = vmatpush1.msra.mxu0 0.0
    %2149 = vmatprep.subr.mxu0 0.0
    %2150 = vmatpush1.msra.mxu0 0.0
    %2151 = vmatprep.subr.mxu0 0.0
    %2152 = vmatpush1.msra.mxu0 0.0
    %2153 = vmatprep.subr.mxu0 0.0
    %2154 = vmatpush1.msra.mxu0 0.0
    %2155 = vmatprep.subr.mxu0 0.0
    %2156 = vmatpush1.msra.mxu0 0.0
    %2157 = vmatprep.subr.mxu0 0.0
    %2158 = vmatpush1.msra.mxu0 0.0
    %2159 = vmatprep.subr.mxu0 0.0
    %2160 = vmatpush1.msra.mxu0 0.0
    %2161 = vmatprep.subr.mxu0 0.0
    %2162 = vmatpush1.msra.mxu0 0.0
    %2163 = vmatprep.subr.mxu0 0.0
    %2164 = vmatpush1.msra.mxu0 0.0
    %2165 = vmatprep.subr.mxu0 %v2066
    %2166 = vmatpush1.msra.mxu0 %v2063
    %2167 = vmatprep.subr.mxu0 %v2051
    %2168 = vmatpush1.msra.mxu0 %v2050
    %2169 = vmatprep.subr.mxu0 %v2047
    %2170 = vmatpush1.msra.mxu0 %v2046
    %2171 = vmatprep.subr.mxu0 0.0
    %2172 = vmatpush2.msra.mxu0 0.0
    %2173 = vmatprep.subr.mxu0 0.0
    %2174 = vmatpush2.msra.mxu0 0.0
    %2175 = vmatprep.subr.mxu0 0.0
    %2176 = vmatpush2.msra.mxu0 0.0
    %2177 = vmatprep.subr.mxu0 0.0
    %2178 = vmatpush2.msra.mxu0 0.0
    %2179 = vmatprep.subr.mxu0 0.0
    %2180 = vmatpush2.msra.mxu0 0.0
    %2181 = vmatprep.subr.mxu0 0.0
    %2182 = vmatpush2.msra.mxu0 0.0
    %2183 = vmatprep.subr.mxu0 0.0
    %2184 = vmatpush2.msra.mxu0 0.0
    %2185 = vmatprep.subr.mxu0 0.0
    %2186 = vmatpush2.msra.mxu0 0.0
    %2187 = vmatprep.subr.mxu0 0.0
    %2188 = vmatpush2.msra.mxu0 0.0
    %2189 = vmatprep.subr.mxu0 0.0
    %2190 = vmatpush2.msra.mxu0 0.0
    %2191 = vmatprep.subr.mxu0 0.0
    %2192 = vmatpush2.msra.mxu0 0.0
    %2193 = vmatprep.subr.mxu0 0.0
    %2194 = vmatpush2.msra.mxu0 0.0
    %2195 = vmatprep.subr.mxu0 0.0
    %2196 = vmatpush2.msra.mxu0 0.0
    %2197 = vmatprep.subr.mxu0 0.0
    %2198 = vmatpush2.msra.mxu0 0.0
    %2199 = vmatprep.subr.mxu0 0.0
    %2200 = vmatpush2.msra.mxu0 0.0
    %2201 = vmatprep.subr.mxu0 0.0
    %2202 = vmatpush2.msra.mxu0 0.0
    %2203 = vmatprep.mubr.f32.mxu0 0.0
    %2204 = vmatmul.mubr.f32.gmra.mxu0 %v1855
    %v2205 = vpop.f32.mrf.mxu0
    %v2206 = vadd.f32 0.0, %v2205
    %v2207 = vpop.f32.mrf.mxu0
    %v2208 = vadd.f32 0.0, %v2207
    %2209 = vdwg.mxu0
    %v2214 = vrot.slane %v2135, 2
    %v2215 = vrot.slane %v2137, 2
    %v2216 = vrot.slane %v2206, 2
    %v2217 = vrot.slane %v2208, 2
    %v2222 = vadd.f32 %v2040, %v2214
    %v2223 = vadd.f32 %v2041, %v2215
    %v2224 = vadd.f32 %v2042, %v2216
    %v2225 = vadd.f32 %v2043, %v2217
    %v2226 = vxor.u32 %v2222, 2147483648
    %v2227 = vmul.f32 %v2226, 1.442695
    %v2228 = vpow.pop %v2227
    %v2229 = vadd.f32 %v2228, 1.0
    %v2230 = vrcp.pop %v2229
    %v2231 = vmul.f32 1.0, %v2230
    %v2232 = vxor.u32 %v2223, 2147483648
    %v2233 = vmul.f32 %v2232, 1.442695
    %v2234 = vpow.pop %v2233
    %v2235 = vadd.f32 %v2234, 1.0
    %v2236 = vrcp.pop %v2235
    %v2237 = vmul.f32 1.0, %v2236
    %v2238 = vtanh.pop %v2224
    %v2239 = vxor.u32 %v2225, 2147483648
    %v2240 = vmul.f32 %v2239, 1.442695
    %v2241 = vpow.pop %v2240
    %v2242 = vadd.f32 %v2241, 1.0
    %v2243 = vrcp.pop %v2242
    %v2244 = vmul.f32 1.0, %v2243
    %v2246 = vrot.slane %v1669, 6
    %v2248 = vmul.f32 %v2237, %v2246
    %v2249 = vmul.f32 %v2231, %v2238
    %v2250 = vadd.f32 %v2248, %v2249
    %v2251 = vtanh.pop %v2250
    %v2252 = vmul.f32 %v2244, %v2251
    %v2253 = vld [vmem:[#allocation7] sm:$0xff]
    %v2254 = vld [vmem:[#allocation7 + $0x8] sm:$0xff]
    %v2255 = vld [vmem:[#allocation7 + $0x10] sm:$0xff]
    %v2256 = vld [vmem:[#allocation7 + $0x18] sm:$0xff]
    %v2257 = vld [vmem:[#allocation7 + $0x20] sm:$0xff]
    %v2258 = vld [vmem:[#allocation7 + $0x28] sm:$0xff]
    %v2259 = vld [vmem:[#allocation7 + $0x30] sm:$0xff]
    %v2260 = vld [vmem:[#allocation7 + $0x38] sm:$0xff]
    %v2261 = vld [vmem:[#allocation7 + $0x40] sm:$0xf]
    %v2262 = vld [vmem:[#allocation7 + $0x48] sm:$0xf]
    %v2263 = vld [vmem:[#allocation7 + $0x50] sm:$0xf]
    %v2264 = vld [vmem:[#allocation7 + $0x58] sm:$0xf]
    %v2265 = vld [vmem:[#allocation9] sm:$0xff]
    %v2266 = vld [vmem:[#allocation9 + $0x8] sm:$0xff]
    %v2267 = vld [vmem:[#allocation9 + $0x10] sm:$0xff]
    %v2268 = vld [vmem:[#allocation9 + $0x18] sm:$0xff]
    %v2269 = vld [vmem:[#allocation9 + $0x20] sm:$0xff]
    %v2270 = vld [vmem:[#allocation9 + $0x28] sm:$0xff]
    %v2271 = vld [vmem:[#allocation9 + $0x30] sm:$0xff]
    %v2272 = vld [vmem:[#allocation9 + $0x38] sm:$0xff]
    %v2273 = vld [vmem:[#allocation9 + $0x40] sm:$0xf]
    %v2274 = vld [vmem:[#allocation9 + $0x48] sm:$0xf]
    %v2275 = vld [vmem:[#allocation9 + $0x50] sm:$0xf]
    %v2276 = vld [vmem:[#allocation9 + $0x58] sm:$0xf]
    %v2278 = vsel %vm327, %v2038, 0
    %v2281 = vsel %vm331, %v2273, 0
    %v2284 = vsel %vm331, %v2274, 0
    %v2287 = vsel %vm331, %v2275, 0
    %v2290 = vsel %vm331, %v2276, 0
    %2292 = vmatprep.subr.mxu0 0.0
    %2293 = vmatpush1.msra.mxu0 0.0
    %2294 = vmatprep.subr.mxu0 0.0
    %2295 = vmatpush1.msra.mxu0 0.0
    %2296 = vmatprep.subr.mxu0 0.0
    %2297 = vmatpush1.msra.mxu0 0.0
    %2298 = vmatprep.subr.mxu0 0.0
    %2299 = vmatpush1.msra.mxu0 0.0
    %2300 = vmatprep.subr.mxu0 0.0
    %2301 = vmatpush1.msra.mxu0 0.0
    %2302 = vmatprep.subr.mxu0 0.0
    %2303 = vmatpush1.msra.mxu0 0.0
    %2304 = vmatprep.subr.mxu0 0.0
    %2305 = vmatpush1.msra.mxu0 0.0
    %2306 = vmatprep.subr.mxu0 0.0
    %2307 = vmatpush1.msra.mxu0 0.0
    %2308 = vmatprep.subr.mxu0 0.0
    %2309 = vmatpush1.msra.mxu0 0.0
    %2310 = vmatprep.subr.mxu0 0.0
    %2311 = vmatpush1.msra.mxu0 0.0
    %2312 = vmatprep.subr.mxu0 0.0
    %2313 = vmatpush1.msra.mxu0 0.0
    %2314 = vmatprep.subr.mxu0 0.0
    %2315 = vmatpush1.msra.mxu0 0.0
    %2316 = vmatprep.subr.mxu0 0.0
    %2317 = vmatpush1.msra.mxu0 0.0
    %2318 = vmatprep.subr.mxu0 %v2284
    %2319 = vmatpush1.msra.mxu0 %v2281
    %2320 = vmatprep.subr.mxu0 %v2270
    %2321 = vmatpush1.msra.mxu0 %v2269
    %2322 = vmatprep.subr.mxu0 %v2266
    %2323 = vmatpush1.msra.mxu0 %v2265
    %2324 = vmatprep.subr.mxu0 0.0
    %2325 = vmatpush2.msra.mxu0 0.0
    %2326 = vmatprep.subr.mxu0 0.0
    %2327 = vmatpush2.msra.mxu0 0.0
    %2328 = vmatprep.subr.mxu0 0.0
    %2329 = vmatpush2.msra.mxu0 0.0
    %2330 = vmatprep.subr.mxu0 0.0
    %2331 = vmatpush2.msra.mxu0 0.0
    %2332 = vmatprep.subr.mxu0 0.0
    %2333 = vmatpush2.msra.mxu0 0.0
    %2334 = vmatprep.subr.mxu0 0.0
    %2335 = vmatpush2.msra.mxu0 0.0
    %2336 = vmatprep.subr.mxu0 0.0
    %2337 = vmatpush2.msra.mxu0 0.0
    %2338 = vmatprep.subr.mxu0 0.0
    %2339 = vmatpush2.msra.mxu0 0.0
    %2340 = vmatprep.subr.mxu0 0.0
    %2341 = vmatpush2.msra.mxu0 0.0
    %2342 = vmatprep.subr.mxu0 0.0
    %2343 = vmatpush2.msra.mxu0 0.0
    %2344 = vmatprep.subr.mxu0 0.0
    %2345 = vmatpush2.msra.mxu0 0.0
    %2346 = vmatprep.subr.mxu0 0.0
    %2347 = vmatpush2.msra.mxu0 0.0
    %2348 = vmatprep.subr.mxu0 0.0
    %2349 = vmatpush2.msra.mxu0 0.0
    %2350 = vmatprep.subr.mxu0 0.0
    %2351 = vmatpush2.msra.mxu0 0.0
    %2352 = vmatprep.subr.mxu0 0.0
    %2353 = vmatpush2.msra.mxu0 0.0
    %2354 = vmatprep.subr.mxu0 0.0
    %2355 = vmatpush2.msra.mxu0 0.0
    %2356 = vmatprep.mubr.f32.mxu0 0.0
    %2357 = vmatmul.mubr.f32.gmra.mxu0 %v2278
    %v2358 = vpop.f32.mrf.mxu0
    %v2359 = vadd.f32 0.0, %v2358
    %v2360 = vpop.f32.mrf.mxu0
    %v2361 = vadd.f32 0.0, %v2360
    %2362 = vdwg.mxu0
    %2363 = vmatprep.subr.mxu0 0.0
    %2364 = vmatpush1.msra.mxu0 0.0
    %2365 = vmatprep.subr.mxu0 0.0
    %2366 = vmatpush1.msra.mxu0 0.0
    %2367 = vmatprep.subr.mxu0 0.0
    %2368 = vmatpush1.msra.mxu0 0.0
    %2369 = vmatprep.subr.mxu0 0.0
    %2370 = vmatpush1.msra.mxu0 0.0
    %2371 = vmatprep.subr.mxu0 0.0
    %2372 = vmatpush1.msra.mxu0 0.0
    %2373 = vmatprep.subr.mxu0 0.0
    %2374 = vmatpush1.msra.mxu0 0.0
    %2375 = vmatprep.subr.mxu0 0.0
    %2376 = vmatpush1.msra.mxu0 0.0
    %2377 = vmatprep.subr.mxu0 0.0
    %2378 = vmatpush1.msra.mxu0 0.0
    %2379 = vmatprep.subr.mxu0 0.0
    %2380 = vmatpush1.msra.mxu0 0.0
    %2381 = vmatprep.subr.mxu0 0.0
    %2382 = vmatpush1.msra.mxu0 0.0
    %2383 = vmatprep.subr.mxu0 0.0
    %2384 = vmatpush1.msra.mxu0 0.0
    %2385 = vmatprep.subr.mxu0 0.0
    %2386 = vmatpush1.msra.mxu0 0.0
    %2387 = vmatprep.subr.mxu0 0.0
    %2388 = vmatpush1.msra.mxu0 0.0
    %2389 = vmatprep.subr.mxu0 %v2290
    %2390 = vmatpush1.msra.mxu0 %v2287
    %2391 = vmatprep.subr.mxu0 %v2272
    %2392 = vmatpush1.msra.mxu0 %v2271
    %2393 = vmatprep.subr.mxu0 %v2268
    %2394 = vmatpush1.msra.mxu0 %v2267
    %2395 = vmatprep.subr.mxu0 0.0
    %2396 = vmatpush2.msra.mxu0 0.0
    %2397 = vmatprep.subr.mxu0 0.0
    %2398 = vmatpush2.msra.mxu0 0.0
    %2399 = vmatprep.subr.mxu0 0.0
    %2400 = vmatpush2.msra.mxu0 0.0
    %2401 = vmatprep.subr.mxu0 0.0
    %2402 = vmatpush2.msra.mxu0 0.0
    %2403 = vmatprep.subr.mxu0 0.0
    %2404 = vmatpush2.msra.mxu0 0.0
    %2405 = vmatprep.subr.mxu0 0.0
    %2406 = vmatpush2.msra.mxu0 0.0
    %2407 = vmatprep.subr.mxu0 0.0
    %2408 = vmatpush2.msra.mxu0 0.0
    %2409 = vmatprep.subr.mxu0 0.0
    %2410 = vmatpush2.msra.mxu0 0.0
    %2411 = vmatprep.subr.mxu0 0.0
    %2412 = vmatpush2.msra.mxu0 0.0
    %2413 = vmatprep.subr.mxu0 0.0
    %2414 = vmatpush2.msra.mxu0 0.0
    %2415 = vmatprep.subr.mxu0 0.0
    %2416 = vmatpush2.msra.mxu0 0.0
    %2417 = vmatprep.subr.mxu0 0.0
    %2418 = vmatpush2.msra.mxu0 0.0
    %2419 = vmatprep.subr.mxu0 0.0
    %2420 = vmatpush2.msra.mxu0 0.0
    %2421 = vmatprep.subr.mxu0 0.0
    %2422 = vmatpush2.msra.mxu0 0.0
    %2423 = vmatprep.subr.mxu0 0.0
    %2424 = vmatpush2.msra.mxu0 0.0
    %2425 = vmatprep.subr.mxu0 0.0
    %2426 = vmatpush2.msra.mxu0 0.0
    %2427 = vmatprep.mubr.f32.mxu0 0.0
    %2428 = vmatmul.mubr.f32.gmra.mxu0 %v2278
    %v2429 = vpop.f32.mrf.mxu0
    %v2430 = vadd.f32 0.0, %v2429
    %v2431 = vpop.f32.mrf.mxu0
    %v2432 = vadd.f32 0.0, %v2431
    %2433 = vdwg.mxu0
    %v2435 = vrot.slane %v2252, 6
    %v2436 = vsel %vm327, %v2435, 0
    %v2439 = vsel %vm331, %v2261, 0
    %v2442 = vsel %vm331, %v2262, 0
    %v2445 = vsel %vm331, %v2263, 0
    %v2448 = vsel %vm331, %v2264, 0
    %2450 = vmatprep.subr.mxu0 0.0
    %2451 = vmatpush1.msra.mxu0 0.0
    %2452 = vmatprep.subr.mxu0 0.0
    %2453 = vmatpush1.msra.mxu0 0.0
    %2454 = vmatprep.subr.mxu0 0.0
    %2455 = vmatpush1.msra.mxu0 0.0
    %2456 = vmatprep.subr.mxu0 0.0
    %2457 = vmatpush1.msra.mxu0 0.0
    %2458 = vmatprep.subr.mxu0 0.0
    %2459 = vmatpush1.msra.mxu0 0.0
    %2460 = vmatprep.subr.mxu0 0.0
    %2461 = vmatpush1.msra.mxu0 0.0
    %2462 = vmatprep.subr.mxu0 0.0
    %2463 = vmatpush1.msra.mxu0 0.0
    %2464 = vmatprep.subr.mxu0 0.0
    %2465 = vmatpush1.msra.mxu0 0.0
    %2466 = vmatprep.subr.mxu0 0.0
    %2467 = vmatpush1.msra.mxu0 0.0
    %2468 = vmatprep.subr.mxu0 0.0
    %2469 = vmatpush1.msra.mxu0 0.0
    %2470 = vmatprep.subr.mxu0 0.0
    %2471 = vmatpush1.msra.mxu0 0.0
    %2472 = vmatprep.subr.mxu0 0.0
    %2473 = vmatpush1.msra.mxu0 0.0
    %2474 = vmatprep.subr.mxu0 0.0
    %2475 = vmatpush1.msra.mxu0 0.0
    %2476 = vmatprep.subr.mxu0 %v2442
    %2477 = vmatpush1.msra.mxu0 %v2439
    %2478 = vmatprep.subr.mxu0 %v2258
    %2479 = vmatpush1.msra.mxu0 %v2257
    %2480 = vmatprep.subr.mxu0 %v2254
    %2481 = vmatpush1.msra.mxu0 %v2253
    %2482 = vmatprep.subr.mxu0 0.0
    %2483 = vmatpush2.msra.mxu0 0.0
    %2484 = vmatprep.subr.mxu0 0.0
    %2485 = vmatpush2.msra.mxu0 0.0
    %2486 = vmatprep.subr.mxu0 0.0
    %2487 = vmatpush2.msra.mxu0 0.0
    %2488 = vmatprep.subr.mxu0 0.0
    %2489 = vmatpush2.msra.mxu0 0.0
    %2490 = vmatprep.subr.mxu0 0.0
    %2491 = vmatpush2.msra.mxu0 0.0
    %2492 = vmatprep.subr.mxu0 0.0
    %2493 = vmatpush2.msra.mxu0 0.0
    %2494 = vmatprep.subr.mxu0 0.0
    %2495 = vmatpush2.msra.mxu0 0.0
    %2496 = vmatprep.subr.mxu0 0.0
    %2497 = vmatpush2.msra.mxu0 0.0
    %2498 = vmatprep.subr.mxu0 0.0
    %2499 = vmatpush2.msra.mxu0 0.0
    %2500 = vmatprep.subr.mxu0 0.0
    %2501 = vmatpush2.msra.mxu0 0.0
    %2502 = vmatprep.subr.mxu0 0.0
    %2503 = vmatpush2.msra.mxu0 0.0
    %2504 = vmatprep.subr.mxu0 0.0
    %2505 = vmatpush2.msra.mxu0 0.0
    %2506 = vmatprep.subr.mxu0 0.0
    %2507 = vmatpush2.msra.mxu0 0.0
    %2508 = vmatprep.subr.mxu0 0.0
    %2509 = vmatpush2.msra.mxu0 0.0
    %2510 = vmatprep.subr.mxu0 0.0
    %2511 = vmatpush2.msra.mxu0 0.0
    %2512 = vmatprep.subr.mxu0 0.0
    %2513 = vmatpush2.msra.mxu0 0.0
    %2514 = vmatprep.mubr.f32.mxu0 0.0
    %2515 = vmatmul.mubr.f32.gmra.mxu0 %v2436
    %v2516 = vpop.f32.mrf.mxu0
    %v2517 = vadd.f32 %v2359, %v2516
    %v2518 = vpop.f32.mrf.mxu0
    %v2519 = vadd.f32 %v2361, %v2518
    %2520 = vdwg.mxu0
    %2521 = vmatprep.subr.mxu0 0.0
    %2522 = vmatpush1.msra.mxu0 0.0
    %2523 = vmatprep.subr.mxu0 0.0
    %2524 = vmatpush1.msra.mxu0 0.0
    %2525 = vmatprep.subr.mxu0 0.0
    %2526 = vmatpush1.msra.mxu0 0.0
    %2527 = vmatprep.subr.mxu0 0.0
    %2528 = vmatpush1.msra.mxu0 0.0
    %2529 = vmatprep.subr.mxu0 0.0
    %2530 = vmatpush1.msra.mxu0 0.0
    %2531 = vmatprep.subr.mxu0 0.0
    %2532 = vmatpush1.msra.mxu0 0.0
    %2533 = vmatprep.subr.mxu0 0.0
    %2534 = vmatpush1.msra.mxu0 0.0
    %2535 = vmatprep.subr.mxu0 0.0
    %2536 = vmatpush1.msra.mxu0 0.0
    %2537 = vmatprep.subr.mxu0 0.0
    %2538 = vmatpush1.msra.mxu0 0.0
    %2539 = vmatprep.subr.mxu0 0.0
    %2540 = vmatpush1.msra.mxu0 0.0
    %2541 = vmatprep.subr.mxu0 0.0
    %2542 = vmatpush1.msra.mxu0 0.0
    %2543 = vmatprep.subr.mxu0 0.0
    %2544 = vmatpush1.msra.mxu0 0.0
    %2545 = vmatprep.subr.mxu0 0.0
    %2546 = vmatpush1.msra.mxu0 0.0
    %2547 = vmatprep.subr.mxu0 %v2448
    %2548 = vmatpush1.msra.mxu0 %v2445
    %2549 = vmatprep.subr.mxu0 %v2260
    %2550 = vmatpush1.msra.mxu0 %v2259
    %2551 = vmatprep.subr.mxu0 %v2256
    %2552 = vmatpush1.msra.mxu0 %v2255
    %2553 = vmatprep.subr.mxu0 0.0
    %2554 = vmatpush2.msra.mxu0 0.0
    %2555 = vmatprep.subr.mxu0 0.0
    %2556 = vmatpush2.msra.mxu0 0.0
    %2557 = vmatprep.subr.mxu0 0.0
    %2558 = vmatpush2.msra.mxu0 0.0
    %2559 = vmatprep.subr.mxu0 0.0
    %2560 = vmatpush2.msra.mxu0 0.0
    %2561 = vmatprep.subr.mxu0 0.0
    %2562 = vmatpush2.msra.mxu0 0.0
    %2563 = vmatprep.subr.mxu0 0.0
    %2564 = vmatpush2.msra.mxu0 0.0
    %2565 = vmatprep.subr.mxu0 0.0
    %2566 = vmatpush2.msra.mxu0 0.0
    %2567 = vmatprep.subr.mxu0 0.0
    %2568 = vmatpush2.msra.mxu0 0.0
    %2569 = vmatprep.subr.mxu0 0.0
    %2570 = vmatpush2.msra.mxu0 0.0
    %2571 = vmatprep.subr.mxu0 0.0
    %2572 = vmatpush2.msra.mxu0 0.0
    %2573 = vmatprep.subr.mxu0 0.0
    %2574 = vmatpush2.msra.mxu0 0.0
    %2575 = vmatprep.subr.mxu0 0.0
    %2576 = vmatpush2.msra.mxu0 0.0
    %2577 = vmatprep.subr.mxu0 0.0
    %2578 = vmatpush2.msra.mxu0 0.0
    %2579 = vmatprep.subr.mxu0 0.0
    %2580 = vmatpush2.msra.mxu0 0.0
    %2581 = vmatprep.subr.mxu0 0.0
    %2582 = vmatpush2.msra.mxu0 0.0
    %2583 = vmatprep.subr.mxu0 0.0
    %2584 = vmatpush2.msra.mxu0 0.0
    %2585 = vmatprep.mubr.f32.mxu0 0.0
    %2586 = vmatmul.mubr.f32.gmra.mxu0 %v2436
    %v2587 = vpop.f32.mrf.mxu0
    %v2588 = vadd.f32 %v2430, %v2587
    %v2589 = vpop.f32.mrf.mxu0
    %v2590 = vadd.f32 %v2432, %v2589
    %2591 = vdwg.mxu0
    %v2592 = vadd.f32 %v2517, %v294
    %v2593 = vadd.f32 %v2519, %v298
    %v2594 = vadd.f32 %v2588, %v302
    %v2595 = vadd.f32 %v2590, %v306
    %v2596 = vxor.u32 %v2592, 2147483648
    %v2597 = vmul.f32 %v2596, 1.442695
    %v2598 = vpow.pop %v2597
    %v2599 = vadd.f32 %v2598, 1.0
    %v2600 = vrcp.pop %v2599
    %v2601 = vmul.f32 1.0, %v2600
    %v2602 = vxor.u32 %v2593, 2147483648
    %v2603 = vmul.f32 %v2602, 1.442695
    %v2604 = vpow.pop %v2603
    %v2605 = vadd.f32 %v2604, 1.0
    %v2606 = vrcp.pop %v2605
    %v2607 = vmul.f32 1.0, %v2606
    %v2608 = vtanh.pop %v2594
    %v2609 = vxor.u32 %v2595, 2147483648
    %v2610 = vmul.f32 %v2609, 1.442695
    %v2611 = vpow.pop %v2610
    %v2612 = vadd.f32 %v2611, 1.0
    %v2613 = vrcp.pop %v2612
    %v2614 = vmul.f32 1.0, %v2613
    %v2615 = vmul.f32 %v2607, %v2036
    %v2616 = vmul.f32 %v2601, %v2608
    %v2617 = vadd.f32 %v2615, %v2616
    %v2618 = vtanh.pop %v2617
    %v2619 = vmul.f32 %v2614, %v2618
    %2620 = vst [vmem:[#allocation3 + $0x6] sm:$0x3] %v2619
    %v2621 = vld [vmem:[#allocation2 + $0x20] sm:$0x3]
    %v2622 = vld [vmem:[#allocation2 + $0x28] sm:$0x3]
    %v2623 = vld [vmem:[#allocation2 + $0x30] sm:$0x3]
    %v2624 = vld [vmem:[#allocation2 + $0x38] sm:$0x3]
    %v2625 = vld [vmem:[%s3] sm:$0xff]
    %v2626 = vld [vmem:[%s3 + $0x8] sm:$0xff]
    %v2627 = vld [vmem:[%s3 + $0x10] sm:$0xff]
    %v2628 = vld [vmem:[%s3 + $0x18] sm:$0xff]
    %v2629 = vld [vmem:[%s3 + $0x20] sm:$0xff]
    %v2630 = vld [vmem:[%s3 + $0x28] sm:$0xff]
    %v2631 = vld [vmem:[%s3 + $0x30] sm:$0xff]
    %v2632 = vld [vmem:[%s3 + $0x38] sm:$0xff]
    %v2633 = vld [vmem:[%s3 + $0x40] sm:$0xf]
    %v2634 = vld [vmem:[%s3 + $0x48] sm:$0xf]
    %v2635 = vld [vmem:[%s3 + $0x50] sm:$0xf]
    %v2636 = vld [vmem:[%s3 + $0x58] sm:$0xf]
    %v2638 = vsel %vm331, %v2633, 0
    %v2641 = vsel %vm331, %v2634, 0
    %v2644 = vsel %vm331, %v2635, 0
    %v2647 = vsel %vm331, %v2636, 0
    %2649 = vmatprep.subr.mxu0 0.0
    %2650 = vmatpush1.msra.mxu0 0.0
    %2651 = vmatprep.subr.mxu0 0.0
    %2652 = vmatpush1.msra.mxu0 0.0
    %2653 = vmatprep.subr.mxu0 0.0
    %2654 = vmatpush1.msra.mxu0 0.0
    %2655 = vmatprep.subr.mxu0 0.0
    %2656 = vmatpush1.msra.mxu0 0.0
    %2657 = vmatprep.subr.mxu0 0.0
    %2658 = vmatpush1.msra.mxu0 0.0
    %2659 = vmatprep.subr.mxu0 0.0
    %2660 = vmatpush1.msra.mxu0 0.0
    %2661 = vmatprep.subr.mxu0 0.0
    %2662 = vmatpush1.msra.mxu0 0.0
    %2663 = vmatprep.subr.mxu0 0.0
    %2664 = vmatpush1.msra.mxu0 0.0
    %2665 = vmatprep.subr.mxu0 0.0
    %2666 = vmatpush1.msra.mxu0 0.0
    %2667 = vmatprep.subr.mxu0 0.0
    %2668 = vmatpush1.msra.mxu0 0.0
    %2669 = vmatprep.subr.mxu0 0.0
    %2670 = vmatpush1.msra.mxu0 0.0
    %2671 = vmatprep.subr.mxu0 0.0
    %2672 = vmatpush1.msra.mxu0 0.0
    %2673 = vmatprep.subr.mxu0 0.0
    %2674 = vmatpush1.msra.mxu0 0.0
    %2675 = vmatprep.subr.mxu0 %v2641
    %2676 = vmatpush1.msra.mxu0 %v2638
    %2677 = vmatprep.subr.mxu0 %v2630
    %2678 = vmatpush1.msra.mxu0 %v2629
    %2679 = vmatprep.subr.mxu0 %v2626
    %2680 = vmatpush1.msra.mxu0 %v2625
    %2681 = vmatprep.subr.mxu0 0.0
    %2682 = vmatpush2.msra.mxu0 0.0
    %2683 = vmatprep.subr.mxu0 0.0
    %2684 = vmatpush2.msra.mxu0 0.0
    %2685 = vmatprep.subr.mxu0 0.0
    %2686 = vmatpush2.msra.mxu0 0.0
    %2687 = vmatprep.subr.mxu0 0.0
    %2688 = vmatpush2.msra.mxu0 0.0
    %2689 = vmatprep.subr.mxu0 0.0
    %2690 = vmatpush2.msra.mxu0 0.0
    %2691 = vmatprep.subr.mxu0 0.0
    %2692 = vmatpush2.msra.mxu0 0.0
    %2693 = vmatprep.subr.mxu0 0.0
    %2694 = vmatpush2.msra.mxu0 0.0
    %2695 = vmatprep.subr.mxu0 0.0
    %2696 = vmatpush2.msra.mxu0 0.0
    %2697 = vmatprep.subr.mxu0 0.0
    %2698 = vmatpush2.msra.mxu0 0.0
    %2699 = vmatprep.subr.mxu0 0.0
    %2700 = vmatpush2.msra.mxu0 0.0
    %2701 = vmatprep.subr.mxu0 0.0
    %2702 = vmatpush2.msra.mxu0 0.0
    %2703 = vmatprep.subr.mxu0 0.0
    %2704 = vmatpush2.msra.mxu0 0.0
    %2705 = vmatprep.subr.mxu0 0.0
    %2706 = vmatpush2.msra.mxu0 0.0
    %2707 = vmatprep.subr.mxu0 0.0
    %2708 = vmatpush2.msra.mxu0 0.0
    %2709 = vmatprep.subr.mxu0 0.0
    %2710 = vmatpush2.msra.mxu0 0.0
    %2711 = vmatprep.subr.mxu0 0.0
    %2712 = vmatpush2.msra.mxu0 0.0
    %2713 = vmatprep.mubr.f32.mxu0 0.0
    %2714 = vmatmul.mubr.f32.gmra.mxu0 %v2436
    %v2715 = vpop.f32.mrf.mxu0
    %v2716 = vadd.f32 0.0, %v2715
    %v2717 = vpop.f32.mrf.mxu0
    %v2718 = vadd.f32 0.0, %v2717
    %2719 = vdwg.mxu0
    %2720 = vmatprep.subr.mxu0 0.0
    %2721 = vmatpush1.msra.mxu0 0.0
    %2722 = vmatprep.subr.mxu0 0.0
    %2723 = vmatpush1.msra.mxu0 0.0
    %2724 = vmatprep.subr.mxu0 0.0
    %2725 = vmatpush1.msra.mxu0 0.0
    %2726 = vmatprep.subr.mxu0 0.0
    %2727 = vmatpush1.msra.mxu0 0.0
    %2728 = vmatprep.subr.mxu0 0.0
    %2729 = vmatpush1.msra.mxu0 0.0
    %2730 = vmatprep.subr.mxu0 0.0
    %2731 = vmatpush1.msra.mxu0 0.0
    %2732 = vmatprep.subr.mxu0 0.0
    %2733 = vmatpush1.msra.mxu0 0.0
    %2734 = vmatprep.subr.mxu0 0.0
    %2735 = vmatpush1.msra.mxu0 0.0
    %2736 = vmatprep.subr.mxu0 0.0
    %2737 = vmatpush1.msra.mxu0 0.0
    %2738 = vmatprep.subr.mxu0 0.0
    %2739 = vmatpush1.msra.mxu0 0.0
    %2740 = vmatprep.subr.mxu0 0.0
    %2741 = vmatpush1.msra.mxu0 0.0
    %2742 = vmatprep.subr.mxu0 0.0
    %2743 = vmatpush1.msra.mxu0 0.0
    %2744 = vmatprep.subr.mxu0 0.0
    %2745 = vmatpush1.msra.mxu0 0.0
    %2746 = vmatprep.subr.mxu0 %v2647
    %2747 = vmatpush1.msra.mxu0 %v2644
    %2748 = vmatprep.subr.mxu0 %v2632
    %2749 = vmatpush1.msra.mxu0 %v2631
    %2750 = vmatprep.subr.mxu0 %v2628
    %2751 = vmatpush1.msra.mxu0 %v2627
    %2752 = vmatprep.subr.mxu0 0.0
    %2753 = vmatpush2.msra.mxu0 0.0
    %2754 = vmatprep.subr.mxu0 0.0
    %2755 = vmatpush2.msra.mxu0 0.0
    %2756 = vmatprep.subr.mxu0 0.0
    %2757 = vmatpush2.msra.mxu0 0.0
    %2758 = vmatprep.subr.mxu0 0.0
    %2759 = vmatpush2.msra.mxu0 0.0
    %2760 = vmatprep.subr.mxu0 0.0
    %2761 = vmatpush2.msra.mxu0 0.0
    %2762 = vmatprep.subr.mxu0 0.0
    %2763 = vmatpush2.msra.mxu0 0.0
    %2764 = vmatprep.subr.mxu0 0.0
    %2765 = vmatpush2.msra.mxu0 0.0
    %2766 = vmatprep.subr.mxu0 0.0
    %2767 = vmatpush2.msra.mxu0 0.0
    %2768 = vmatprep.subr.mxu0 0.0
    %2769 = vmatpush2.msra.mxu0 0.0
    %2770 = vmatprep.subr.mxu0 0.0
    %2771 = vmatpush2.msra.mxu0 0.0
    %2772 = vmatprep.subr.mxu0 0.0
    %2773 = vmatpush2.msra.mxu0 0.0
    %2774 = vmatprep.subr.mxu0 0.0
    %2775 = vmatpush2.msra.mxu0 0.0
    %2776 = vmatprep.subr.mxu0 0.0
    %2777 = vmatpush2.msra.mxu0 0.0
    %2778 = vmatprep.subr.mxu0 0.0
    %2779 = vmatpush2.msra.mxu0 0.0
    %2780 = vmatprep.subr.mxu0 0.0
    %2781 = vmatpush2.msra.mxu0 0.0
    %2782 = vmatprep.subr.mxu0 0.0
    %2783 = vmatpush2.msra.mxu0 0.0
    %2784 = vmatprep.mubr.f32.mxu0 0.0
    %2785 = vmatmul.mubr.f32.gmra.mxu0 %v2436
    %v2786 = vpop.f32.mrf.mxu0
    %v2787 = vadd.f32 0.0, %v2786
    %v2788 = vpop.f32.mrf.mxu0
    %v2789 = vadd.f32 0.0, %v2788
    %2790 = vdwg.mxu0
    %v2791 = vadd.f32 %v2621, %v2716
    %v2792 = vadd.f32 %v2622, %v2718
    %v2793 = vadd.f32 %v2623, %v2787
    %v2794 = vadd.f32 %v2624, %v2789
    %v2795 = vxor.u32 %v2791, 2147483648
    %v2796 = vmul.f32 %v2795, 1.442695
    %v2797 = vpow.pop %v2796
    %v2798 = vadd.f32 %v2797, 1.0
    %v2799 = vrcp.pop %v2798
    %v2800 = vmul.f32 1.0, %v2799
    %v2801 = vxor.u32 %v2792, 2147483648
    %v2802 = vmul.f32 %v2801, 1.442695
    %v2803 = vpow.pop %v2802
    %v2804 = vadd.f32 %v2803, 1.0
    %v2805 = vrcp.pop %v2804
    %v2806 = vmul.f32 1.0, %v2805
    %v2807 = vtanh.pop %v2793
    %v2808 = vxor.u32 %v2794, 2147483648
    %v2809 = vmul.f32 %v2808, 1.442695
    %v2810 = vpow.pop %v2809
    %v2811 = vadd.f32 %v2810, 1.0
    %v2812 = vrcp.pop %v2811
    %v2813 = vmul.f32 1.0, %v2812
    %v2815 = vrot.slane %v2250, 6
    %v2817 = vmul.f32 %v2806, %v2815
    %v2818 = vmul.f32 %v2800, %v2807
    %v2819 = vadd.f32 %v2817, %v2818
    %v2820 = vtanh.pop %v2819
    %v2821 = vmul.f32 %v2813, %v2820
    %v2822 = vld [vmem:[#allocation7] sm:$0xff]
    %v2823 = vld [vmem:[#allocation7 + $0x8] sm:$0xff]
    %v2824 = vld [vmem:[#allocation7 + $0x10] sm:$0xff]
    %v2825 = vld [vmem:[#allocation7 + $0x18] sm:$0xff]
    %v2826 = vld [vmem:[#allocation7 + $0x20] sm:$0xff]
    %v2827 = vld [vmem:[#allocation7 + $0x28] sm:$0xff]
    %v2828 = vld [vmem:[#allocation7 + $0x30] sm:$0xff]
    %v2829 = vld [vmem:[#allocation7 + $0x38] sm:$0xff]
    %v2830 = vld [vmem:[#allocation7 + $0x40] sm:$0xf]
    %v2831 = vld [vmem:[#allocation7 + $0x48] sm:$0xf]
    %v2832 = vld [vmem:[#allocation7 + $0x50] sm:$0xf]
    %v2833 = vld [vmem:[#allocation7 + $0x58] sm:$0xf]
    %v2834 = vld [vmem:[#allocation9] sm:$0xff]
    %v2835 = vld [vmem:[#allocation9 + $0x8] sm:$0xff]
    %v2836 = vld [vmem:[#allocation9 + $0x10] sm:$0xff]
    %v2837 = vld [vmem:[#allocation9 + $0x18] sm:$0xff]
    %v2838 = vld [vmem:[#allocation9 + $0x20] sm:$0xff]
    %v2839 = vld [vmem:[#allocation9 + $0x28] sm:$0xff]
    %v2840 = vld [vmem:[#allocation9 + $0x30] sm:$0xff]
    %v2841 = vld [vmem:[#allocation9 + $0x38] sm:$0xff]
    %v2842 = vld [vmem:[#allocation9 + $0x40] sm:$0xf]
    %v2843 = vld [vmem:[#allocation9 + $0x48] sm:$0xf]
    %v2844 = vld [vmem:[#allocation9 + $0x50] sm:$0xf]
    %v2845 = vld [vmem:[#allocation9 + $0x58] sm:$0xf]
    %v2847 = vsel %vm327, %v2619, 0
    %v2850 = vsel %vm331, %v2842, 0
    %v2853 = vsel %vm331, %v2843, 0
    %v2856 = vsel %vm331, %v2844, 0
    %v2859 = vsel %vm331, %v2845, 0
    %2861 = vmatprep.subr.mxu0 0.0
    %2862 = vmatpush1.msra.mxu0 0.0
    %2863 = vmatprep.subr.mxu0 0.0
    %2864 = vmatpush1.msra.mxu0 0.0
    %2865 = vmatprep.subr.mxu0 0.0
    %2866 = vmatpush1.msra.mxu0 0.0
    %2867 = vmatprep.subr.mxu0 0.0
    %2868 = vmatpush1.msra.mxu0 0.0
    %2869 = vmatprep.subr.mxu0 0.0
    %2870 = vmatpush1.msra.mxu0 0.0
    %2871 = vmatprep.subr.mxu0 0.0
    %2872 = vmatpush1.msra.mxu0 0.0
    %2873 = vmatprep.subr.mxu0 0.0
    %2874 = vmatpush1.msra.mxu0 0.0
    %2875 = vmatprep.subr.mxu0 0.0
    %2876 = vmatpush1.msra.mxu0 0.0
    %2877 = vmatprep.subr.mxu0 0.0
    %2878 = vmatpush1.msra.mxu0 0.0
    %2879 = vmatprep.subr.mxu0 0.0
    %2880 = vmatpush1.msra.mxu0 0.0
    %2881 = vmatprep.subr.mxu0 0.0
    %2882 = vmatpush1.msra.mxu0 0.0
    %2883 = vmatprep.subr.mxu0 0.0
    %2884 = vmatpush1.msra.mxu0 0.0
    %2885 = vmatprep.subr.mxu0 0.0
    %2886 = vmatpush1.msra.mxu0 0.0
    %2887 = vmatprep.subr.mxu0 %v2853
    %2888 = vmatpush1.msra.mxu0 %v2850
    %2889 = vmatprep.subr.mxu0 %v2839
    %2890 = vmatpush1.msra.mxu0 %v2838
    %2891 = vmatprep.subr.mxu0 %v2835
    %2892 = vmatpush1.msra.mxu0 %v2834
    %2893 = vmatprep.subr.mxu0 0.0
    %2894 = vmatpush2.msra.mxu0 0.0
    %2895 = vmatprep.subr.mxu0 0.0
    %2896 = vmatpush2.msra.mxu0 0.0
    %2897 = vmatprep.subr.mxu0 0.0
    %2898 = vmatpush2.msra.mxu0 0.0
    %2899 = vmatprep.subr.mxu0 0.0
    %2900 = vmatpush2.msra.mxu0 0.0
    %2901 = vmatprep.subr.mxu0 0.0
    %2902 = vmatpush2.msra.mxu0 0.0
    %2903 = vmatprep.subr.mxu0 0.0
    %2904 = vmatpush2.msra.mxu0 0.0
    %2905 = vmatprep.subr.mxu0 0.0
    %2906 = vmatpush2.msra.mxu0 0.0
    %2907 = vmatprep.subr.mxu0 0.0
    %2908 = vmatpush2.msra.mxu0 0.0
    %2909 = vmatprep.subr.mxu0 0.0
    %2910 = vmatpush2.msra.mxu0 0.0
    %2911 = vmatprep.subr.mxu0 0.0
    %2912 = vmatpush2.msra.mxu0 0.0
    %2913 = vmatprep.subr.mxu0 0.0
    %2914 = vmatpush2.msra.mxu0 0.0
    %2915 = vmatprep.subr.mxu0 0.0
    %2916 = vmatpush2.msra.mxu0 0.0
    %2917 = vmatprep.subr.mxu0 0.0
    %2918 = vmatpush2.msra.mxu0 0.0
    %2919 = vmatprep.subr.mxu0 0.0
    %2920 = vmatpush2.msra.mxu0 0.0
    %2921 = vmatprep.subr.mxu0 0.0
    %2922 = vmatpush2.msra.mxu0 0.0
    %2923 = vmatprep.subr.mxu0 0.0
    %2924 = vmatpush2.msra.mxu0 0.0
    %2925 = vmatprep.mubr.f32.mxu0 0.0
    %2926 = vmatmul.mubr.f32.gmra.mxu0 %v2847
    %v2927 = vpop.f32.mrf.mxu0
    %v2928 = vadd.f32 0.0, %v2927
    %v2929 = vpop.f32.mrf.mxu0
    %v2930 = vadd.f32 0.0, %v2929
    %2931 = vdwg.mxu0
    %2932 = vmatprep.subr.mxu0 0.0
    %2933 = vmatpush1.msra.mxu0 0.0
    %2934 = vmatprep.subr.mxu0 0.0
    %2935 = vmatpush1.msra.mxu0 0.0
    %2936 = vmatprep.subr.mxu0 0.0
    %2937 = vmatpush1.msra.mxu0 0.0
    %2938 = vmatprep.subr.mxu0 0.0
    %2939 = vmatpush1.msra.mxu0 0.0
    %2940 = vmatprep.subr.mxu0 0.0
    %2941 = vmatpush1.msra.mxu0 0.0
    %2942 = vmatprep.subr.mxu0 0.0
    %2943 = vmatpush1.msra.mxu0 0.0
    %2944 = vmatprep.subr.mxu0 0.0
    %2945 = vmatpush1.msra.mxu0 0.0
    %2946 = vmatprep.subr.mxu0 0.0
    %2947 = vmatpush1.msra.mxu0 0.0
    %2948 = vmatprep.subr.mxu0 0.0
    %2949 = vmatpush1.msra.mxu0 0.0
    %2950 = vmatprep.subr.mxu0 0.0
    %2951 = vmatpush1.msra.mxu0 0.0
    %2952 = vmatprep.subr.mxu0 0.0
    %2953 = vmatpush1.msra.mxu0 0.0
    %2954 = vmatprep.subr.mxu0 0.0
    %2955 = vmatpush1.msra.mxu0 0.0
    %2956 = vmatprep.subr.mxu0 0.0
    %2957 = vmatpush1.msra.mxu0 0.0
    %2958 = vmatprep.subr.mxu0 %v2859
    %2959 = vmatpush1.msra.mxu0 %v2856
    %2960 = vmatprep.subr.mxu0 %v2841
    %2961 = vmatpush1.msra.mxu0 %v2840
    %2962 = vmatprep.subr.mxu0 %v2837
    %2963 = vmatpush1.msra.mxu0 %v2836
    %2964 = vmatprep.subr.mxu0 0.0
    %2965 = vmatpush2.msra.mxu0 0.0
    %2966 = vmatprep.subr.mxu0 0.0
    %2967 = vmatpush2.msra.mxu0 0.0
    %2968 = vmatprep.subr.mxu0 0.0
    %2969 = vmatpush2.msra.mxu0 0.0
    %2970 = vmatprep.subr.mxu0 0.0
    %2971 = vmatpush2.msra.mxu0 0.0
    %2972 = vmatprep.subr.mxu0 0.0
    %2973 = vmatpush2.msra.mxu0 0.0
    %2974 = vmatprep.subr.mxu0 0.0
    %2975 = vmatpush2.msra.mxu0 0.0
    %2976 = vmatprep.subr.mxu0 0.0
    %2977 = vmatpush2.msra.mxu0 0.0
    %2978 = vmatprep.subr.mxu0 0.0
    %2979 = vmatpush2.msra.mxu0 0.0
    %2980 = vmatprep.subr.mxu0 0.0
    %2981 = vmatpush2.msra.mxu0 0.0
    %2982 = vmatprep.subr.mxu0 0.0
    %2983 = vmatpush2.msra.mxu0 0.0
    %2984 = vmatprep.subr.mxu0 0.0
    %2985 = vmatpush2.msra.mxu0 0.0
    %2986 = vmatprep.subr.mxu0 0.0
    %2987 = vmatpush2.msra.mxu0 0.0
    %2988 = vmatprep.subr.mxu0 0.0
    %2989 = vmatpush2.msra.mxu0 0.0
    %2990 = vmatprep.subr.mxu0 0.0
    %2991 = vmatpush2.msra.mxu0 0.0
    %2992 = vmatprep.subr.mxu0 0.0
    %2993 = vmatpush2.msra.mxu0 0.0
    %2994 = vmatprep.subr.mxu0 0.0
    %2995 = vmatpush2.msra.mxu0 0.0
    %2996 = vmatprep.mubr.f32.mxu0 0.0
    %2997 = vmatmul.mubr.f32.gmra.mxu0 %v2847
    %v2998 = vpop.f32.mrf.mxu0
    %v2999 = vadd.f32 0.0, %v2998
    %v3000 = vpop.f32.mrf.mxu0
    %v3001 = vadd.f32 0.0, %v3000
    %3002 = vdwg.mxu0
    %v3004 = vsel %vm327, %v2821, 0
    %v3007 = vsel %vm331, %v2830, 0
    %v3010 = vsel %vm331, %v2831, 0
    %v3013 = vsel %vm331, %v2832, 0
    %v3016 = vsel %vm331, %v2833, 0
    %3018 = vmatprep.subr.mxu0 0.0
    %3019 = vmatpush1.msra.mxu0 0.0
    %3020 = vmatprep.subr.mxu0 0.0
    %3021 = vmatpush1.msra.mxu0 0.0
    %3022 = vmatprep.subr.mxu0 0.0
    %3023 = vmatpush1.msra.mxu0 0.0
    %3024 = vmatprep.subr.mxu0 0.0
    %3025 = vmatpush1.msra.mxu0 0.0
    %3026 = vmatprep.subr.mxu0 0.0
    %3027 = vmatpush1.msra.mxu0 0.0
    %3028 = vmatprep.subr.mxu0 0.0
    %3029 = vmatpush1.msra.mxu0 0.0
    %3030 = vmatprep.subr.mxu0 0.0
    %3031 = vmatpush1.msra.mxu0 0.0
    %3032 = vmatprep.subr.mxu0 0.0
    %3033 = vmatpush1.msra.mxu0 0.0
    %3034 = vmatprep.subr.mxu0 0.0
    %3035 = vmatpush1.msra.mxu0 0.0
    %3036 = vmatprep.subr.mxu0 0.0
    %3037 = vmatpush1.msra.mxu0 0.0
    %3038 = vmatprep.subr.mxu0 0.0
    %3039 = vmatpush1.msra.mxu0 0.0
    %3040 = vmatprep.subr.mxu0 0.0
    %3041 = vmatpush1.msra.mxu0 0.0
    %3042 = vmatprep.subr.mxu0 0.0
    %3043 = vmatpush1.msra.mxu0 0.0
    %3044 = vmatprep.subr.mxu0 %v3010
    %3045 = vmatpush1.msra.mxu0 %v3007
    %3046 = vmatprep.subr.mxu0 %v2827
    %3047 = vmatpush1.msra.mxu0 %v2826
    %3048 = vmatprep.subr.mxu0 %v2823
    %3049 = vmatpush1.msra.mxu0 %v2822
    %3050 = vmatprep.subr.mxu0 0.0
    %3051 = vmatpush2.msra.mxu0 0.0
    %3052 = vmatprep.subr.mxu0 0.0
    %3053 = vmatpush2.msra.mxu0 0.0
    %3054 = vmatprep.subr.mxu0 0.0
    %3055 = vmatpush2.msra.mxu0 0.0
    %3056 = vmatprep.subr.mxu0 0.0
    %3057 = vmatpush2.msra.mxu0 0.0
    %3058 = vmatprep.subr.mxu0 0.0
    %3059 = vmatpush2.msra.mxu0 0.0
    %3060 = vmatprep.subr.mxu0 0.0
    %3061 = vmatpush2.msra.mxu0 0.0
    %3062 = vmatprep.subr.mxu0 0.0
    %3063 = vmatpush2.msra.mxu0 0.0
    %3064 = vmatprep.subr.mxu0 0.0
    %3065 = vmatpush2.msra.mxu0 0.0
    %3066 = vmatprep.subr.mxu0 0.0
    %3067 = vmatpush2.msra.mxu0 0.0
    %3068 = vmatprep.subr.mxu0 0.0
    %3069 = vmatpush2.msra.mxu0 0.0
    %3070 = vmatprep.subr.mxu0 0.0
    %3071 = vmatpush2.msra.mxu0 0.0
    %3072 = vmatprep.subr.mxu0 0.0
    %3073 = vmatpush2.msra.mxu0 0.0
    %3074 = vmatprep.subr.mxu0 0.0
    %3075 = vmatpush2.msra.mxu0 0.0
    %3076 = vmatprep.subr.mxu0 0.0
    %3077 = vmatpush2.msra.mxu0 0.0
    %3078 = vmatprep.subr.mxu0 0.0
    %3079 = vmatpush2.msra.mxu0 0.0
    %3080 = vmatprep.subr.mxu0 0.0
    %3081 = vmatpush2.msra.mxu0 0.0
    %3082 = vmatprep.mubr.f32.mxu0 0.0
    %3083 = vmatmul.mubr.f32.gmra.mxu0 %v3004
    %v3084 = vpop.f32.mrf.mxu0
    %v3085 = vadd.f32 %v2928, %v3084
    %v3086 = vpop.f32.mrf.mxu0
    %v3087 = vadd.f32 %v2930, %v3086
    %3088 = vdwg.mxu0
    %3089 = vmatprep.subr.mxu0 0.0
    %3090 = vmatpush1.msra.mxu0 0.0
    %3091 = vmatprep.subr.mxu0 0.0
    %3092 = vmatpush1.msra.mxu0 0.0
    %3093 = vmatprep.subr.mxu0 0.0
    %3094 = vmatpush1.msra.mxu0 0.0
    %3095 = vmatprep.subr.mxu0 0.0
    %3096 = vmatpush1.msra.mxu0 0.0
    %3097 = vmatprep.subr.mxu0 0.0
    %3098 = vmatpush1.msra.mxu0 0.0
    %3099 = vmatprep.subr.mxu0 0.0
    %3100 = vmatpush1.msra.mxu0 0.0
    %3101 = vmatprep.subr.mxu0 0.0
    %3102 = vmatpush1.msra.mxu0 0.0
    %3103 = vmatprep.subr.mxu0 0.0
    %3104 = vmatpush1.msra.mxu0 0.0
    %3105 = vmatprep.subr.mxu0 0.0
    %3106 = vmatpush1.msra.mxu0 0.0
    %3107 = vmatprep.subr.mxu0 0.0
    %3108 = vmatpush1.msra.mxu0 0.0
    %3109 = vmatprep.subr.mxu0 0.0
    %3110 = vmatpush1.msra.mxu0 0.0
    %3111 = vmatprep.subr.mxu0 0.0
    %3112 = vmatpush1.msra.mxu0 0.0
    %3113 = vmatprep.subr.mxu0 0.0
    %3114 = vmatpush1.msra.mxu0 0.0
    %3115 = vmatprep.subr.mxu0 %v3016
    %3116 = vmatpush1.msra.mxu0 %v3013
    %3117 = vmatprep.subr.mxu0 %v2829
    %3118 = vmatpush1.msra.mxu0 %v2828
    %3119 = vmatprep.subr.mxu0 %v2825
    %3120 = vmatpush1.msra.mxu0 %v2824
    %3121 = vmatprep.subr.mxu0 0.0
    %3122 = vmatpush2.msra.mxu0 0.0
    %3123 = vmatprep.subr.mxu0 0.0
    %3124 = vmatpush2.msra.mxu0 0.0
    %3125 = vmatprep.subr.mxu0 0.0
    %3126 = vmatpush2.msra.mxu0 0.0
    %3127 = vmatprep.subr.mxu0 0.0
    %3128 = vmatpush2.msra.mxu0 0.0
    %3129 = vmatprep.subr.mxu0 0.0
    %3130 = vmatpush2.msra.mxu0 0.0
    %3131 = vmatprep.subr.mxu0 0.0
    %3132 = vmatpush2.msra.mxu0 0.0
    %3133 = vmatprep.subr.mxu0 0.0
    %3134 = vmatpush2.msra.mxu0 0.0
    %3135 = vmatprep.subr.mxu0 0.0
    %3136 = vmatpush2.msra.mxu0 0.0
    %3137 = vmatprep.subr.mxu0 0.0
    %3138 = vmatpush2.msra.mxu0 0.0
    %3139 = vmatprep.subr.mxu0 0.0
    %3140 = vmatpush2.msra.mxu0 0.0
    %3141 = vmatprep.subr.mxu0 0.0
    %3142 = vmatpush2.msra.mxu0 0.0
    %3143 = vmatprep.subr.mxu0 0.0
    %3144 = vmatpush2.msra.mxu0 0.0
    %3145 = vmatprep.subr.mxu0 0.0
    %3146 = vmatpush2.msra.mxu0 0.0
    %3147 = vmatprep.subr.mxu0 0.0
    %3148 = vmatpush2.msra.mxu0 0.0
    %3149 = vmatprep.subr.mxu0 0.0
    %3150 = vmatpush2.msra.mxu0 0.0
    %3151 = vmatprep.subr.mxu0 0.0
    %3152 = vmatpush2.msra.mxu0 0.0
    %3153 = vmatprep.mubr.f32.mxu0 0.0
    %3154 = vmatmul.mubr.f32.gmra.mxu0 %v3004
    %v3155 = vpop.f32.mrf.mxu0
    %v3156 = vadd.f32 %v2999, %v3155
    %v3157 = vpop.f32.mrf.mxu0
    %v3158 = vadd.f32 %v3001, %v3157
    %3159 = vdwg.mxu0
    %v3160 = vadd.f32 %v3085, %v294
    %v3161 = vadd.f32 %v3087, %v298
    %v3162 = vadd.f32 %v3156, %v302
    %v3163 = vadd.f32 %v3158, %v306
    %v3164 = vxor.u32 %v3160, 2147483648
    %v3165 = vmul.f32 %v3164, 1.442695
    %v3166 = vpow.pop %v3165
    %v3167 = vadd.f32 %v3166, 1.0
    %v3168 = vrcp.pop %v3167
    %v3169 = vmul.f32 1.0, %v3168
    %v3170 = vxor.u32 %v3161, 2147483648
    %v3171 = vmul.f32 %v3170, 1.442695
    %v3172 = vpow.pop %v3171
    %v3173 = vadd.f32 %v3172, 1.0
    %v3174 = vrcp.pop %v3173
    %v3175 = vmul.f32 1.0, %v3174
    %v3176 = vtanh.pop %v3162
    %v3177 = vxor.u32 %v3163, 2147483648
    %v3178 = vmul.f32 %v3177, 1.442695
    %v3179 = vpow.pop %v3178
    %v3180 = vadd.f32 %v3179, 1.0
    %v3181 = vrcp.pop %v3180
    %v3182 = vmul.f32 1.0, %v3181
    %v3183 = vmul.f32 %v3175, %v2617
    %v3184 = vmul.f32 %v3169, %v3176
    %v3185 = vadd.f32 %v3183, %v3184
    %v3186 = vtanh.pop %v3185
    %v3187 = vmul.f32 %v3182, %v3186
    %3188 = vst [vmem:[#allocation3 + $0x8] sm:$0x3] %v3187
    %v3189 = vld [vmem:[#allocation2 + $0x20] sm:$0xc]
    %v3190 = vld [vmem:[#allocation2 + $0x28] sm:$0xc]
    %v3191 = vld [vmem:[#allocation2 + $0x30] sm:$0xc]
    %v3192 = vld [vmem:[#allocation2 + $0x38] sm:$0xc]
    %v3193 = vld [vmem:[%s3] sm:$0xff]
    %v3194 = vld [vmem:[%s3 + $0x8] sm:$0xff]
    %v3195 = vld [vmem:[%s3 + $0x10] sm:$0xff]
    %v3196 = vld [vmem:[%s3 + $0x18] sm:$0xff]
    %v3197 = vld [vmem:[%s3 + $0x20] sm:$0xff]
    %v3198 = vld [vmem:[%s3 + $0x28] sm:$0xff]
    %v3199 = vld [vmem:[%s3 + $0x30] sm:$0xff]
    %v3200 = vld [vmem:[%s3 + $0x38] sm:$0xff]
    %v3201 = vld [vmem:[%s3 + $0x40] sm:$0xf]
    %v3202 = vld [vmem:[%s3 + $0x48] sm:$0xf]
    %v3203 = vld [vmem:[%s3 + $0x50] sm:$0xf]
    %v3204 = vld [vmem:[%s3 + $0x58] sm:$0xf]
    %v3206 = vsel %vm331, %v3201, 0
    %v3209 = vsel %vm331, %v3202, 0
    %v3212 = vsel %vm331, %v3203, 0
    %v3215 = vsel %vm331, %v3204, 0
    %3217 = vmatprep.subr.mxu0 0.0
    %3218 = vmatpush1.msra.mxu0 0.0
    %3219 = vmatprep.subr.mxu0 0.0
    %3220 = vmatpush1.msra.mxu0 0.0
    %3221 = vmatprep.subr.mxu0 0.0
    %3222 = vmatpush1.msra.mxu0 0.0
    %3223 = vmatprep.subr.mxu0 0.0
    %3224 = vmatpush1.msra.mxu0 0.0
    %3225 = vmatprep.subr.mxu0 0.0
    %3226 = vmatpush1.msra.mxu0 0.0
    %3227 = vmatprep.subr.mxu0 0.0
    %3228 = vmatpush1.msra.mxu0 0.0
    %3229 = vmatprep.subr.mxu0 0.0
    %3230 = vmatpush1.msra.mxu0 0.0
    %3231 = vmatprep.subr.mxu0 0.0
    %3232 = vmatpush1.msra.mxu0 0.0
    %3233 = vmatprep.subr.mxu0 0.0
    %3234 = vmatpush1.msra.mxu0 0.0
    %3235 = vmatprep.subr.mxu0 0.0
    %3236 = vmatpush1.msra.mxu0 0.0
    %3237 = vmatprep.subr.mxu0 0.0
    %3238 = vmatpush1.msra.mxu0 0.0
    %3239 = vmatprep.subr.mxu0 0.0
    %3240 = vmatpush1.msra.mxu0 0.0
    %3241 = vmatprep.subr.mxu0 0.0
    %3242 = vmatpush1.msra.mxu0 0.0
    %3243 = vmatprep.subr.mxu0 %v3209
    %3244 = vmatpush1.msra.mxu0 %v3206
    %3245 = vmatprep.subr.mxu0 %v3198
    %3246 = vmatpush1.msra.mxu0 %v3197
    %3247 = vmatprep.subr.mxu0 %v3194
    %3248 = vmatpush1.msra.mxu0 %v3193
    %3249 = vmatprep.subr.mxu0 0.0
    %3250 = vmatpush2.msra.mxu0 0.0
    %3251 = vmatprep.subr.mxu0 0.0
    %3252 = vmatpush2.msra.mxu0 0.0
    %3253 = vmatprep.subr.mxu0 0.0
    %3254 = vmatpush2.msra.mxu0 0.0
    %3255 = vmatprep.subr.mxu0 0.0
    %3256 = vmatpush2.msra.mxu0 0.0
    %3257 = vmatprep.subr.mxu0 0.0
    %3258 = vmatpush2.msra.mxu0 0.0
    %3259 = vmatprep.subr.mxu0 0.0
    %3260 = vmatpush2.msra.mxu0 0.0
    %3261 = vmatprep.subr.mxu0 0.0
    %3262 = vmatpush2.msra.mxu0 0.0
    %3263 = vmatprep.subr.mxu0 0.0
    %3264 = vmatpush2.msra.mxu0 0.0
    %3265 = vmatprep.subr.mxu0 0.0
    %3266 = vmatpush2.msra.mxu0 0.0
    %3267 = vmatprep.subr.mxu0 0.0
    %3268 = vmatpush2.msra.mxu0 0.0
    %3269 = vmatprep.subr.mxu0 0.0
    %3270 = vmatpush2.msra.mxu0 0.0
    %3271 = vmatprep.subr.mxu0 0.0
    %3272 = vmatpush2.msra.mxu0 0.0
    %3273 = vmatprep.subr.mxu0 0.0
    %3274 = vmatpush2.msra.mxu0 0.0
    %3275 = vmatprep.subr.mxu0 0.0
    %3276 = vmatpush2.msra.mxu0 0.0
    %3277 = vmatprep.subr.mxu0 0.0
    %3278 = vmatpush2.msra.mxu0 0.0
    %3279 = vmatprep.subr.mxu0 0.0
    %3280 = vmatpush2.msra.mxu0 0.0
    %3281 = vmatprep.mubr.f32.mxu0 0.0
    %3282 = vmatmul.mubr.f32.gmra.mxu0 %v3004
    %v3283 = vpop.f32.mrf.mxu0
    %v3284 = vadd.f32 0.0, %v3283
    %v3285 = vpop.f32.mrf.mxu0
    %v3286 = vadd.f32 0.0, %v3285
    %3287 = vdwg.mxu0
    %3288 = vmatprep.subr.mxu0 0.0
    %3289 = vmatpush1.msra.mxu0 0.0
    %3290 = vmatprep.subr.mxu0 0.0
    %3291 = vmatpush1.msra.mxu0 0.0
    %3292 = vmatprep.subr.mxu0 0.0
    %3293 = vmatpush1.msra.mxu0 0.0
    %3294 = vmatprep.subr.mxu0 0.0
    %3295 = vmatpush1.msra.mxu0 0.0
    %3296 = vmatprep.subr.mxu0 0.0
    %3297 = vmatpush1.msra.mxu0 0.0
    %3298 = vmatprep.subr.mxu0 0.0
    %3299 = vmatpush1.msra.mxu0 0.0
    %3300 = vmatprep.subr.mxu0 0.0
    %3301 = vmatpush1.msra.mxu0 0.0
    %3302 = vmatprep.subr.mxu0 0.0
    %3303 = vmatpush1.msra.mxu0 0.0
    %3304 = vmatprep.subr.mxu0 0.0
    %3305 = vmatpush1.msra.mxu0 0.0
    %3306 = vmatprep.subr.mxu0 0.0
    %3307 = vmatpush1.msra.mxu0 0.0
    %3308 = vmatprep.subr.mxu0 0.0
    %3309 = vmatpush1.msra.mxu0 0.0
    %3310 = vmatprep.subr.mxu0 0.0
    %3311 = vmatpush1.msra.mxu0 0.0
    %3312 = vmatprep.subr.mxu0 0.0
    %3313 = vmatpush1.msra.mxu0 0.0
    %3314 = vmatprep.subr.mxu0 %v3215
    %3315 = vmatpush1.msra.mxu0 %v3212
    %3316 = vmatprep.subr.mxu0 %v3200
    %3317 = vmatpush1.msra.mxu0 %v3199
    %3318 = vmatprep.subr.mxu0 %v3196
    %3319 = vmatpush1.msra.mxu0 %v3195
    %3320 = vmatprep.subr.mxu0 0.0
    %3321 = vmatpush2.msra.mxu0 0.0
    %3322 = vmatprep.subr.mxu0 0.0
    %3323 = vmatpush2.msra.mxu0 0.0
    %3324 = vmatprep.subr.mxu0 0.0
    %3325 = vmatpush2.msra.mxu0 0.0
    %3326 = vmatprep.subr.mxu0 0.0
    %3327 = vmatpush2.msra.mxu0 0.0
    %3328 = vmatprep.subr.mxu0 0.0
    %3329 = vmatpush2.msra.mxu0 0.0
    %3330 = vmatprep.subr.mxu0 0.0
    %3331 = vmatpush2.msra.mxu0 0.0
    %3332 = vmatprep.subr.mxu0 0.0
    %3333 = vmatpush2.msra.mxu0 0.0
    %3334 = vmatprep.subr.mxu0 0.0
    %3335 = vmatpush2.msra.mxu0 0.0
    %3336 = vmatprep.subr.mxu0 0.0
    %3337 = vmatpush2.msra.mxu0 0.0
    %3338 = vmatprep.subr.mxu0 0.0
    %3339 = vmatpush2.msra.mxu0 0.0
    %3340 = vmatprep.subr.mxu0 0.0
    %3341 = vmatpush2.msra.mxu0 0.0
    %3342 = vmatprep.subr.mxu0 0.0
    %3343 = vmatpush2.msra.mxu0 0.0
    %3344 = vmatprep.subr.mxu0 0.0
    %3345 = vmatpush2.msra.mxu0 0.0
    %3346 = vmatprep.subr.mxu0 0.0
    %3347 = vmatpush2.msra.mxu0 0.0
    %3348 = vmatprep.subr.mxu0 0.0
    %3349 = vmatpush2.msra.mxu0 0.0
    %3350 = vmatprep.subr.mxu0 0.0
    %3351 = vmatpush2.msra.mxu0 0.0
    %3352 = vmatprep.mubr.f32.mxu0 0.0
    %3353 = vmatmul.mubr.f32.gmra.mxu0 %v3004
    %v3354 = vpop.f32.mrf.mxu0
    %v3355 = vadd.f32 0.0, %v3354
    %v3356 = vpop.f32.mrf.mxu0
    %v3357 = vadd.f32 0.0, %v3356
    %3358 = vdwg.mxu0
    %v3363 = vrot.slane %v3284, 6
    %v3364 = vrot.slane %v3286, 6
    %v3365 = vrot.slane %v3355, 6
    %v3366 = vrot.slane %v3357, 6
    %v3371 = vadd.f32 %v3189, %v3363
    %v3372 = vadd.f32 %v3190, %v3364
    %v3373 = vadd.f32 %v3191, %v3365
    %v3374 = vadd.f32 %v3192, %v3366
    %v3375 = vxor.u32 %v3371, 2147483648
    %v3376 = vmul.f32 %v3375, 1.442695
    %v3377 = vpow.pop %v3376
    %v3378 = vadd.f32 %v3377, 1.0
    %v3379 = vrcp.pop %v3378
    %v3380 = vmul.f32 1.0, %v3379
    %v3381 = vxor.u32 %v3372, 2147483648
    %v3382 = vmul.f32 %v3381, 1.442695
    %v3383 = vpow.pop %v3382
    %v3384 = vadd.f32 %v3383, 1.0
    %v3385 = vrcp.pop %v3384
    %v3386 = vmul.f32 1.0, %v3385
    %v3387 = vtanh.pop %v3373
    %v3388 = vxor.u32 %v3374, 2147483648
    %v3389 = vmul.f32 %v3388, 1.442695
    %v3390 = vpow.pop %v3389
    %v3391 = vadd.f32 %v3390, 1.0
    %v3392 = vrcp.pop %v3391
    %v3393 = vmul.f32 1.0, %v3392
    %v3395 = vrot.slane %v2819, 6
    %v3397 = vmul.f32 %v3386, %v3395
    %v3398 = vmul.f32 %v3380, %v3387
    %v3399 = vadd.f32 %v3397, %v3398
    %v3400 = vtanh.pop %v3399
    %v3401 = vmul.f32 %v3393, %v3400
    %v3402 = vld [vmem:[#allocation7] sm:$0xff]
    %v3403 = vld [vmem:[#allocation7 + $0x8] sm:$0xff]
    %v3404 = vld [vmem:[#allocation7 + $0x10] sm:$0xff]
    %v3405 = vld [vmem:[#allocation7 + $0x18] sm:$0xff]
    %v3406 = vld [vmem:[#allocation7 + $0x20] sm:$0xff]
    %v3407 = vld [vmem:[#allocation7 + $0x28] sm:$0xff]
    %v3408 = vld [vmem:[#allocation7 + $0x30] sm:$0xff]
    %v3409 = vld [vmem:[#allocation7 + $0x38] sm:$0xff]
    %v3410 = vld [vmem:[#allocation7 + $0x40] sm:$0xf]
    %v3411 = vld [vmem:[#allocation7 + $0x48] sm:$0xf]
    %v3412 = vld [vmem:[#allocation7 + $0x50] sm:$0xf]
    %v3413 = vld [vmem:[#allocation7 + $0x58] sm:$0xf]
    %v3414 = vld [vmem:[#allocation9] sm:$0xff]
    %v3415 = vld [vmem:[#allocation9 + $0x8] sm:$0xff]
    %v3416 = vld [vmem:[#allocation9 + $0x10] sm:$0xff]
    %v3417 = vld [vmem:[#allocation9 + $0x18] sm:$0xff]
    %v3418 = vld [vmem:[#allocation9 + $0x20] sm:$0xff]
    %v3419 = vld [vmem:[#allocation9 + $0x28] sm:$0xff]
    %v3420 = vld [vmem:[#allocation9 + $0x30] sm:$0xff]
    %v3421 = vld [vmem:[#allocation9 + $0x38] sm:$0xff]
    %v3422 = vld [vmem:[#allocation9 + $0x40] sm:$0xf]
    %v3423 = vld [vmem:[#allocation9 + $0x48] sm:$0xf]
    %v3424 = vld [vmem:[#allocation9 + $0x50] sm:$0xf]
    %v3425 = vld [vmem:[#allocation9 + $0x58] sm:$0xf]
    %v3427 = vsel %vm327, %v3187, 0
    %v3430 = vsel %vm331, %v3422, 0
    %v3433 = vsel %vm331, %v3423, 0
    %v3436 = vsel %vm331, %v3424, 0
    %v3439 = vsel %vm331, %v3425, 0
    %3441 = vmatprep.subr.mxu0 0.0
    %3442 = vmatpush1.msra.mxu0 0.0
    %3443 = vmatprep.subr.mxu0 0.0
    %3444 = vmatpush1.msra.mxu0 0.0
    %3445 = vmatprep.subr.mxu0 0.0
    %3446 = vmatpush1.msra.mxu0 0.0
    %3447 = vmatprep.subr.mxu0 0.0
    %3448 = vmatpush1.msra.mxu0 0.0
    %3449 = vmatprep.subr.mxu0 0.0
    %3450 = vmatpush1.msra.mxu0 0.0
    %3451 = vmatprep.subr.mxu0 0.0
    %3452 = vmatpush1.msra.mxu0 0.0
    %3453 = vmatprep.subr.mxu0 0.0
    %3454 = vmatpush1.msra.mxu0 0.0
    %3455 = vmatprep.subr.mxu0 0.0
    %3456 = vmatpush1.msra.mxu0 0.0
    %3457 = vmatprep.subr.mxu0 0.0
    %3458 = vmatpush1.msra.mxu0 0.0
    %3459 = vmatprep.subr.mxu0 0.0
    %3460 = vmatpush1.msra.mxu0 0.0
    %3461 = vmatprep.subr.mxu0 0.0
    %3462 = vmatpush1.msra.mxu0 0.0
    %3463 = vmatprep.subr.mxu0 0.0
    %3464 = vmatpush1.msra.mxu0 0.0
    %3465 = vmatprep.subr.mxu0 0.0
    %3466 = vmatpush1.msra.mxu0 0.0
    %3467 = vmatprep.subr.mxu0 %v3433
    %3468 = vmatpush1.msra.mxu0 %v3430
    %3469 = vmatprep.subr.mxu0 %v3419
    %3470 = vmatpush1.msra.mxu0 %v3418
    %3471 = vmatprep.subr.mxu0 %v3415
    %3472 = vmatpush1.msra.mxu0 %v3414
    %3473 = vmatprep.subr.mxu0 0.0
    %3474 = vmatpush2.msra.mxu0 0.0
    %3475 = vmatprep.subr.mxu0 0.0
    %3476 = vmatpush2.msra.mxu0 0.0
    %3477 = vmatprep.subr.mxu0 0.0
    %3478 = vmatpush2.msra.mxu0 0.0
    %3479 = vmatprep.subr.mxu0 0.0
    %3480 = vmatpush2.msra.mxu0 0.0
    %3481 = vmatprep.subr.mxu0 0.0
    %3482 = vmatpush2.msra.mxu0 0.0
    %3483 = vmatprep.subr.mxu0 0.0
    %3484 = vmatpush2.msra.mxu0 0.0
    %3485 = vmatprep.subr.mxu0 0.0
    %3486 = vmatpush2.msra.mxu0 0.0
    %3487 = vmatprep.subr.mxu0 0.0
    %3488 = vmatpush2.msra.mxu0 0.0
    %3489 = vmatprep.subr.mxu0 0.0
    %3490 = vmatpush2.msra.mxu0 0.0
    %3491 = vmatprep.subr.mxu0 0.0
    %3492 = vmatpush2.msra.mxu0 0.0
    %3493 = vmatprep.subr.mxu0 0.0
    %3494 = vmatpush2.msra.mxu0 0.0
    %3495 = vmatprep.subr.mxu0 0.0
    %3496 = vmatpush2.msra.mxu0 0.0
    %3497 = vmatprep.subr.mxu0 0.0
    %3498 = vmatpush2.msra.mxu0 0.0
    %3499 = vmatprep.subr.mxu0 0.0
    %3500 = vmatpush2.msra.mxu0 0.0
    %3501 = vmatprep.subr.mxu0 0.0
    %3502 = vmatpush2.msra.mxu0 0.0
    %3503 = vmatprep.subr.mxu0 0.0
    %3504 = vmatpush2.msra.mxu0 0.0
    %3505 = vmatprep.mubr.f32.mxu0 0.0
    %3506 = vmatmul.mubr.f32.gmra.mxu0 %v3427
    %v3507 = vpop.f32.mrf.mxu0
    %v3508 = vadd.f32 0.0, %v3507
    %v3509 = vpop.f32.mrf.mxu0
    %v3510 = vadd.f32 0.0, %v3509
    %3511 = vdwg.mxu0
    %3512 = vmatprep.subr.mxu0 0.0
    %3513 = vmatpush1.msra.mxu0 0.0
    %3514 = vmatprep.subr.mxu0 0.0
    %3515 = vmatpush1.msra.mxu0 0.0
    %3516 = vmatprep.subr.mxu0 0.0
    %3517 = vmatpush1.msra.mxu0 0.0
    %3518 = vmatprep.subr.mxu0 0.0
    %3519 = vmatpush1.msra.mxu0 0.0
    %3520 = vmatprep.subr.mxu0 0.0
    %3521 = vmatpush1.msra.mxu0 0.0
    %3522 = vmatprep.subr.mxu0 0.0
    %3523 = vmatpush1.msra.mxu0 0.0
    %3524 = vmatprep.subr.mxu0 0.0
    %3525 = vmatpush1.msra.mxu0 0.0
    %3526 = vmatprep.subr.mxu0 0.0
    %3527 = vmatpush1.msra.mxu0 0.0
    %3528 = vmatprep.subr.mxu0 0.0
    %3529 = vmatpush1.msra.mxu0 0.0
    %3530 = vmatprep.subr.mxu0 0.0
    %3531 = vmatpush1.msra.mxu0 0.0
    %3532 = vmatprep.subr.mxu0 0.0
    %3533 = vmatpush1.msra.mxu0 0.0
    %3534 = vmatprep.subr.mxu0 0.0
    %3535 = vmatpush1.msra.mxu0 0.0
    %3536 = vmatprep.subr.mxu0 0.0
    %3537 = vmatpush1.msra.mxu0 0.0
    %3538 = vmatprep.subr.mxu0 %v3439
    %3539 = vmatpush1.msra.mxu0 %v3436
    %3540 = vmatprep.subr.mxu0 %v3421
    %3541 = vmatpush1.msra.mxu0 %v3420
    %3542 = vmatprep.subr.mxu0 %v3417
    %3543 = vmatpush1.msra.mxu0 %v3416
    %3544 = vmatprep.subr.mxu0 0.0
    %3545 = vmatpush2.msra.mxu0 0.0
    %3546 = vmatprep.subr.mxu0 0.0
    %3547 = vmatpush2.msra.mxu0 0.0
    %3548 = vmatprep.subr.mxu0 0.0
    %3549 = vmatpush2.msra.mxu0 0.0
    %3550 = vmatprep.subr.mxu0 0.0
    %3551 = vmatpush2.msra.mxu0 0.0
    %3552 = vmatprep.subr.mxu0 0.0
    %3553 = vmatpush2.msra.mxu0 0.0
    %3554 = vmatprep.subr.mxu0 0.0
    %3555 = vmatpush2.msra.mxu0 0.0
    %3556 = vmatprep.subr.mxu0 0.0
    %3557 = vmatpush2.msra.mxu0 0.0
    %3558 = vmatprep.subr.mxu0 0.0
    %3559 = vmatpush2.msra.mxu0 0.0
    %3560 = vmatprep.subr.mxu0 0.0
    %3561 = vmatpush2.msra.mxu0 0.0
    %3562 = vmatprep.subr.mxu0 0.0
    %3563 = vmatpush2.msra.mxu0 0.0
    %3564 = vmatprep.subr.mxu0 0.0
    %3565 = vmatpush2.msra.mxu0 0.0
    %3566 = vmatprep.subr.mxu0 0.0
    %3567 = vmatpush2.msra.mxu0 0.0
    %3568 = vmatprep.subr.mxu0 0.0
    %3569 = vmatpush2.msra.mxu0 0.0
    %3570 = vmatprep.subr.mxu0 0.0
    %3571 = vmatpush2.msra.mxu0 0.0
    %3572 = vmatprep.subr.mxu0 0.0
    %3573 = vmatpush2.msra.mxu0 0.0
    %3574 = vmatprep.subr.mxu0 0.0
    %3575 = vmatpush2.msra.mxu0 0.0
    %3576 = vmatprep.mubr.f32.mxu0 0.0
    %3577 = vmatmul.mubr.f32.gmra.mxu0 %v3427
    %v3578 = vpop.f32.mrf.mxu0
    %v3579 = vadd.f32 0.0, %v3578
    %v3580 = vpop.f32.mrf.mxu0
    %v3581 = vadd.f32 0.0, %v3580
    %3582 = vdwg.mxu0
    %v3584 = vrot.slane %v3401, 2
    %v3585 = vsel %vm327, %v3584, 0
    %v3588 = vsel %vm331, %v3410, 0
    %v3591 = vsel %vm331, %v3411, 0
    %v3594 = vsel %vm331, %v3412, 0
    %v3597 = vsel %vm331, %v3413, 0
    %3599 = vmatprep.subr.mxu0 0.0
    %3600 = vmatpush1.msra.mxu0 0.0
    %3601 = vmatprep.subr.mxu0 0.0
    %3602 = vmatpush1.msra.mxu0 0.0
    %3603 = vmatprep.subr.mxu0 0.0
    %3604 = vmatpush1.msra.mxu0 0.0
    %3605 = vmatprep.subr.mxu0 0.0
    %3606 = vmatpush1.msra.mxu0 0.0
    %3607 = vmatprep.subr.mxu0 0.0
    %3608 = vmatpush1.msra.mxu0 0.0
    %3609 = vmatprep.subr.mxu0 0.0
    %3610 = vmatpush1.msra.mxu0 0.0
    %3611 = vmatprep.subr.mxu0 0.0
    %3612 = vmatpush1.msra.mxu0 0.0
    %3613 = vmatprep.subr.mxu0 0.0
    %3614 = vmatpush1.msra.mxu0 0.0
    %3615 = vmatprep.subr.mxu0 0.0
    %3616 = vmatpush1.msra.mxu0 0.0
    %3617 = vmatprep.subr.mxu0 0.0
    %3618 = vmatpush1.msra.mxu0 0.0
    %3619 = vmatprep.subr.mxu0 0.0
    %3620 = vmatpush1.msra.mxu0 0.0
    %3621 = vmatprep.subr.mxu0 0.0
    %3622 = vmatpush1.msra.mxu0 0.0
    %3623 = vmatprep.subr.mxu0 0.0
    %3624 = vmatpush1.msra.mxu0 0.0
    %3625 = vmatprep.subr.mxu0 %v3591
    %3626 = vmatpush1.msra.mxu0 %v3588
    %3627 = vmatprep.subr.mxu0 %v3407
    %3628 = vmatpush1.msra.mxu0 %v3406
    %3629 = vmatprep.subr.mxu0 %v3403
    %3630 = vmatpush1.msra.mxu0 %v3402
    %3631 = vmatprep.subr.mxu0 0.0
    %3632 = vmatpush2.msra.mxu0 0.0
    %3633 = vmatprep.subr.mxu0 0.0
    %3634 = vmatpush2.msra.mxu0 0.0
    %3635 = vmatprep.subr.mxu0 0.0
    %3636 = vmatpush2.msra.mxu0 0.0
    %3637 = vmatprep.subr.mxu0 0.0
    %3638 = vmatpush2.msra.mxu0 0.0
    %3639 = vmatprep.subr.mxu0 0.0
    %3640 = vmatpush2.msra.mxu0 0.0
    %3641 = vmatprep.subr.mxu0 0.0
    %3642 = vmatpush2.msra.mxu0 0.0
    %3643 = vmatprep.subr.mxu0 0.0
    %3644 = vmatpush2.msra.mxu0 0.0
    %3645 = vmatprep.subr.mxu0 0.0
    %3646 = vmatpush2.msra.mxu0 0.0
    %3647 = vmatprep.subr.mxu0 0.0
    %3648 = vmatpush2.msra.mxu0 0.0
    %3649 = vmatprep.subr.mxu0 0.0
    %3650 = vmatpush2.msra.mxu0 0.0
    %3651 = vmatprep.subr.mxu0 0.0
    %3652 = vmatpush2.msra.mxu0 0.0
    %3653 = vmatprep.subr.mxu0 0.0
    %3654 = vmatpush2.msra.mxu0 0.0
    %3655 = vmatprep.subr.mxu0 0.0
    %3656 = vmatpush2.msra.mxu0 0.0
    %3657 = vmatprep.subr.mxu0 0.0
    %3658 = vmatpush2.msra.mxu0 0.0
    %3659 = vmatprep.subr.mxu0 0.0
    %3660 = vmatpush2.msra.mxu0 0.0
    %3661 = vmatprep.subr.mxu0 0.0
    %3662 = vmatpush2.msra.mxu0 0.0
    %3663 = vmatprep.mubr.f32.mxu0 0.0
    %3664 = vmatmul.mubr.f32.gmra.mxu0 %v3585
    %v3665 = vpop.f32.mrf.mxu0
    %v3666 = vadd.f32 %v3508, %v3665
    %v3667 = vpop.f32.mrf.mxu0
    %v3668 = vadd.f32 %v3510, %v3667
    %3669 = vdwg.mxu0
    %3670 = vmatprep.subr.mxu0 0.0
    %3671 = vmatpush1.msra.mxu0 0.0
    %3672 = vmatprep.subr.mxu0 0.0
    %3673 = vmatpush1.msra.mxu0 0.0
    %3674 = vmatprep.subr.mxu0 0.0
    %3675 = vmatpush1.msra.mxu0 0.0
    %3676 = vmatprep.subr.mxu0 0.0
    %3677 = vmatpush1.msra.mxu0 0.0
    %3678 = vmatprep.subr.mxu0 0.0
    %3679 = vmatpush1.msra.mxu0 0.0
    %3680 = vmatprep.subr.mxu0 0.0
    %3681 = vmatpush1.msra.mxu0 0.0
    %3682 = vmatprep.subr.mxu0 0.0
    %3683 = vmatpush1.msra.mxu0 0.0
    %3684 = vmatprep.subr.mxu0 0.0
    %3685 = vmatpush1.msra.mxu0 0.0
    %3686 = vmatprep.subr.mxu0 0.0
    %3687 = vmatpush1.msra.mxu0 0.0
    %3688 = vmatprep.subr.mxu0 0.0
    %3689 = vmatpush1.msra.mxu0 0.0
    %3690 = vmatprep.subr.mxu0 0.0
    %3691 = vmatpush1.msra.mxu0 0.0
    %3692 = vmatprep.subr.mxu0 0.0
    %3693 = vmatpush1.msra.mxu0 0.0
    %3694 = vmatprep.subr.mxu0 0.0
    %3695 = vmatpush1.msra.mxu0 0.0
    %3696 = vmatprep.subr.mxu0 %v3597
    %3697 = vmatpush1.msra.mxu0 %v3594
    %3698 = vmatprep.subr.mxu0 %v3409
    %3699 = vmatpush1.msra.mxu0 %v3408
    %3700 = vmatprep.subr.mxu0 %v3405
    %3701 = vmatpush1.msra.mxu0 %v3404
    %3702 = vmatprep.subr.mxu0 0.0
    %3703 = vmatpush2.msra.mxu0 0.0
    %3704 = vmatprep.subr.mxu0 0.0
    %3705 = vmatpush2.msra.mxu0 0.0
    %3706 = vmatprep.subr.mxu0 0.0
    %3707 = vmatpush2.msra.mxu0 0.0
    %3708 = vmatprep.subr.mxu0 0.0
    %3709 = vmatpush2.msra.mxu0 0.0
    %3710 = vmatprep.subr.mxu0 0.0
    %3711 = vmatpush2.msra.mxu0 0.0
    %3712 = vmatprep.subr.mxu0 0.0
    %3713 = vmatpush2.msra.mxu0 0.0
    %3714 = vmatprep.subr.mxu0 0.0
    %3715 = vmatpush2.msra.mxu0 0.0
    %3716 = vmatprep.subr.mxu0 0.0
    %3717 = vmatpush2.msra.mxu0 0.0
    %3718 = vmatprep.subr.mxu0 0.0
    %3719 = vmatpush2.msra.mxu0 0.0
    %3720 = vmatprep.subr.mxu0 0.0
    %3721 = vmatpush2.msra.mxu0 0.0
    %3722 = vmatprep.subr.mxu0 0.0
    %3723 = vmatpush2.msra.mxu0 0.0
    %3724 = vmatprep.subr.mxu0 0.0
    %3725 = vmatpush2.msra.mxu0 0.0
    %3726 = vmatprep.subr.mxu0 0.0
    %3727 = vmatpush2.msra.mxu0 0.0
    %3728 = vmatprep.subr.mxu0 0.0
    %3729 = vmatpush2.msra.mxu0 0.0
    %3730 = vmatprep.subr.mxu0 0.0
    %3731 = vmatpush2.msra.mxu0 0.0
    %3732 = vmatprep.subr.mxu0 0.0
    %3733 = vmatpush2.msra.mxu0 0.0
    %3734 = vmatprep.mubr.f32.mxu0 0.0
    %3735 = vmatmul.mubr.f32.gmra.mxu0 %v3585
    %v3736 = vpop.f32.mrf.mxu0
    %v3737 = vadd.f32 %v3579, %v3736
    %v3738 = vpop.f32.mrf.mxu0
    %v3739 = vadd.f32 %v3581, %v3738
    %3740 = vdwg.mxu0
    %v3741 = vadd.f32 %v3666, %v294
    %v3742 = vadd.f32 %v3668, %v298
    %v3743 = vadd.f32 %v3737, %v302
    %v3744 = vadd.f32 %v3739, %v306
    %v3745 = vxor.u32 %v3741, 2147483648
    %v3746 = vmul.f32 %v3745, 1.442695
    %v3747 = vpow.pop %v3746
    %v3748 = vadd.f32 %v3747, 1.0
    %v3749 = vrcp.pop %v3748
    %v3750 = vmul.f32 1.0, %v3749
    %v3751 = vxor.u32 %v3742, 2147483648
    %v3752 = vmul.f32 %v3751, 1.442695
    %v3753 = vpow.pop %v3752
    %v3754 = vadd.f32 %v3753, 1.0
    %v3755 = vrcp.pop %v3754
    %v3756 = vmul.f32 1.0, %v3755
    %v3757 = vtanh.pop %v3743
    %v3758 = vxor.u32 %v3744, 2147483648
    %v3759 = vmul.f32 %v3758, 1.442695
    %v3760 = vpow.pop %v3759
    %v3761 = vadd.f32 %v3760, 1.0
    %v3762 = vrcp.pop %v3761
    %v3763 = vmul.f32 1.0, %v3762
    %v3764 = vmul.f32 %v3756, %v3185
    %v3765 = vmul.f32 %v3750, %v3757
    %v3766 = vadd.f32 %v3764, %v3765
    %v3767 = vtanh.pop %v3766
    %v3768 = vmul.f32 %v3763, %v3767
    %3769 = vst [vmem:[#allocation3 + $0xa] sm:$0x3] %v3768
    %v3770 = vld [vmem:[#allocation2 + $0x20] sm:$0x30]
    %v3771 = vld [vmem:[#allocation2 + $0x28] sm:$0x30]
    %v3772 = vld [vmem:[#allocation2 + $0x30] sm:$0x30]
    %v3773 = vld [vmem:[#allocation2 + $0x38] sm:$0x30]
    %v3774 = vld [vmem:[%s3] sm:$0xff]
    %v3775 = vld [vmem:[%s3 + $0x8] sm:$0xff]
    %v3776 = vld [vmem:[%s3 + $0x10] sm:$0xff]
    %v3777 = vld [vmem:[%s3 + $0x18] sm:$0xff]
    %v3778 = vld [vmem:[%s3 + $0x20] sm:$0xff]
    %v3779 = vld [vmem:[%s3 + $0x28] sm:$0xff]
    %v3780 = vld [vmem:[%s3 + $0x30] sm:$0xff]
    %v3781 = vld [vmem:[%s3 + $0x38] sm:$0xff]
    %v3782 = vld [vmem:[%s3 + $0x40] sm:$0xf]
    %v3783 = vld [vmem:[%s3 + $0x48] sm:$0xf]
    %v3784 = vld [vmem:[%s3 + $0x50] sm:$0xf]
    %v3785 = vld [vmem:[%s3 + $0x58] sm:$0xf]
    %v3787 = vsel %vm331, %v3782, 0
    %v3790 = vsel %vm331, %v3783, 0
    %v3793 = vsel %vm331, %v3784, 0
    %v3796 = vsel %vm331, %v3785, 0
    %3798 = vmatprep.subr.mxu0 0.0
    %3799 = vmatpush1.msra.mxu0 0.0
    %3800 = vmatprep.subr.mxu0 0.0
    %3801 = vmatpush1.msra.mxu0 0.0
    %3802 = vmatprep.subr.mxu0 0.0
    %3803 = vmatpush1.msra.mxu0 0.0
    %3804 = vmatprep.subr.mxu0 0.0
    %3805 = vmatpush1.msra.mxu0 0.0
    %3806 = vmatprep.subr.mxu0 0.0
    %3807 = vmatpush1.msra.mxu0 0.0
    %3808 = vmatprep.subr.mxu0 0.0
    %3809 = vmatpush1.msra.mxu0 0.0
    %3810 = vmatprep.subr.mxu0 0.0
    %3811 = vmatpush1.msra.mxu0 0.0
    %3812 = vmatprep.subr.mxu0 0.0
    %3813 = vmatpush1.msra.mxu0 0.0
    %3814 = vmatprep.subr.mxu0 0.0
    %3815 = vmatpush1.msra.mxu0 0.0
    %3816 = vmatprep.subr.mxu0 0.0
    %3817 = vmatpush1.msra.mxu0 0.0
    %3818 = vmatprep.subr.mxu0 0.0
    %3819 = vmatpush1.msra.mxu0 0.0
    %3820 = vmatprep.subr.mxu0 0.0
    %3821 = vmatpush1.msra.mxu0 0.0
    %3822 = vmatprep.subr.mxu0 0.0
    %3823 = vmatpush1.msra.mxu0 0.0
    %3824 = vmatprep.subr.mxu0 %v3790
    %3825 = vmatpush1.msra.mxu0 %v3787
    %3826 = vmatprep.subr.mxu0 %v3779
    %3827 = vmatpush1.msra.mxu0 %v3778
    %3828 = vmatprep.subr.mxu0 %v3775
    %3829 = vmatpush1.msra.mxu0 %v3774
    %3830 = vmatprep.subr.mxu0 0.0
    %3831 = vmatpush2.msra.mxu0 0.0
    %3832 = vmatprep.subr.mxu0 0.0
    %3833 = vmatpush2.msra.mxu0 0.0
    %3834 = vmatprep.subr.mxu0 0.0
    %3835 = vmatpush2.msra.mxu0 0.0
    %3836 = vmatprep.subr.mxu0 0.0
    %3837 = vmatpush2.msra.mxu0 0.0
    %3838 = vmatprep.subr.mxu0 0.0
    %3839 = vmatpush2.msra.mxu0 0.0
    %3840 = vmatprep.subr.mxu0 0.0
    %3841 = vmatpush2.msra.mxu0 0.0
    %3842 = vmatprep.subr.mxu0 0.0
    %3843 = vmatpush2.msra.mxu0 0.0
    %3844 = vmatprep.subr.mxu0 0.0
    %3845 = vmatpush2.msra.mxu0 0.0
    %3846 = vmatprep.subr.mxu0 0.0
    %3847 = vmatpush2.msra.mxu0 0.0
    %3848 = vmatprep.subr.mxu0 0.0
    %3849 = vmatpush2.msra.mxu0 0.0
    %3850 = vmatprep.subr.mxu0 0.0
    %3851 = vmatpush2.msra.mxu0 0.0
    %3852 = vmatprep.subr.mxu0 0.0
    %3853 = vmatpush2.msra.mxu0 0.0
    %3854 = vmatprep.subr.mxu0 0.0
    %3855 = vmatpush2.msra.mxu0 0.0
    %3856 = vmatprep.subr.mxu0 0.0
    %3857 = vmatpush2.msra.mxu0 0.0
    %3858 = vmatprep.subr.mxu0 0.0
    %3859 = vmatpush2.msra.mxu0 0.0
    %3860 = vmatprep.subr.mxu0 0.0
    %3861 = vmatpush2.msra.mxu0 0.0
    %3862 = vmatprep.mubr.f32.mxu0 0.0
    %3863 = vmatmul.mubr.f32.gmra.mxu0 %v3585
    %v3864 = vpop.f32.mrf.mxu0
    %v3865 = vadd.f32 0.0, %v3864
    %v3866 = vpop.f32.mrf.mxu0
    %v3867 = vadd.f32 0.0, %v3866
    %3868 = vdwg.mxu0
    %3869 = vmatprep.subr.mxu0 0.0
    %3870 = vmatpush1.msra.mxu0 0.0
    %3871 = vmatprep.subr.mxu0 0.0
    %3872 = vmatpush1.msra.mxu0 0.0
    %3873 = vmatprep.subr.mxu0 0.0
    %3874 = vmatpush1.msra.mxu0 0.0
    %3875 = vmatprep.subr.mxu0 0.0
    %3876 = vmatpush1.msra.mxu0 0.0
    %3877 = vmatprep.subr.mxu0 0.0
    %3878 = vmatpush1.msra.mxu0 0.0
    %3879 = vmatprep.subr.mxu0 0.0
    %3880 = vmatpush1.msra.mxu0 0.0
    %3881 = vmatprep.subr.mxu0 0.0
    %3882 = vmatpush1.msra.mxu0 0.0
    %3883 = vmatprep.subr.mxu0 0.0
    %3884 = vmatpush1.msra.mxu0 0.0
    %3885 = vmatprep.subr.mxu0 0.0
    %3886 = vmatpush1.msra.mxu0 0.0
    %3887 = vmatprep.subr.mxu0 0.0
    %3888 = vmatpush1.msra.mxu0 0.0
    %3889 = vmatprep.subr.mxu0 0.0
    %3890 = vmatpush1.msra.mxu0 0.0
    %3891 = vmatprep.subr.mxu0 0.0
    %3892 = vmatpush1.msra.mxu0 0.0
    %3893 = vmatprep.subr.mxu0 0.0
    %3894 = vmatpush1.msra.mxu0 0.0
    %3895 = vmatprep.subr.mxu0 %v3796
    %3896 = vmatpush1.msra.mxu0 %v3793
    %3897 = vmatprep.subr.mxu0 %v3781
    %3898 = vmatpush1.msra.mxu0 %v3780
    %3899 = vmatprep.subr.mxu0 %v3777
    %3900 = vmatpush1.msra.mxu0 %v3776
    %3901 = vmatprep.subr.mxu0 0.0
    %3902 = vmatpush2.msra.mxu0 0.0
    %3903 = vmatprep.subr.mxu0 0.0
    %3904 = vmatpush2.msra.mxu0 0.0
    %3905 = vmatprep.subr.mxu0 0.0
    %3906 = vmatpush2.msra.mxu0 0.0
    %3907 = vmatprep.subr.mxu0 0.0
    %3908 = vmatpush2.msra.mxu0 0.0
    %3909 = vmatprep.subr.mxu0 0.0
    %3910 = vmatpush2.msra.mxu0 0.0
    %3911 = vmatprep.subr.mxu0 0.0
    %3912 = vmatpush2.msra.mxu0 0.0
    %3913 = vmatprep.subr.mxu0 0.0
    %3914 = vmatpush2.msra.mxu0 0.0
    %3915 = vmatprep.subr.mxu0 0.0
    %3916 = vmatpush2.msra.mxu0 0.0
    %3917 = vmatprep.subr.mxu0 0.0
    %3918 = vmatpush2.msra.mxu0 0.0
    %3919 = vmatprep.subr.mxu0 0.0
    %3920 = vmatpush2.msra.mxu0 0.0
    %3921 = vmatprep.subr.mxu0 0.0
    %3922 = vmatpush2.msra.mxu0 0.0
    %3923 = vmatprep.subr.mxu0 0.0
    %3924 = vmatpush2.msra.mxu0 0.0
    %3925 = vmatprep.subr.mxu0 0.0
    %3926 = vmatpush2.msra.mxu0 0.0
    %3927 = vmatprep.subr.mxu0 0.0
    %3928 = vmatpush2.msra.mxu0 0.0
    %3929 = vmatprep.subr.mxu0 0.0
    %3930 = vmatpush2.msra.mxu0 0.0
    %3931 = vmatprep.subr.mxu0 0.0
    %3932 = vmatpush2.msra.mxu0 0.0
    %3933 = vmatprep.mubr.f32.mxu0 0.0
    %3934 = vmatmul.mubr.f32.gmra.mxu0 %v3585
    %v3935 = vpop.f32.mrf.mxu0
    %v3936 = vadd.f32 0.0, %v3935
    %v3937 = vpop.f32.mrf.mxu0
    %v3938 = vadd.f32 0.0, %v3937
    %3939 = vdwg.mxu0
    %v3944 = vrot.slane %v3865, 4
    %v3945 = vrot.slane %v3867, 4
    %v3946 = vrot.slane %v3936, 4
    %v3947 = vrot.slane %v3938, 4
    %v3952 = vadd.f32 %v3770, %v3944
    %v3953 = vadd.f32 %v3771, %v3945
    %v3954 = vadd.f32 %v3772, %v3946
    %v3955 = vadd.f32 %v3773, %v3947
    %v3956 = vxor.u32 %v3952, 2147483648
    %v3957 = vmul.f32 %v3956, 1.442695
    %v3958 = vpow.pop %v3957
    %v3959 = vadd.f32 %v3958, 1.0
    %v3960 = vrcp.pop %v3959
    %v3961 = vmul.f32 1.0, %v3960
    %v3962 = vxor.u32 %v3953, 2147483648
    %v3963 = vmul.f32 %v3962, 1.442695
    %v3964 = vpow.pop %v3963
    %v3965 = vadd.f32 %v3964, 1.0
    %v3966 = vrcp.pop %v3965
    %v3967 = vmul.f32 1.0, %v3966
    %v3968 = vtanh.pop %v3954
    %v3969 = vxor.u32 %v3955, 2147483648
    %v3970 = vmul.f32 %v3969, 1.442695
    %v3971 = vpow.pop %v3970
    %v3972 = vadd.f32 %v3971, 1.0
    %v3973 = vrcp.pop %v3972
    %v3974 = vmul.f32 1.0, %v3973
    %v3976 = vrot.slane %v3399, 6
    %v3978 = vmul.f32 %v3967, %v3976
    %v3979 = vmul.f32 %v3961, %v3968
    %v3980 = vadd.f32 %v3978, %v3979
    %v3981 = vtanh.pop %v3980
    %v3982 = vmul.f32 %v3974, %v3981
    %v3983 = vld [vmem:[#allocation7] sm:$0xff]
    %v3984 = vld [vmem:[#allocation7 + $0x8] sm:$0xff]
    %v3985 = vld [vmem:[#allocation7 + $0x10] sm:$0xff]
    %v3986 = vld [vmem:[#allocation7 + $0x18] sm:$0xff]
    %v3987 = vld [vmem:[#allocation7 + $0x20] sm:$0xff]
    %v3988 = vld [vmem:[#allocation7 + $0x28] sm:$0xff]
    %v3989 = vld [vmem:[#allocation7 + $0x30] sm:$0xff]
    %v3990 = vld [vmem:[#allocation7 + $0x38] sm:$0xff]
    %v3991 = vld [vmem:[#allocation7 + $0x40] sm:$0xf]
    %v3992 = vld [vmem:[#allocation7 + $0x48] sm:$0xf]
    %v3993 = vld [vmem:[#allocation7 + $0x50] sm:$0xf]
    %v3994 = vld [vmem:[#allocation7 + $0x58] sm:$0xf]
    %v3995 = vld [vmem:[#allocation9] sm:$0xff]
    %v3996 = vld [vmem:[#allocation9 + $0x8] sm:$0xff]
    %v3997 = vld [vmem:[#allocation9 + $0x10] sm:$0xff]
    %v3998 = vld [vmem:[#allocation9 + $0x18] sm:$0xff]
    %v3999 = vld [vmem:[#allocation9 + $0x20] sm:$0xff]
    %v4000 = vld [vmem:[#allocation9 + $0x28] sm:$0xff]
    %v4001 = vld [vmem:[#allocation9 + $0x30] sm:$0xff]
    %v4002 = vld [vmem:[#allocation9 + $0x38] sm:$0xff]
    %v4003 = vld [vmem:[#allocation9 + $0x40] sm:$0xf]
    %v4004 = vld [vmem:[#allocation9 + $0x48] sm:$0xf]
    %v4005 = vld [vmem:[#allocation9 + $0x50] sm:$0xf]
    %v4006 = vld [vmem:[#allocation9 + $0x58] sm:$0xf]
    %v4008 = vsel %vm327, %v3768, 0
    %v4011 = vsel %vm331, %v4003, 0
    %v4014 = vsel %vm331, %v4004, 0
    %v4017 = vsel %vm331, %v4005, 0
    %v4020 = vsel %vm331, %v4006, 0
    %4022 = vmatprep.subr.mxu0 0.0
    %4023 = vmatpush1.msra.mxu0 0.0
    %4024 = vmatprep.subr.mxu0 0.0
    %4025 = vmatpush1.msra.mxu0 0.0
    %4026 = vmatprep.subr.mxu0 0.0
    %4027 = vmatpush1.msra.mxu0 0.0
    %4028 = vmatprep.subr.mxu0 0.0
    %4029 = vmatpush1.msra.mxu0 0.0
    %4030 = vmatprep.subr.mxu0 0.0
    %4031 = vmatpush1.msra.mxu0 0.0
    %4032 = vmatprep.subr.mxu0 0.0
    %4033 = vmatpush1.msra.mxu0 0.0
    %4034 = vmatprep.subr.mxu0 0.0
    %4035 = vmatpush1.msra.mxu0 0.0
    %4036 = vmatprep.subr.mxu0 0.0
    %4037 = vmatpush1.msra.mxu0 0.0
    %4038 = vmatprep.subr.mxu0 0.0
    %4039 = vmatpush1.msra.mxu0 0.0
    %4040 = vmatprep.subr.mxu0 0.0
    %4041 = vmatpush1.msra.mxu0 0.0
    %4042 = vmatprep.subr.mxu0 0.0
    %4043 = vmatpush1.msra.mxu0 0.0
    %4044 = vmatprep.subr.mxu0 0.0
    %4045 = vmatpush1.msra.mxu0 0.0
    %4046 = vmatprep.subr.mxu0 0.0
    %4047 = vmatpush1.msra.mxu0 0.0
    %4048 = vmatprep.subr.mxu0 %v4014
    %4049 = vmatpush1.msra.mxu0 %v4011
    %4050 = vmatprep.subr.mxu0 %v4000
    %4051 = vmatpush1.msra.mxu0 %v3999
    %4052 = vmatprep.subr.mxu0 %v3996
    %4053 = vmatpush1.msra.mxu0 %v3995
    %4054 = vmatprep.subr.mxu0 0.0
    %4055 = vmatpush2.msra.mxu0 0.0
    %4056 = vmatprep.subr.mxu0 0.0
    %4057 = vmatpush2.msra.mxu0 0.0
    %4058 = vmatprep.subr.mxu0 0.0
    %4059 = vmatpush2.msra.mxu0 0.0
    %4060 = vmatprep.subr.mxu0 0.0
    %4061 = vmatpush2.msra.mxu0 0.0
    %4062 = vmatprep.subr.mxu0 0.0
    %4063 = vmatpush2.msra.mxu0 0.0
    %4064 = vmatprep.subr.mxu0 0.0
    %4065 = vmatpush2.msra.mxu0 0.0
    %4066 = vmatprep.subr.mxu0 0.0
    %4067 = vmatpush2.msra.mxu0 0.0
    %4068 = vmatprep.subr.mxu0 0.0
    %4069 = vmatpush2.msra.mxu0 0.0
    %4070 = vmatprep.subr.mxu0 0.0
    %4071 = vmatpush2.msra.mxu0 0.0
    %4072 = vmatprep.subr.mxu0 0.0
    %4073 = vmatpush2.msra.mxu0 0.0
    %4074 = vmatprep.subr.mxu0 0.0
    %4075 = vmatpush2.msra.mxu0 0.0
    %4076 = vmatprep.subr.mxu0 0.0
    %4077 = vmatpush2.msra.mxu0 0.0
    %4078 = vmatprep.subr.mxu0 0.0
    %4079 = vmatpush2.msra.mxu0 0.0
    %4080 = vmatprep.subr.mxu0 0.0
    %4081 = vmatpush2.msra.mxu0 0.0
    %4082 = vmatprep.subr.mxu0 0.0
    %4083 = vmatpush2.msra.mxu0 0.0
    %4084 = vmatprep.subr.mxu0 0.0
    %4085 = vmatpush2.msra.mxu0 0.0
    %4086 = vmatprep.mubr.f32.mxu0 0.0
    %4087 = vmatmul.mubr.f32.gmra.mxu0 %v4008
    %v4088 = vpop.f32.mrf.mxu0
    %v4089 = vadd.f32 0.0, %v4088
    %v4090 = vpop.f32.mrf.mxu0
    %v4091 = vadd.f32 0.0, %v4090
    %4092 = vdwg.mxu0
    %4093 = vmatprep.subr.mxu0 0.0
    %4094 = vmatpush1.msra.mxu0 0.0
    %4095 = vmatprep.subr.mxu0 0.0
    %4096 = vmatpush1.msra.mxu0 0.0
    %4097 = vmatprep.subr.mxu0 0.0
    %4098 = vmatpush1.msra.mxu0 0.0
    %4099 = vmatprep.subr.mxu0 0.0
    %4100 = vmatpush1.msra.mxu0 0.0
    %4101 = vmatprep.subr.mxu0 0.0
    %4102 = vmatpush1.msra.mxu0 0.0
    %4103 = vmatprep.subr.mxu0 0.0
    %4104 = vmatpush1.msra.mxu0 0.0
    %4105 = vmatprep.subr.mxu0 0.0
    %4106 = vmatpush1.msra.mxu0 0.0
    %4107 = vmatprep.subr.mxu0 0.0
    %4108 = vmatpush1.msra.mxu0 0.0
    %4109 = vmatprep.subr.mxu0 0.0
    %4110 = vmatpush1.msra.mxu0 0.0
    %4111 = vmatprep.subr.mxu0 0.0
    %4112 = vmatpush1.msra.mxu0 0.0
    %4113 = vmatprep.subr.mxu0 0.0
    %4114 = vmatpush1.msra.mxu0 0.0
    %4115 = vmatprep.subr.mxu0 0.0
    %4116 = vmatpush1.msra.mxu0 0.0
    %4117 = vmatprep.subr.mxu0 0.0
    %4118 = vmatpush1.msra.mxu0 0.0
    %4119 = vmatprep.subr.mxu0 %v4020
    %4120 = vmatpush1.msra.mxu0 %v4017
    %4121 = vmatprep.subr.mxu0 %v4002
    %4122 = vmatpush1.msra.mxu0 %v4001
    %4123 = vmatprep.subr.mxu0 %v3998
    %4124 = vmatpush1.msra.mxu0 %v3997
    %4125 = vmatprep.subr.mxu0 0.0
    %4126 = vmatpush2.msra.mxu0 0.0
    %4127 = vmatprep.subr.mxu0 0.0
    %4128 = vmatpush2.msra.mxu0 0.0
    %4129 = vmatprep.subr.mxu0 0.0
    %4130 = vmatpush2.msra.mxu0 0.0
    %4131 = vmatprep.subr.mxu0 0.0
    %4132 = vmatpush2.msra.mxu0 0.0
    %4133 = vmatprep.subr.mxu0 0.0
    %4134 = vmatpush2.msra.mxu0 0.0
    %4135 = vmatprep.subr.mxu0 0.0
    %4136 = vmatpush2.msra.mxu0 0.0
    %4137 = vmatprep.subr.mxu0 0.0
    %4138 = vmatpush2.msra.mxu0 0.0
    %4139 = vmatprep.subr.mxu0 0.0
    %4140 = vmatpush2.msra.mxu0 0.0
    %4141 = vmatprep.subr.mxu0 0.0
    %4142 = vmatpush2.msra.mxu0 0.0
    %4143 = vmatprep.subr.mxu0 0.0
    %4144 = vmatpush2.msra.mxu0 0.0
    %4145 = vmatprep.subr.mxu0 0.0
    %4146 = vmatpush2.msra.mxu0 0.0
    %4147 = vmatprep.subr.mxu0 0.0
    %4148 = vmatpush2.msra.mxu0 0.0
    %4149 = vmatprep.subr.mxu0 0.0
    %4150 = vmatpush2.msra.mxu0 0.0
    %4151 = vmatprep.subr.mxu0 0.0
    %4152 = vmatpush2.msra.mxu0 0.0
    %4153 = vmatprep.subr.mxu0 0.0
    %4154 = vmatpush2.msra.mxu0 0.0
    %4155 = vmatprep.subr.mxu0 0.0
    %4156 = vmatpush2.msra.mxu0 0.0
    %4157 = vmatprep.mubr.f32.mxu0 0.0
    %4158 = vmatmul.mubr.f32.gmra.mxu0 %v4008
    %v4159 = vpop.f32.mrf.mxu0
    %v4160 = vadd.f32 0.0, %v4159
    %v4161 = vpop.f32.mrf.mxu0
    %v4162 = vadd.f32 0.0, %v4161
    %4163 = vdwg.mxu0
    %v4165 = vrot.slane %v3982, 4
    %v4166 = vsel %vm327, %v4165, 0
    %v4169 = vsel %vm331, %v3991, 0
    %v4172 = vsel %vm331, %v3992, 0
    %v4175 = vsel %vm331, %v3993, 0
    %v4178 = vsel %vm331, %v3994, 0
    %4180 = vmatprep.subr.mxu0 0.0
    %4181 = vmatpush1.msra.mxu0 0.0
    %4182 = vmatprep.subr.mxu0 0.0
    %4183 = vmatpush1.msra.mxu0 0.0
    %4184 = vmatprep.subr.mxu0 0.0
    %4185 = vmatpush1.msra.mxu0 0.0
    %4186 = vmatprep.subr.mxu0 0.0
    %4187 = vmatpush1.msra.mxu0 0.0
    %4188 = vmatprep.subr.mxu0 0.0
    %4189 = vmatpush1.msra.mxu0 0.0
    %4190 = vmatprep.subr.mxu0 0.0
    %4191 = vmatpush1.msra.mxu0 0.0
    %4192 = vmatprep.subr.mxu0 0.0
    %4193 = vmatpush1.msra.mxu0 0.0
    %4194 = vmatprep.subr.mxu0 0.0
    %4195 = vmatpush1.msra.mxu0 0.0
    %4196 = vmatprep.subr.mxu0 0.0
    %4197 = vmatpush1.msra.mxu0 0.0
    %4198 = vmatprep.subr.mxu0 0.0
    %4199 = vmatpush1.msra.mxu0 0.0
    %4200 = vmatprep.subr.mxu0 0.0
    %4201 = vmatpush1.msra.mxu0 0.0
    %4202 = vmatprep.subr.mxu0 0.0
    %4203 = vmatpush1.msra.mxu0 0.0
    %4204 = vmatprep.subr.mxu0 0.0
    %4205 = vmatpush1.msra.mxu0 0.0
    %4206 = vmatprep.subr.mxu0 %v4172
    %4207 = vmatpush1.msra.mxu0 %v4169
    %4208 = vmatprep.subr.mxu0 %v3988
    %4209 = vmatpush1.msra.mxu0 %v3987
    %4210 = vmatprep.subr.mxu0 %v3984
    %4211 = vmatpush1.msra.mxu0 %v3983
    %4212 = vmatprep.subr.mxu0 0.0
    %4213 = vmatpush2.msra.mxu0 0.0
    %4214 = vmatprep.subr.mxu0 0.0
    %4215 = vmatpush2.msra.mxu0 0.0
    %4216 = vmatprep.subr.mxu0 0.0
    %4217 = vmatpush2.msra.mxu0 0.0
    %4218 = vmatprep.subr.mxu0 0.0
    %4219 = vmatpush2.msra.mxu0 0.0
    %4220 = vmatprep.subr.mxu0 0.0
    %4221 = vmatpush2.msra.mxu0 0.0
    %4222 = vmatprep.subr.mxu0 0.0
    %4223 = vmatpush2.msra.mxu0 0.0
    %4224 = vmatprep.subr.mxu0 0.0
    %4225 = vmatpush2.msra.mxu0 0.0
    %4226 = vmatprep.subr.mxu0 0.0
    %4227 = vmatpush2.msra.mxu0 0.0
    %4228 = vmatprep.subr.mxu0 0.0
    %4229 = vmatpush2.msra.mxu0 0.0
    %4230 = vmatprep.subr.mxu0 0.0
    %4231 = vmatpush2.msra.mxu0 0.0
    %4232 = vmatprep.subr.mxu0 0.0
    %4233 = vmatpush2.msra.mxu0 0.0
    %4234 = vmatprep.subr.mxu0 0.0
    %4235 = vmatpush2.msra.mxu0 0.0
    %4236 = vmatprep.subr.mxu0 0.0
    %4237 = vmatpush2.msra.mxu0 0.0
    %4238 = vmatprep.subr.mxu0 0.0
    %4239 = vmatpush2.msra.mxu0 0.0
    %4240 = vmatprep.subr.mxu0 0.0
    %4241 = vmatpush2.msra.mxu0 0.0
    %4242 = vmatprep.subr.mxu0 0.0
    %4243 = vmatpush2.msra.mxu0 0.0
    %4244 = vmatprep.mubr.f32.mxu0 0.0
    %4245 = vmatmul.mubr.f32.gmra.mxu0 %v4166
    %v4246 = vpop.f32.mrf.mxu0
    %v4247 = vadd.f32 %v4089, %v4246
    %v4248 = vpop.f32.mrf.mxu0
    %v4249 = vadd.f32 %v4091, %v4248
    %4250 = vdwg.mxu0
    %4251 = vmatprep.subr.mxu0 0.0
    %4252 = vmatpush1.msra.mxu0 0.0
    %4253 = vmatprep.subr.mxu0 0.0
    %4254 = vmatpush1.msra.mxu0 0.0
    %4255 = vmatprep.subr.mxu0 0.0
    %4256 = vmatpush1.msra.mxu0 0.0
    %4257 = vmatprep.subr.mxu0 0.0
    %4258 = vmatpush1.msra.mxu0 0.0
    %4259 = vmatprep.subr.mxu0 0.0
    %4260 = vmatpush1.msra.mxu0 0.0
    %4261 = vmatprep.subr.mxu0 0.0
    %4262 = vmatpush1.msra.mxu0 0.0
    %4263 = vmatprep.subr.mxu0 0.0
    %4264 = vmatpush1.msra.mxu0 0.0
    %4265 = vmatprep.subr.mxu0 0.0
    %4266 = vmatpush1.msra.mxu0 0.0
    %4267 = vmatprep.subr.mxu0 0.0
    %4268 = vmatpush1.msra.mxu0 0.0
    %4269 = vmatprep.subr.mxu0 0.0
    %4270 = vmatpush1.msra.mxu0 0.0
    %4271 = vmatprep.subr.mxu0 0.0
    %4272 = vmatpush1.msra.mxu0 0.0
    %4273 = vmatprep.subr.mxu0 0.0
    %4274 = vmatpush1.msra.mxu0 0.0
    %4275 = vmatprep.subr.mxu0 0.0
    %4276 = vmatpush1.msra.mxu0 0.0
    %4277 = vmatprep.subr.mxu0 %v4178
    %4278 = vmatpush1.msra.mxu0 %v4175
    %4279 = vmatprep.subr.mxu0 %v3990
    %4280 = vmatpush1.msra.mxu0 %v3989
    %4281 = vmatprep.subr.mxu0 %v3986
    %4282 = vmatpush1.msra.mxu0 %v3985
    %4283 = vmatprep.subr.mxu0 0.0
    %4284 = vmatpush2.msra.mxu0 0.0
    %4285 = vmatprep.subr.mxu0 0.0
    %4286 = vmatpush2.msra.mxu0 0.0
    %4287 = vmatprep.subr.mxu0 0.0
    %4288 = vmatpush2.msra.mxu0 0.0
    %4289 = vmatprep.subr.mxu0 0.0
    %4290 = vmatpush2.msra.mxu0 0.0
    %4291 = vmatprep.subr.mxu0 0.0
    %4292 = vmatpush2.msra.mxu0 0.0
    %4293 = vmatprep.subr.mxu0 0.0
    %4294 = vmatpush2.msra.mxu0 0.0
    %4295 = vmatprep.subr.mxu0 0.0
    %4296 = vmatpush2.msra.mxu0 0.0
    %4297 = vmatprep.subr.mxu0 0.0
    %4298 = vmatpush2.msra.mxu0 0.0
    %4299 = vmatprep.subr.mxu0 0.0
    %4300 = vmatpush2.msra.mxu0 0.0
    %4301 = vmatprep.subr.mxu0 0.0
    %4302 = vmatpush2.msra.mxu0 0.0
    %4303 = vmatprep.subr.mxu0 0.0
    %4304 = vmatpush2.msra.mxu0 0.0
    %4305 = vmatprep.subr.mxu0 0.0
    %4306 = vmatpush2.msra.mxu0 0.0
    %4307 = vmatprep.subr.mxu0 0.0
    %4308 = vmatpush2.msra.mxu0 0.0
    %4309 = vmatprep.subr.mxu0 0.0
    %4310 = vmatpush2.msra.mxu0 0.0
    %4311 = vmatprep.subr.mxu0 0.0
    %4312 = vmatpush2.msra.mxu0 0.0
    %4313 = vmatprep.subr.mxu0 0.0
    %4314 = vmatpush2.msra.mxu0 0.0
    %4315 = vmatprep.mubr.f32.mxu0 0.0
    %4316 = vmatmul.mubr.f32.gmra.mxu0 %v4166
    %v4317 = vpop.f32.mrf.mxu0
    %v4318 = vadd.f32 %v4160, %v4317
    %v4319 = vpop.f32.mrf.mxu0
    %v4320 = vadd.f32 %v4162, %v4319
    %4321 = vdwg.mxu0
    %v4322 = vadd.f32 %v4247, %v294
    %v4323 = vadd.f32 %v4249, %v298
    %v4324 = vadd.f32 %v4318, %v302
    %v4325 = vadd.f32 %v4320, %v306
    %v4326 = vxor.u32 %v4322, 2147483648
    %v4327 = vmul.f32 %v4326, 1.442695
    %v4328 = vpow.pop %v4327
    %v4329 = vadd.f32 %v4328, 1.0
    %v4330 = vrcp.pop %v4329
    %v4331 = vmul.f32 1.0, %v4330
    %v4332 = vxor.u32 %v4323, 2147483648
    %v4333 = vmul.f32 %v4332, 1.442695
    %v4334 = vpow.pop %v4333
    %v4335 = vadd.f32 %v4334, 1.0
    %v4336 = vrcp.pop %v4335
    %v4337 = vmul.f32 1.0, %v4336
    %v4338 = vtanh.pop %v4324
    %v4339 = vxor.u32 %v4325, 2147483648
    %v4340 = vmul.f32 %v4339, 1.442695
    %v4341 = vpow.pop %v4340
    %v4342 = vadd.f32 %v4341, 1.0
    %v4343 = vrcp.pop %v4342
    %v4344 = vmul.f32 1.0, %v4343
    %v4345 = vmul.f32 %v4337, %v3766
    %v4346 = vmul.f32 %v4331, %v4338
    %v4347 = vadd.f32 %v4345, %v4346
    %v4348 = vtanh.pop %v4347
    %v4349 = vmul.f32 %v4344, %v4348
    %4350 = vst [vmem:[#allocation3 + $0xc] sm:$0x3] %v4349
    %v4351 = vld [vmem:[#allocation2 + $0x20] sm:$0xc0]
    %v4352 = vld [vmem:[#allocation2 + $0x28] sm:$0xc0]
    %v4353 = vld [vmem:[#allocation2 + $0x30] sm:$0xc0]
    %v4354 = vld [vmem:[#allocation2 + $0x38] sm:$0xc0]
    %v4355 = vld [vmem:[%s3] sm:$0xff]
    %v4356 = vld [vmem:[%s3 + $0x8] sm:$0xff]
    %v4357 = vld [vmem:[%s3 + $0x10] sm:$0xff]
    %v4358 = vld [vmem:[%s3 + $0x18] sm:$0xff]
    %v4359 = vld [vmem:[%s3 + $0x20] sm:$0xff]
    %v4360 = vld [vmem:[%s3 + $0x28] sm:$0xff]
    %v4361 = vld [vmem:[%s3 + $0x30] sm:$0xff]
    %v4362 = vld [vmem:[%s3 + $0x38] sm:$0xff]
    %v4363 = vld [vmem:[%s3 + $0x40] sm:$0xf]
    %v4364 = vld [vmem:[%s3 + $0x48] sm:$0xf]
    %v4365 = vld [vmem:[%s3 + $0x50] sm:$0xf]
    %v4366 = vld [vmem:[%s3 + $0x58] sm:$0xf]
    %v4368 = vsel %vm331, %v4363, 0
    %v4371 = vsel %vm331, %v4364, 0
    %v4374 = vsel %vm331, %v4365, 0
    %v4377 = vsel %vm331, %v4366, 0
    %4379 = vmatprep.subr.mxu0 0.0
    %4380 = vmatpush1.msra.mxu0 0.0
    %4381 = vmatprep.subr.mxu0 0.0
    %4382 = vmatpush1.msra.mxu0 0.0
    %4383 = vmatprep.subr.mxu0 0.0
    %4384 = vmatpush1.msra.mxu0 0.0
    %4385 = vmatprep.subr.mxu0 0.0
    %4386 = vmatpush1.msra.mxu0 0.0
    %4387 = vmatprep.subr.mxu0 0.0
    %4388 = vmatpush1.msra.mxu0 0.0
    %4389 = vmatprep.subr.mxu0 0.0
    %4390 = vmatpush1.msra.mxu0 0.0
    %4391 = vmatprep.subr.mxu0 0.0
    %4392 = vmatpush1.msra.mxu0 0.0
    %4393 = vmatprep.subr.mxu0 0.0
    %4394 = vmatpush1.msra.mxu0 0.0
    %4395 = vmatprep.subr.mxu0 0.0
    %4396 = vmatpush1.msra.mxu0 0.0
    %4397 = vmatprep.subr.mxu0 0.0
    %4398 = vmatpush1.msra.mxu0 0.0
    %4399 = vmatprep.subr.mxu0 0.0
    %4400 = vmatpush1.msra.mxu0 0.0
    %4401 = vmatprep.subr.mxu0 0.0
    %4402 = vmatpush1.msra.mxu0 0.0
    %4403 = vmatprep.subr.mxu0 0.0
    %4404 = vmatpush1.msra.mxu0 0.0
    %4405 = vmatprep.subr.mxu0 %v4371
    %4406 = vmatpush1.msra.mxu0 %v4368
    %4407 = vmatprep.subr.mxu0 %v4360
    %4408 = vmatpush1.msra.mxu0 %v4359
    %4409 = vmatprep.subr.mxu0 %v4356
    %4410 = vmatpush1.msra.mxu0 %v4355
    %4411 = vmatprep.subr.mxu0 0.0
    %4412 = vmatpush2.msra.mxu0 0.0
    %4413 = vmatprep.subr.mxu0 0.0
    %4414 = vmatpush2.msra.mxu0 0.0
    %4415 = vmatprep.subr.mxu0 0.0
    %4416 = vmatpush2.msra.mxu0 0.0
    %4417 = vmatprep.subr.mxu0 0.0
    %4418 = vmatpush2.msra.mxu0 0.0
    %4419 = vmatprep.subr.mxu0 0.0
    %4420 = vmatpush2.msra.mxu0 0.0
    %4421 = vmatprep.subr.mxu0 0.0
    %4422 = vmatpush2.msra.mxu0 0.0
    %4423 = vmatprep.subr.mxu0 0.0
    %4424 = vmatpush2.msra.mxu0 0.0
    %4425 = vmatprep.subr.mxu0 0.0
    %4426 = vmatpush2.msra.mxu0 0.0
    %4427 = vmatprep.subr.mxu0 0.0
    %4428 = vmatpush2.msra.mxu0 0.0
    %4429 = vmatprep.subr.mxu0 0.0
    %4430 = vmatpush2.msra.mxu0 0.0
    %4431 = vmatprep.subr.mxu0 0.0
    %4432 = vmatpush2.msra.mxu0 0.0
    %4433 = vmatprep.subr.mxu0 0.0
    %4434 = vmatpush2.msra.mxu0 0.0
    %4435 = vmatprep.subr.mxu0 0.0
    %4436 = vmatpush2.msra.mxu0 0.0
    %4437 = vmatprep.subr.mxu0 0.0
    %4438 = vmatpush2.msra.mxu0 0.0
    %4439 = vmatprep.subr.mxu0 0.0
    %4440 = vmatpush2.msra.mxu0 0.0
    %4441 = vmatprep.subr.mxu0 0.0
    %4442 = vmatpush2.msra.mxu0 0.0
    %4443 = vmatprep.mubr.f32.mxu0 0.0
    %4444 = vmatmul.mubr.f32.gmra.mxu0 %v4166
    %v4445 = vpop.f32.mrf.mxu0
    %v4446 = vadd.f32 0.0, %v4445
    %v4447 = vpop.f32.mrf.mxu0
    %v4448 = vadd.f32 0.0, %v4447
    %4449 = vdwg.mxu0
    %4450 = vmatprep.subr.mxu0 0.0
    %4451 = vmatpush1.msra.mxu0 0.0
    %4452 = vmatprep.subr.mxu0 0.0
    %4453 = vmatpush1.msra.mxu0 0.0
    %4454 = vmatprep.subr.mxu0 0.0
    %4455 = vmatpush1.msra.mxu0 0.0
    %4456 = vmatprep.subr.mxu0 0.0
    %4457 = vmatpush1.msra.mxu0 0.0
    %4458 = vmatprep.subr.mxu0 0.0
    %4459 = vmatpush1.msra.mxu0 0.0
    %4460 = vmatprep.subr.mxu0 0.0
    %4461 = vmatpush1.msra.mxu0 0.0
    %4462 = vmatprep.subr.mxu0 0.0
    %4463 = vmatpush1.msra.mxu0 0.0
    %4464 = vmatprep.subr.mxu0 0.0
    %4465 = vmatpush1.msra.mxu0 0.0
    %4466 = vmatprep.subr.mxu0 0.0
    %4467 = vmatpush1.msra.mxu0 0.0
    %4468 = vmatprep.subr.mxu0 0.0
    %4469 = vmatpush1.msra.mxu0 0.0
    %4470 = vmatprep.subr.mxu0 0.0
    %4471 = vmatpush1.msra.mxu0 0.0
    %4472 = vmatprep.subr.mxu0 0.0
    %4473 = vmatpush1.msra.mxu0 0.0
    %4474 = vmatprep.subr.mxu0 0.0
    %4475 = vmatpush1.msra.mxu0 0.0
    %4476 = vmatprep.subr.mxu0 %v4377
    %4477 = vmatpush1.msra.mxu0 %v4374
    %4478 = vmatprep.subr.mxu0 %v4362
    %4479 = vmatpush1.msra.mxu0 %v4361
    %4480 = vmatprep.subr.mxu0 %v4358
    %4481 = vmatpush1.msra.mxu0 %v4357
    %4482 = vmatprep.subr.mxu0 0.0
    %4483 = vmatpush2.msra.mxu0 0.0
    %4484 = vmatprep.subr.mxu0 0.0
    %4485 = vmatpush2.msra.mxu0 0.0
    %4486 = vmatprep.subr.mxu0 0.0
    %4487 = vmatpush2.msra.mxu0 0.0
    %4488 = vmatprep.subr.mxu0 0.0
    %4489 = vmatpush2.msra.mxu0 0.0
    %4490 = vmatprep.subr.mxu0 0.0
    %4491 = vmatpush2.msra.mxu0 0.0
    %4492 = vmatprep.subr.mxu0 0.0
    %4493 = vmatpush2.msra.mxu0 0.0
    %4494 = vmatprep.subr.mxu0 0.0
    %4495 = vmatpush2.msra.mxu0 0.0
    %4496 = vmatprep.subr.mxu0 0.0
    %4497 = vmatpush2.msra.mxu0 0.0
    %4498 = vmatprep.subr.mxu0 0.0
    %4499 = vmatpush2.msra.mxu0 0.0
    %4500 = vmatprep.subr.mxu0 0.0
    %4501 = vmatpush2.msra.mxu0 0.0
    %4502 = vmatprep.subr.mxu0 0.0
    %4503 = vmatpush2.msra.mxu0 0.0
    %4504 = vmatprep.subr.mxu0 0.0
    %4505 = vmatpush2.msra.mxu0 0.0
    %4506 = vmatprep.subr.mxu0 0.0
    %4507 = vmatpush2.msra.mxu0 0.0
    %4508 = vmatprep.subr.mxu0 0.0
    %4509 = vmatpush2.msra.mxu0 0.0
    %4510 = vmatprep.subr.mxu0 0.0
    %4511 = vmatpush2.msra.mxu0 0.0
    %4512 = vmatprep.subr.mxu0 0.0
    %4513 = vmatpush2.msra.mxu0 0.0
    %4514 = vmatprep.mubr.f32.mxu0 0.0
    %4515 = vmatmul.mubr.f32.gmra.mxu0 %v4166
    %v4516 = vpop.f32.mrf.mxu0
    %v4517 = vadd.f32 0.0, %v4516
    %v4518 = vpop.f32.mrf.mxu0
    %v4519 = vadd.f32 0.0, %v4518
    %4520 = vdwg.mxu0
    %v4525 = vrot.slane %v4446, 2
    %v4526 = vrot.slane %v4448, 2
    %v4527 = vrot.slane %v4517, 2
    %v4528 = vrot.slane %v4519, 2
    %v4533 = vadd.f32 %v4351, %v4525
    %v4534 = vadd.f32 %v4352, %v4526
    %v4535 = vadd.f32 %v4353, %v4527
    %v4536 = vadd.f32 %v4354, %v4528
    %v4537 = vxor.u32 %v4533, 2147483648
    %v4538 = vmul.f32 %v4537, 1.442695
    %v4539 = vpow.pop %v4538
    %v4540 = vadd.f32 %v4539, 1.0
    %v4541 = vrcp.pop %v4540
    %v4542 = vmul.f32 1.0, %v4541
    %v4543 = vxor.u32 %v4534, 2147483648
    %v4544 = vmul.f32 %v4543, 1.442695
    %v4545 = vpow.pop %v4544
    %v4546 = vadd.f32 %v4545, 1.0
    %v4547 = vrcp.pop %v4546
    %v4548 = vmul.f32 1.0, %v4547
    %v4549 = vtanh.pop %v4535
    %v4550 = vxor.u32 %v4536, 2147483648
    %v4551 = vmul.f32 %v4550, 1.442695
    %v4552 = vpow.pop %v4551
    %v4553 = vadd.f32 %v4552, 1.0
    %v4554 = vrcp.pop %v4553
    %v4555 = vmul.f32 1.0, %v4554
    %v4557 = vrot.slane %v3980, 6
    %v4559 = vmul.f32 %v4548, %v4557
    %v4560 = vmul.f32 %v4542, %v4549
    %v4561 = vadd.f32 %v4559, %v4560
    %v4562 = vtanh.pop %v4561
    %v4563 = vmul.f32 %v4555, %v4562
    %v4564 = vld [vmem:[#allocation7] sm:$0xff]
    %v4565 = vld [vmem:[#allocation7 + $0x8] sm:$0xff]
    %v4566 = vld [vmem:[#allocation7 + $0x10] sm:$0xff]
    %v4567 = vld [vmem:[#allocation7 + $0x18] sm:$0xff]
    %v4568 = vld [vmem:[#allocation7 + $0x20] sm:$0xff]
    %v4569 = vld [vmem:[#allocation7 + $0x28] sm:$0xff]
    %v4570 = vld [vmem:[#allocation7 + $0x30] sm:$0xff]
    %v4571 = vld [vmem:[#allocation7 + $0x38] sm:$0xff]
    %v4572 = vld [vmem:[#allocation7 + $0x40] sm:$0xf]
    %v4573 = vld [vmem:[#allocation7 + $0x48] sm:$0xf]
    %v4574 = vld [vmem:[#allocation7 + $0x50] sm:$0xf]
    %v4575 = vld [vmem:[#allocation7 + $0x58] sm:$0xf]
    %v4576 = vld [vmem:[#allocation9] sm:$0xff]
    %v4577 = vld [vmem:[#allocation9 + $0x8] sm:$0xff]
    %v4578 = vld [vmem:[#allocation9 + $0x10] sm:$0xff]
    %v4579 = vld [vmem:[#allocation9 + $0x18] sm:$0xff]
    %v4580 = vld [vmem:[#allocation9 + $0x20] sm:$0xff]
    %v4581 = vld [vmem:[#allocation9 + $0x28] sm:$0xff]
    %v4582 = vld [vmem:[#allocation9 + $0x30] sm:$0xff]
    %v4583 = vld [vmem:[#allocation9 + $0x38] sm:$0xff]
    %v4584 = vld [vmem:[#allocation9 + $0x40] sm:$0xf]
    %v4585 = vld [vmem:[#allocation9 + $0x48] sm:$0xf]
    %v4586 = vld [vmem:[#allocation9 + $0x50] sm:$0xf]
    %v4587 = vld [vmem:[#allocation9 + $0x58] sm:$0xf]
    %v4589 = vsel %vm327, %v4349, 0
    %v4592 = vsel %vm331, %v4584, 0
    %v4595 = vsel %vm331, %v4585, 0
    %v4598 = vsel %vm331, %v4586, 0
    %v4601 = vsel %vm331, %v4587, 0
    %4603 = vmatprep.subr.mxu0 0.0
    %4604 = vmatpush1.msra.mxu0 0.0
    %4605 = vmatprep.subr.mxu0 0.0
    %4606 = vmatpush1.msra.mxu0 0.0
    %4607 = vmatprep.subr.mxu0 0.0
    %4608 = vmatpush1.msra.mxu0 0.0
    %4609 = vmatprep.subr.mxu0 0.0
    %4610 = vmatpush1.msra.mxu0 0.0
    %4611 = vmatprep.subr.mxu0 0.0
    %4612 = vmatpush1.msra.mxu0 0.0
    %4613 = vmatprep.subr.mxu0 0.0
    %4614 = vmatpush1.msra.mxu0 0.0
    %4615 = vmatprep.subr.mxu0 0.0
    %4616 = vmatpush1.msra.mxu0 0.0
    %4617 = vmatprep.subr.mxu0 0.0
    %4618 = vmatpush1.msra.mxu0 0.0
    %4619 = vmatprep.subr.mxu0 0.0
    %4620 = vmatpush1.msra.mxu0 0.0
    %4621 = vmatprep.subr.mxu0 0.0
    %4622 = vmatpush1.msra.mxu0 0.0
    %4623 = vmatprep.subr.mxu0 0.0
    %4624 = vmatpush1.msra.mxu0 0.0
    %4625 = vmatprep.subr.mxu0 0.0
    %4626 = vmatpush1.msra.mxu0 0.0
    %4627 = vmatprep.subr.mxu0 0.0
    %4628 = vmatpush1.msra.mxu0 0.0
    %4629 = vmatprep.subr.mxu0 %v4595
    %4630 = vmatpush1.msra.mxu0 %v4592
    %4631 = vmatprep.subr.mxu0 %v4581
    %4632 = vmatpush1.msra.mxu0 %v4580
    %4633 = vmatprep.subr.mxu0 %v4577
    %4634 = vmatpush1.msra.mxu0 %v4576
    %4635 = vmatprep.subr.mxu0 0.0
    %4636 = vmatpush2.msra.mxu0 0.0
    %4637 = vmatprep.subr.mxu0 0.0
    %4638 = vmatpush2.msra.mxu0 0.0
    %4639 = vmatprep.subr.mxu0 0.0
    %4640 = vmatpush2.msra.mxu0 0.0
    %4641 = vmatprep.subr.mxu0 0.0
    %4642 = vmatpush2.msra.mxu0 0.0
    %4643 = vmatprep.subr.mxu0 0.0
    %4644 = vmatpush2.msra.mxu0 0.0
    %4645 = vmatprep.subr.mxu0 0.0
    %4646 = vmatpush2.msra.mxu0 0.0
    %4647 = vmatprep.subr.mxu0 0.0
    %4648 = vmatpush2.msra.mxu0 0.0
    %4649 = vmatprep.subr.mxu0 0.0
    %4650 = vmatpush2.msra.mxu0 0.0
    %4651 = vmatprep.subr.mxu0 0.0
    %4652 = vmatpush2.msra.mxu0 0.0
    %4653 = vmatprep.subr.mxu0 0.0
    %4654 = vmatpush2.msra.mxu0 0.0
    %4655 = vmatprep.subr.mxu0 0.0
    %4656 = vmatpush2.msra.mxu0 0.0
    %4657 = vmatprep.subr.mxu0 0.0
    %4658 = vmatpush2.msra.mxu0 0.0
    %4659 = vmatprep.subr.mxu0 0.0
    %4660 = vmatpush2.msra.mxu0 0.0
    %4661 = vmatprep.subr.mxu0 0.0
    %4662 = vmatpush2.msra.mxu0 0.0
    %4663 = vmatprep.subr.mxu0 0.0
    %4664 = vmatpush2.msra.mxu0 0.0
    %4665 = vmatprep.subr.mxu0 0.0
    %4666 = vmatpush2.msra.mxu0 0.0
    %4667 = vmatprep.mubr.f32.mxu0 0.0
    %4668 = vmatmul.mubr.f32.gmra.mxu0 %v4589
    %v4669 = vpop.f32.mrf.mxu0
    %v4670 = vadd.f32 0.0, %v4669
    %v4671 = vpop.f32.mrf.mxu0
    %v4672 = vadd.f32 0.0, %v4671
    %4673 = vdwg.mxu0
    %4674 = vmatprep.subr.mxu0 0.0
    %4675 = vmatpush1.msra.mxu0 0.0
    %4676 = vmatprep.subr.mxu0 0.0
    %4677 = vmatpush1.msra.mxu0 0.0
    %4678 = vmatprep.subr.mxu0 0.0
    %4679 = vmatpush1.msra.mxu0 0.0
    %4680 = vmatprep.subr.mxu0 0.0
    %4681 = vmatpush1.msra.mxu0 0.0
    %4682 = vmatprep.subr.mxu0 0.0
    %4683 = vmatpush1.msra.mxu0 0.0
    %4684 = vmatprep.subr.mxu0 0.0
    %4685 = vmatpush1.msra.mxu0 0.0
    %4686 = vmatprep.subr.mxu0 0.0
    %4687 = vmatpush1.msra.mxu0 0.0
    %4688 = vmatprep.subr.mxu0 0.0
    %4689 = vmatpush1.msra.mxu0 0.0
    %4690 = vmatprep.subr.mxu0 0.0
    %4691 = vmatpush1.msra.mxu0 0.0
    %4692 = vmatprep.subr.mxu0 0.0
    %4693 = vmatpush1.msra.mxu0 0.0
    %4694 = vmatprep.subr.mxu0 0.0
    %4695 = vmatpush1.msra.mxu0 0.0
    %4696 = vmatprep.subr.mxu0 0.0
    %4697 = vmatpush1.msra.mxu0 0.0
    %4698 = vmatprep.subr.mxu0 0.0
    %4699 = vmatpush1.msra.mxu0 0.0
    %4700 = vmatprep.subr.mxu0 %v4601
    %4701 = vmatpush1.msra.mxu0 %v4598
    %4702 = vmatprep.subr.mxu0 %v4583
    %4703 = vmatpush1.msra.mxu0 %v4582
    %4704 = vmatprep.subr.mxu0 %v4579
    %4705 = vmatpush1.msra.mxu0 %v4578
    %4706 = vmatprep.subr.mxu0 0.0
    %4707 = vmatpush2.msra.mxu0 0.0
    %4708 = vmatprep.subr.mxu0 0.0
    %4709 = vmatpush2.msra.mxu0 0.0
    %4710 = vmatprep.subr.mxu0 0.0
    %4711 = vmatpush2.msra.mxu0 0.0
    %4712 = vmatprep.subr.mxu0 0.0
    %4713 = vmatpush2.msra.mxu0 0.0
    %4714 = vmatprep.subr.mxu0 0.0
    %4715 = vmatpush2.msra.mxu0 0.0
    %4716 = vmatprep.subr.mxu0 0.0
    %4717 = vmatpush2.msra.mxu0 0.0
    %4718 = vmatprep.subr.mxu0 0.0
    %4719 = vmatpush2.msra.mxu0 0.0
    %4720 = vmatprep.subr.mxu0 0.0
    %4721 = vmatpush2.msra.mxu0 0.0
    %4722 = vmatprep.subr.mxu0 0.0
    %4723 = vmatpush2.msra.mxu0 0.0
    %4724 = vmatprep.subr.mxu0 0.0
    %4725 = vmatpush2.msra.mxu0 0.0
    %4726 = vmatprep.subr.mxu0 0.0
    %4727 = vmatpush2.msra.mxu0 0.0
    %4728 = vmatprep.subr.mxu0 0.0
    %4729 = vmatpush2.msra.mxu0 0.0
    %4730 = vmatprep.subr.mxu0 0.0
    %4731 = vmatpush2.msra.mxu0 0.0
    %4732 = vmatprep.subr.mxu0 0.0
    %4733 = vmatpush2.msra.mxu0 0.0
    %4734 = vmatprep.subr.mxu0 0.0
    %4735 = vmatpush2.msra.mxu0 0.0
    %4736 = vmatprep.subr.mxu0 0.0
    %4737 = vmatpush2.msra.mxu0 0.0
    %4738 = vmatprep.mubr.f32.mxu0 0.0
    %4739 = vmatmul.mubr.f32.gmra.mxu0 %v4589
    %v4740 = vpop.f32.mrf.mxu0
    %v4741 = vadd.f32 0.0, %v4740
    %v4742 = vpop.f32.mrf.mxu0
    %v4743 = vadd.f32 0.0, %v4742
    %4744 = vdwg.mxu0
    %v4746 = vrot.slane %v4563, 6
    %v4747 = vsel %vm327, %v4746, 0
    %v4750 = vsel %vm331, %v4572, 0
    %v4753 = vsel %vm331, %v4573, 0
    %v4756 = vsel %vm331, %v4574, 0
    %v4759 = vsel %vm331, %v4575, 0
    %4761 = vmatprep.subr.mxu0 0.0
    %4762 = vmatpush1.msra.mxu0 0.0
    %4763 = vmatprep.subr.mxu0 0.0
    %4764 = vmatpush1.msra.mxu0 0.0
    %4765 = vmatprep.subr.mxu0 0.0
    %4766 = vmatpush1.msra.mxu0 0.0
    %4767 = vmatprep.subr.mxu0 0.0
    %4768 = vmatpush1.msra.mxu0 0.0
    %4769 = vmatprep.subr.mxu0 0.0
    %4770 = vmatpush1.msra.mxu0 0.0
    %4771 = vmatprep.subr.mxu0 0.0
    %4772 = vmatpush1.msra.mxu0 0.0
    %4773 = vmatprep.subr.mxu0 0.0
    %4774 = vmatpush1.msra.mxu0 0.0
    %4775 = vmatprep.subr.mxu0 0.0
    %4776 = vmatpush1.msra.mxu0 0.0
    %4777 = vmatprep.subr.mxu0 0.0
    %4778 = vmatpush1.msra.mxu0 0.0
    %4779 = vmatprep.subr.mxu0 0.0
    %4780 = vmatpush1.msra.mxu0 0.0
    %4781 = vmatprep.subr.mxu0 0.0
    %4782 = vmatpush1.msra.mxu0 0.0
    %4783 = vmatprep.subr.mxu0 0.0
    %4784 = vmatpush1.msra.mxu0 0.0
    %4785 = vmatprep.subr.mxu0 0.0
    %4786 = vmatpush1.msra.mxu0 0.0
    %4787 = vmatprep.subr.mxu0 %v4753
    %4788 = vmatpush1.msra.mxu0 %v4750
    %4789 = vmatprep.subr.mxu0 %v4569
    %4790 = vmatpush1.msra.mxu0 %v4568
    %4791 = vmatprep.subr.mxu0 %v4565
    %4792 = vmatpush1.msra.mxu0 %v4564
    %4793 = vmatprep.subr.mxu0 0.0
    %4794 = vmatpush2.msra.mxu0 0.0
    %4795 = vmatprep.subr.mxu0 0.0
    %4796 = vmatpush2.msra.mxu0 0.0
    %4797 = vmatprep.subr.mxu0 0.0
    %4798 = vmatpush2.msra.mxu0 0.0
    %4799 = vmatprep.subr.mxu0 0.0
    %4800 = vmatpush2.msra.mxu0 0.0
    %4801 = vmatprep.subr.mxu0 0.0
    %4802 = vmatpush2.msra.mxu0 0.0
    %4803 = vmatprep.subr.mxu0 0.0
    %4804 = vmatpush2.msra.mxu0 0.0
    %4805 = vmatprep.subr.mxu0 0.0
    %4806 = vmatpush2.msra.mxu0 0.0
    %4807 = vmatprep.subr.mxu0 0.0
    %4808 = vmatpush2.msra.mxu0 0.0
    %4809 = vmatprep.subr.mxu0 0.0
    %4810 = vmatpush2.msra.mxu0 0.0
    %4811 = vmatprep.subr.mxu0 0.0
    %4812 = vmatpush2.msra.mxu0 0.0
    %4813 = vmatprep.subr.mxu0 0.0
    %4814 = vmatpush2.msra.mxu0 0.0
    %4815 = vmatprep.subr.mxu0 0.0
    %4816 = vmatpush2.msra.mxu0 0.0
    %4817 = vmatprep.subr.mxu0 0.0
    %4818 = vmatpush2.msra.mxu0 0.0
    %4819 = vmatprep.subr.mxu0 0.0
    %4820 = vmatpush2.msra.mxu0 0.0
    %4821 = vmatprep.subr.mxu0 0.0
    %4822 = vmatpush2.msra.mxu0 0.0
    %4823 = vmatprep.subr.mxu0 0.0
    %4824 = vmatpush2.msra.mxu0 0.0
    %4825 = vmatprep.mubr.f32.mxu0 0.0
    %4826 = vmatmul.mubr.f32.gmra.mxu0 %v4747
    %v4827 = vpop.f32.mrf.mxu0
    %v4828 = vadd.f32 %v4670, %v4827
    %v4829 = vpop.f32.mrf.mxu0
    %v4830 = vadd.f32 %v4672, %v4829
    %4831 = vdwg.mxu0
    %4832 = vmatprep.subr.mxu0 0.0
    %4833 = vmatpush1.msra.mxu0 0.0
    %4834 = vmatprep.subr.mxu0 0.0
    %4835 = vmatpush1.msra.mxu0 0.0
    %4836 = vmatprep.subr.mxu0 0.0
    %4837 = vmatpush1.msra.mxu0 0.0
    %4838 = vmatprep.subr.mxu0 0.0
    %4839 = vmatpush1.msra.mxu0 0.0
    %4840 = vmatprep.subr.mxu0 0.0
    %4841 = vmatpush1.msra.mxu0 0.0
    %4842 = vmatprep.subr.mxu0 0.0
    %4843 = vmatpush1.msra.mxu0 0.0
    %4844 = vmatprep.subr.mxu0 0.0
    %4845 = vmatpush1.msra.mxu0 0.0
    %4846 = vmatprep.subr.mxu0 0.0
    %4847 = vmatpush1.msra.mxu0 0.0
    %4848 = vmatprep.subr.mxu0 0.0
    %4849 = vmatpush1.msra.mxu0 0.0
    %4850 = vmatprep.subr.mxu0 0.0
    %4851 = vmatpush1.msra.mxu0 0.0
    %4852 = vmatprep.subr.mxu0 0.0
    %4853 = vmatpush1.msra.mxu0 0.0
    %4854 = vmatprep.subr.mxu0 0.0
    %4855 = vmatpush1.msra.mxu0 0.0
    %4856 = vmatprep.subr.mxu0 0.0
    %4857 = vmatpush1.msra.mxu0 0.0
    %4858 = vmatprep.subr.mxu0 %v4759
    %4859 = vmatpush1.msra.mxu0 %v4756
    %4860 = vmatprep.subr.mxu0 %v4571
    %4861 = vmatpush1.msra.mxu0 %v4570
    %4862 = vmatprep.subr.mxu0 %v4567
    %4863 = vmatpush1.msra.mxu0 %v4566
    %4864 = vmatprep.subr.mxu0 0.0
    %4865 = vmatpush2.msra.mxu0 0.0
    %4866 = vmatprep.subr.mxu0 0.0
    %4867 = vmatpush2.msra.mxu0 0.0
    %4868 = vmatprep.subr.mxu0 0.0
    %4869 = vmatpush2.msra.mxu0 0.0
    %4870 = vmatprep.subr.mxu0 0.0
    %4871 = vmatpush2.msra.mxu0 0.0
    %4872 = vmatprep.subr.mxu0 0.0
    %4873 = vmatpush2.msra.mxu0 0.0
    %4874 = vmatprep.subr.mxu0 0.0
    %4875 = vmatpush2.msra.mxu0 0.0
    %4876 = vmatprep.subr.mxu0 0.0
    %4877 = vmatpush2.msra.mxu0 0.0
    %4878 = vmatprep.subr.mxu0 0.0
    %4879 = vmatpush2.msra.mxu0 0.0
    %4880 = vmatprep.subr.mxu0 0.0
    %4881 = vmatpush2.msra.mxu0 0.0
    %4882 = vmatprep.subr.mxu0 0.0
    %4883 = vmatpush2.msra.mxu0 0.0
    %4884 = vmatprep.subr.mxu0 0.0
    %4885 = vmatpush2.msra.mxu0 0.0
    %4886 = vmatprep.subr.mxu0 0.0
    %4887 = vmatpush2.msra.mxu0 0.0
    %4888 = vmatprep.subr.mxu0 0.0
    %4889 = vmatpush2.msra.mxu0 0.0
    %4890 = vmatprep.subr.mxu0 0.0
    %4891 = vmatpush2.msra.mxu0 0.0
    %4892 = vmatprep.subr.mxu0 0.0
    %4893 = vmatpush2.msra.mxu0 0.0
    %4894 = vmatprep.subr.mxu0 0.0
    %4895 = vmatpush2.msra.mxu0 0.0
    %4896 = vmatprep.mubr.f32.mxu0 0.0
    %4897 = vmatmul.mubr.f32.gmra.mxu0 %v4747
    %v4898 = vpop.f32.mrf.mxu0
    %v4899 = vadd.f32 %v4741, %v4898
    %v4900 = vpop.f32.mrf.mxu0
    %v4901 = vadd.f32 %v4743, %v4900
    %4902 = vdwg.mxu0
    %v4903 = vadd.f32 %v4828, %v294
    %v4904 = vadd.f32 %v4830, %v298
    %v4905 = vadd.f32 %v4899, %v302
    %v4906 = vadd.f32 %v4901, %v306
    %v4907 = vxor.u32 %v4903, 2147483648
    %v4908 = vmul.f32 %v4907, 1.442695
    %v4909 = vpow.pop %v4908
    %v4910 = vadd.f32 %v4909, 1.0
    %v4911 = vrcp.pop %v4910
    %v4912 = vmul.f32 1.0, %v4911
    %v4913 = vxor.u32 %v4904, 2147483648
    %v4914 = vmul.f32 %v4913, 1.442695
    %v4915 = vpow.pop %v4914
    %v4916 = vadd.f32 %v4915, 1.0
    %v4917 = vrcp.pop %v4916
    %v4918 = vmul.f32 1.0, %v4917
    %v4919 = vtanh.pop %v4905
    %v4920 = vxor.u32 %v4906, 2147483648
    %v4921 = vmul.f32 %v4920, 1.442695
    %v4922 = vpow.pop %v4921
    %v4923 = vadd.f32 %v4922, 1.0
    %v4924 = vrcp.pop %v4923
    %v4925 = vmul.f32 1.0, %v4924
    %v4926 = vmul.f32 %v4918, %v4347
    %v4927 = vmul.f32 %v4912, %v4919
    %v4928 = vadd.f32 %v4926, %v4927
    %v4929 = vtanh.pop %v4928
    %v4930 = vmul.f32 %v4925, %v4929
    %4931 = vst [vmem:[#allocation3 + $0xe] sm:$0x3] %v4930
    %v4932 = vld [vmem:[#allocation3] sm:$0xff]
    %v4933 = vld [vmem:[#allocation3 + $0x8] sm:$0xff]
    %v4934 = vld [vmem:[%s7] sm:$0xff]
    %v4935 = vld [vmem:[%s7 + $0x8] sm:$0xff]
    %v4936 = vld [vmem:[%s7 + $0x10] sm:$0xff]
    %v4937 = vld [vmem:[%s7 + $0x18] sm:$0xff]
    %v4938 = vld [vmem:[%s7 + $0x20] sm:$0xff]
    %v4939 = vld [vmem:[%s7 + $0x28] sm:$0xff]
    %v4940 = vld [vmem:[%s7 + $0x30] sm:$0xff]
    %v4941 = vld [vmem:[%s7 + $0x38] sm:$0xff]
    %v4942 = vld [vmem:[%s7 + $0x40] sm:$0xff]
    %v4943 = vld [vmem:[%s7 + $0x48] sm:$0xff]
    %v4944 = vld [vmem:[%s7 + $0x50] sm:$0xff]
    %v4945 = vld [vmem:[%s7 + $0x58] sm:$0xff]
    %v4946 = vld [vmem:[%s7 + $0x60] sm:$0xff]
    %v4947 = vld [vmem:[%s7 + $0x68] sm:$0xff]
    %v4948 = vld [vmem:[%s7 + $0x70] sm:$0xff]
    %v4949 = vld [vmem:[%s7 + $0x78] sm:$0xff]
    %v4950 = vld [vmem:[#allocation4] sm:$0x1]
    %v4952 = vlaneseq
    %v4953 = vshrl.u32 %v4952, 7
    %v4954 = vsub.s32 0, %v4953
    %v4955 = vrot.slane %v4950, %v4954
    %4957 = vmatprep.subr.mxu0 0.0
    %4958 = vmatpush1.msra.mxu0 %v4949
    %4959 = vmatprep.subr.mxu0 0.0
    %4960 = vmatpush1.msra.mxu0 %v4948
    %4961 = vmatprep.subr.mxu0 0.0
    %4962 = vmatpush1.msra.mxu0 %v4947
    %4963 = vmatprep.subr.mxu0 0.0
    %4964 = vmatpush1.msra.mxu0 %v4946
    %4965 = vmatprep.subr.mxu0 0.0
    %4966 = vmatpush1.msra.mxu0 %v4945
    %4967 = vmatprep.subr.mxu0 0.0
    %4968 = vmatpush1.msra.mxu0 %v4944
    %4969 = vmatprep.subr.mxu0 0.0
    %4970 = vmatpush1.msra.mxu0 %v4943
    %4971 = vmatprep.subr.mxu0 0.0
    %4972 = vmatpush1.msra.mxu0 %v4942
    %4973 = vmatprep.subr.mxu0 0.0
    %4974 = vmatpush1.msra.mxu0 %v4941
    %4975 = vmatprep.subr.mxu0 0.0
    %4976 = vmatpush1.msra.mxu0 %v4940
    %4977 = vmatprep.subr.mxu0 0.0
    %4978 = vmatpush1.msra.mxu0 %v4939
    %4979 = vmatprep.subr.mxu0 0.0
    %4980 = vmatpush1.msra.mxu0 %v4938
    %4981 = vmatprep.subr.mxu0 0.0
    %4982 = vmatpush1.msra.mxu0 %v4937
    %4983 = vmatprep.subr.mxu0 0.0
    %4984 = vmatpush1.msra.mxu0 %v4936
    %4985 = vmatprep.subr.mxu0 0.0
    %4986 = vmatpush1.msra.mxu0 %v4935
    %4987 = vmatprep.subr.mxu0 0.0
    %4988 = vmatpush1.msra.mxu0 %v4934
    %4989 = vmatprep.subr.mxu0 0.0
    %4990 = vmatpush2.msra.mxu0 0.0
    %4991 = vmatprep.subr.mxu0 0.0
    %4992 = vmatpush2.msra.mxu0 0.0
    %4993 = vmatprep.subr.mxu0 0.0
    %4994 = vmatpush2.msra.mxu0 0.0
    %4995 = vmatprep.subr.mxu0 0.0
    %4996 = vmatpush2.msra.mxu0 0.0
    %4997 = vmatprep.subr.mxu0 0.0
    %4998 = vmatpush2.msra.mxu0 0.0
    %4999 = vmatprep.subr.mxu0 0.0
    %5000 = vmatpush2.msra.mxu0 0.0
    %5001 = vmatprep.subr.mxu0 0.0
    %5002 = vmatpush2.msra.mxu0 0.0
    %5003 = vmatprep.subr.mxu0 0.0
    %5004 = vmatpush2.msra.mxu0 0.0
    %5005 = vmatprep.subr.mxu0 0.0
    %5006 = vmatpush2.msra.mxu0 0.0
    %5007 = vmatprep.subr.mxu0 0.0
    %5008 = vmatpush2.msra.mxu0 0.0
    %5009 = vmatprep.subr.mxu0 0.0
    %5010 = vmatpush2.msra.mxu0 0.0
    %5011 = vmatprep.subr.mxu0 0.0
    %5012 = vmatpush2.msra.mxu0 0.0
    %5013 = vmatprep.subr.mxu0 0.0
    %5014 = vmatpush2.msra.mxu0 0.0
    %5015 = vmatprep.subr.mxu0 0.0
    %5016 = vmatpush2.msra.mxu0 0.0
    %5017 = vmatprep.subr.mxu0 0.0
    %5018 = vmatpush2.msra.mxu0 0.0
    %5019 = vmatprep.subr.mxu0 0.0
    %5020 = vmatpush2.msra.mxu0 0.0
    %5021 = vmatprep.mubr.f32.mxu0 0.0
    %5022 = vmatmul.mubr.f32.gmra.mxu0 %v4932
    %v5023 = vpop.f32.mrf.mxu0
    %v5024 = vadd.f32 %v4955, %v5023
    %v5025 = vpop.f32.mrf.mxu0
    %5026 = vmatprep.mubr.f32.mxu0 0.0
    %5027 = vmatmul.mubr.f32.gmra.mxu0 %v4933
    %v5028 = vpop.f32.mrf.mxu0
    %v5029 = vadd.f32 %v4955, %v5028
    %v5030 = vpop.f32.mrf.mxu0
    %5031 = vdwg.mxu0
    %vm5032 = vcmask 7168
    %5033 = vst.msk [vmem:[%s9] sm:$0xff] %vm5032, %v5024
    %5034 = vst.msk [vmem:[%s9 + $0x8] sm:$0xff] %vm5032, %v5029
    // Predicated region
    $region50: #{tpu_custom_call.1} parent=1 // pred_check
      _
    $region51: #{tpu_custom_call.1} parent=1 // pred_check_branch
      %5036 = sbr.rel (0) target = $region53
    $region52: #{tpu_custom_call.1} parent=1 // pred_region
      _
    $region53: #{tpu_custom_call.1} parent=1 // pred_fallthru
      _
    // Predicated region
    $region54: #{tpu_custom_call.1} parent=1 // pred_check
      _
    $region55: #{tpu_custom_call.1} parent=1 // pred_check_branch
      %5038 = sbr.rel (0) target = $region57
    $region56: #{tpu_custom_call.1} parent=1 // pred_region
      _
    $region57: #{tpu_custom_call.1} parent=1 // pred_fallthru
      _
    %5039 = vsyncpa [#allocation6], 1
    %5040 = vsyncpa [#allocation8], 1

</llo_original>
